<compile_context>
chip_gen: v7x
topology: tpu7x:2x2x1
jax: 0.10.0
libtpu: 0.0.40
codegen_flags: <defaults>
</compile_context>

<pallas_src>
import functools

import jax
import jax.numpy as jnp
from jax.experimental import pallas as pl
from jax.experimental.pallas import tpu as pltpu


# --------------------------- in-kernel helpers ------------------------------

_SQRT1_2 = 0.7071067811865476


def _erf_approx(z):
    # Abramowitz & Stegun 7.1.26, |error| < 1.5e-7 -> keeps exact-gelu
    # semantics without relying on an erf lowering inside Mosaic.
    a1, a2, a3, a4, a5 = (0.254829592, -0.284496736, 1.421413741,
                          -1.453152027, 1.061405429)
    p = 0.3275911
    s = jnp.where(z < 0.0, -1.0, 1.0)
    az = jnp.abs(z)
    t = 1.0 / (1.0 + p * az)
    poly = ((((a5 * t + a4) * t + a3) * t + a2) * t + a1) * t
    return s * (1.0 - poly * jnp.exp(-az * az))


def _gelu_exact(v):
    return 0.5 * v * (1.0 + _erf_approx(v * _SQRT1_2))


def _layer_norm(v, g, b):
    mu = jnp.mean(v, axis=-1, keepdims=True)
    var = jnp.mean((v - mu) ** 2, axis=-1, keepdims=True)
    return (v - mu) * jax.lax.rsqrt(var + 1e-6) * g + b


# --------------------------- Pallas kernels ---------------------------------

def _embed_kernel(xp_ref, w_ref, b_ref, pos_ref, o_ref):
    """Patch embedding: (S, K) @ (K, D) + bias + positional embedding."""
    xp = xp_ref[0].astype(jnp.bfloat16)                     # (S, K)
    y = jnp.dot(xp, w_ref[...], preferred_element_type=jnp.float32)
    y = y + b_ref[...] + pos_ref[0]
    o_ref[0] = y.astype(o_ref.dtype)


def _block_kernel(x_ref, ln1_g_ref, ln1_b_ref, wqkv_ref, bqkv_ref,
                  ow_ref, ob_ref, ln2_g_ref, ln2_b_ref,
                  w1_ref, b1_ref, w2_ref, b2_ref,
                  neg_factor_ref, dis_ref, *rest,
                  num_heads, apply_final_ln):
    if apply_final_ln:
        encg_ref, encb_ref, o_ref = rest
    else:
        (o_ref,) = rest

    f32 = jnp.float32
    bf16 = jnp.bfloat16
    smooth = 1e-4

    x = x_ref[0].astype(f32)                                # (S, D)
    D = x.shape[1]
    H = num_heads
    Dh = D // H

    def dense(a, w_ref_, b_ref_):
        # bf16 MXU operands, f32 accumulation; bias add in f32.
        return jnp.dot(a.astype(bf16), w_ref_[...],
                       preferred_element_type=f32) + b_ref_[...]

    # ---- attention branch (pre-LN) ----
    xn = _layer_norm(x, ln1_g_ref[...], ln1_b_ref[...])
    qkv = dense(xn, wqkv_ref, bqkv_ref)                     # (S, 3D) f32
    dis_base = dis_ref[...]                                 # (S, S) f32

    ctx_parts = []
    for h in range(H):
        q = qkv[:, h * Dh:(h + 1) * Dh]                     # (S, Dh)
        k = qkv[:, D + h * Dh:D + (h + 1) * Dh]
        v = qkv[:, 2 * D + h * Dh:2 * D + (h + 1) * Dh]

        # scores = q @ k^T  (bf16 MXU operands, f32 accumulation)
        scores = jax.lax.dot_general(
            q.astype(bf16), k.astype(bf16),
            (((1,), (1,)), ((), ())), preferred_element_type=f32)   # (S, S)

        # cosine normalization (f32, EUP reciprocal instead of full divide)
        qn = jnp.sqrt(jnp.sum(q * q, axis=-1, keepdims=True) + smooth)  # (S,1)
        kn = jnp.sqrt(jnp.sum(k * k, axis=-1, keepdims=True) + smooth)  # (S,1)
        denom = qn * kn.T + smooth
        probs = scores * pl.reciprocal(denom, approx=True)

        # gaussian relative-position reweighting, computed in-kernel
        # (exp + reciprocal on the EUP slot; overlaps the MXU matmuls)
        nfh = neg_factor_ref[0:1, h:h + 1]                  # (1, 1) f32, = -factor_h
        dis_h = jnp.exp(nfh * dis_base)
        dis_h = dis_h * pl.reciprocal(
            jnp.sum(dis_h, axis=-1, keepdims=True), approx=True)
        probs = probs * dis_h

        ctx_parts.append(
            jnp.dot(probs.astype(bf16), v.astype(bf16),
                    preferred_element_type=f32))            # (S, Dh)

    ctx = jnp.concatenate(ctx_parts, axis=-1)               # (S, D)
    x = dense(ctx, ow_ref, ob_ref) + x                      # out-proj + residual

    # ---- MLP branch (pre-LN) ----
    xn2 = _layer_norm(x, ln2_g_ref[...], ln2_b_ref[...])
    y = _gelu_exact(dense(xn2, w1_ref, b1_ref))
    x = dense(y, w2_ref, b2_ref) + x

    if apply_final_ln:
        x = _layer_norm(x, encg_ref[...], encb_ref[...])

    o_ref[0] = x.astype(o_ref.dtype)


# --------------------------- pallas_call wrappers ----------------------------

def patch_embed(xp, w, b, pos):
    """xp: (B, S, K) f32, w: (K, D) bf16, b: (1, D) f32, pos: (1, S, D) f32."""
    B, S, K = xp.shape
    D = w.shape[1]
    return pl.pallas_call(
        _embed_kernel,
        out_shape=jax.ShapeDtypeStruct((B, S, D), jnp.float32),
        grid=(B,),
        in_specs=[pl.BlockSpec((1, S, K), lambda bi: (bi, 0, 0)),
                  pl.BlockSpec((K, D), lambda bi: (0, 0)),
                  pl.BlockSpec((1, D), lambda bi: (0, 0)),
                  pl.BlockSpec((1, S, D), lambda bi: (0, 0, 0))],
        out_specs=pl.BlockSpec((1, S, D), lambda bi: (bi, 0, 0)),
        compiler_params=pltpu.CompilerParams(
            dimension_semantics=("parallel",),
            vmem_limit_bytes=32 * 1024 * 1024),
    )(xp, w, b, pos)


def fused_block(x, p, dis_base, num_heads, enc_ln=None):
    """One whole transformer block (optionally + final encoder LN) in one call."""
    B, S, D = x.shape
    M = p["fc1_w"].shape[1]
    H = num_heads
    apply_final_ln = enc_ln is not None

    def c2(shape):  # small resident block with constant index map
        return pl.BlockSpec(shape, lambda bi: (0, 0))

    x_spec = pl.BlockSpec((1, S, D), lambda bi: (bi, 0, 0))

    in_specs = [
        x_spec,
        c2((1, D)), c2((1, D)),            # LN1
        c2((D, 3 * D)), c2((1, 3 * D)),    # fused QKV
        c2((D, D)), c2((1, D)),            # out-proj
        c2((1, D)), c2((1, D)),            # LN2
        c2((D, M)), c2((1, M)),            # FC1
        c2((M, D)), c2((1, D)),            # FC2
        c2((1, H)),                        # per-head gaussian factor (negated)
        c2((S, S)),                        # dis_base
    ]
    args = [
        x,
        p["ln1_g"], p["ln1_b"],
        p["wqkv"], p["bqkv"],
        p["o_w"], p["o_b"],
        p["ln2_g"], p["ln2_b"],
        p["fc1_w"], p["fc1_b"],
        p["fc2_w"], p["fc2_b"],
        p["neg_factor"],
        dis_base,
    ]
    if apply_final_ln:
        in_specs += [c2((1, D)), c2((1, D))]
        args += [enc_ln[0].reshape(1, D), enc_ln[1].reshape(1, D)]

    kernel = functools.partial(_block_kernel, num_heads=H,
                               apply_final_ln=apply_final_ln)
    return pl.pallas_call(
        kernel,
        out_shape=jax.ShapeDtypeStruct((B, S, D), jnp.float32),
        grid=(B,),
        in_specs=in_specs,
        out_specs=x_spec,
        compiler_params=pltpu.CompilerParams(
            dimension_semantics=("parallel",),
            vmem_limit_bytes=32 * 1024 * 1024),
    )(*args)


# --------------------------- model (plain-JAX glue) --------------------------

def relative_pos_dis(height, width):
    ch, cw = jnp.meshgrid(jnp.arange(height), jnp.arange(width), indexing="ij")
    coords = jnp.stack([ch, cw]).reshape(2, -1)                 # (2, N)
    rel = coords[:, :, None] - coords[:, None, :]               # (2, N, N)
    rel = jnp.transpose(rel, (1, 2, 0)).astype(jnp.float32)     # (N, N, 2)
    return (rel[:, :, 0] / height) ** 2 + (rel[:, :, 1] / width) ** 2


def prepare_layer(lp):
    """Param-only prep: fuse QKV weights, cast MXU weights to bf16, build factor."""
    D = lp["q_w"].shape[0]
    H = lp["headsita"].shape[0]
    M = lp["fc1_w"].shape[1]
    sig = jax.nn.sigmoid(lp["headsita"])
    factor = 1.0 / (2.0 * (sig * (0.4 - 0.003) + 0.003) ** 2)
    return {
        "ln1_g": lp["ln1_g"].reshape(1, D), "ln1_b": lp["ln1_b"].reshape(1, D),
        "ln2_g": lp["ln2_g"].reshape(1, D), "ln2_b": lp["ln2_b"].reshape(1, D),
        "wqkv": jnp.concatenate([lp["q_w"], lp["k_w"], lp["v_w"]],
                                axis=1).astype(jnp.bfloat16),
        "bqkv": jnp.concatenate([lp["q_b"], lp["k_b"], lp["v_b"]],
                                axis=0).reshape(1, 3 * D),
        "o_w": lp["o_w"].astype(jnp.bfloat16), "o_b": lp["o_b"].reshape(1, D),
        "fc1_w": lp["fc1_w"].astype(jnp.bfloat16), "fc1_b": lp["fc1_b"].reshape(1, M),
        "fc2_w": lp["fc2_w"].astype(jnp.bfloat16), "fc2_b": lp["fc2_b"].reshape(1, D),
        "neg_factor": (-factor).reshape(1, H),
    }


def transformer_forward(params, x, cfg):
    B, C, Himg, Wimg = x.shape
    P = cfg["patch_size"]
    D = cfg["hidden_size"]
    gh, gw = Himg // P, Wimg // P
    S = gh * gw

    # Patch embedding: Conv2d(kernel=stride=P) == per-patch flatten + matmul.
    xp = x.reshape(B, C, gh, P, gw, P).transpose(0, 2, 4, 1, 3, 5)
    xp = xp.reshape(B, S, C * P * P)
    w_patch = params["patch_w"].reshape(D, C * P * P).T.astype(jnp.bfloat16)
    hidden = patch_embed(xp, w_patch, params["patch_b"].reshape(1, D),
                         params["pos_emb"])                 # dropout = identity

    dis_base = relative_pos_dis(gh, gw)                     # (S, S)

    n_layers = len(params["layers"])
    attn_weights = []                                       # vis=False
    for li, lp in enumerate(params["layers"]):
        prep = prepare_layer(lp)
        enc_ln = ((params["enc_g"], params["enc_b"])
                  if li == n_layers - 1 else None)          # fold final LN in
        hidden = fused_block(hidden, prep, dis_base, cfg["num_heads"],
                             enc_ln=enc_ln)

    encoded = hidden
    features = None                                         # non-hybrid embeddings
    return encoded, attn_weights, features


# --------------------------- pure-JAX reference ------------------------------

def _layer_norm_ref(v, g, b):
    mu = jnp.mean(v, axis=-1, keepdims=True)
    var = jnp.mean((v - mu) ** 2, axis=-1, keepdims=True)
    return (v - mu) * jax.lax.rsqrt(var + 1e-6) * g + b


def transformer_reference(params, x, cfg):
    B, C, Himg, Wimg = x.shape
    P = cfg["patch_size"]; D = cfg["hidden_size"]; H = cfg["num_heads"]
    gh, gw = Himg // P, Wimg // P
    S = gh * gw
    Dh = D // H
    smooth = 1e-4

    xp = x.reshape(B, C, gh, P, gw, P).transpose(0, 2, 4, 1, 3, 5)
    xp = xp.reshape(B, S, C * P * P)
    w_patch = params["patch_w"].reshape(D, C * P * P).T
    hs = xp @ w_patch + params["patch_b"] + params["pos_emb"]

    dis_base = relative_pos_dis(gh, gw)
    for lp in params["layers"]:
        res = hs
        xn = _layer_norm_ref(hs, lp["ln1_g"], lp["ln1_b"])
        q = (xn @ lp["q_w"] + lp["q_b"]).reshape(B, S, H, Dh).transpose(0, 2, 1, 3)
        k = (xn @ lp["k_w"] + lp["k_b"]).reshape(B, S, H, Dh).transpose(0, 2, 1, 3)
        v = (xn @ lp["v_w"] + lp["v_b"]).reshape(B, S, H, Dh).transpose(0, 2, 1, 3)
        scores = jnp.einsum("bhqd,bhkd->bhqk", q, k)
        qn = jnp.sqrt(jnp.sum(q ** 2, -1) + smooth)[:, :, :, None]
        kn = jnp.sqrt(jnp.sum(k ** 2, -1) + smooth)[:, :, None, :]
        probs = scores / (qn * kn + smooth)
        sig = jax.nn.sigmoid(lp["headsita"])
        factor = 1.0 / (2.0 * (sig * (0.4 - 0.003) + 0.003) ** 2)
        dis = jnp.exp(-factor[:, None, None] * dis_base[None])
        dis = dis / jnp.sum(dis, -1, keepdims=True)
        probs = probs * dis[None]
        ctx = jnp.einsum("bhqk,bhkd->bhqd", probs, v)
        ctx = ctx.transpose(0, 2, 1, 3).reshape(B, S, D)
        hs = ctx @ lp["o_w"] + lp["o_b"] + res
        res = hs
        xn2 = _layer_norm_ref(hs, lp["ln2_g"], lp["ln2_b"])
        y = jax.nn.gelu(xn2 @ lp["fc1_w"] + lp["fc1_b"], approximate=False)
        hs = y @ lp["fc2_w"] + lp["fc2_b"] + res
    return _layer_norm_ref(hs, params["enc_g"], params["enc_b"])


# --------------------------- deterministic init ------------------------------

def init_params(key, cfg):
    C = cfg["in_channels"]
    P = cfg["patch_size"]
    D = cfg["hidden_size"]
    M = cfg["mlp_dim"]
    Hh = cfg["num_heads"]
    n_patches = (cfg["img_size"] // P) ** 2

    keys = iter(jax.random.split(key, 8 + 16 * cfg["num_layers"]))

    def nrm(shape, scale=0.02):
        return scale * jax.random.normal(next(keys), shape, jnp.float32)

    params = {
        "patch_w": nrm((D, C, P, P)),
        "patch_b": nrm((D,)),
        "pos_emb": jnp.zeros((1, n_patches, D), jnp.float32),
        "enc_g": jnp.ones((D,), jnp.float32),
        "enc_b": jnp.zeros((D,), jnp.float32),
        "layers": [],
    }
    for _ in range(cfg["num_layers"]):
        lp = {
            "ln1_g": jnp.ones((D,), jnp.float32), "ln1_b": jnp.zeros((D,), jnp.float32),
            "ln2_g": jnp.ones((D,), jnp.float32), "ln2_b": jnp.zeros((D,), jnp.float32),
            "q_w": nrm((D, D)), "q_b": nrm((D,)),
            "k_w": nrm((D, D)), "k_b": nrm((D,)),
            "v_w": nrm((D, D)), "v_b": nrm((D,)),
            "o_w": nrm((D, D)), "o_b": nrm((D,)),
            "fc1_w": nrm((D, M)), "fc1_b": nrm((M,), 1e-6),
            "fc2_w": nrm((M, D)), "fc2_b": nrm((D,), 1e-6),
            "headsita": jax.random.normal(next(keys), (Hh,), jnp.float32),
        }
        params["layers"].append(lp)
    return params


# --------------------------------- main --------------------------------------

if __name__ == "__main__":
    cfg = dict(img_size=16, in_channels=3, patch_size=4, hidden_size=32,
               num_heads=4, mlp_dim=64, num_layers=2)

    params = init_params(jax.random.PRNGKey(0), cfg)
    x = jax.random.normal(jax.random.PRNGKey(0),
                          (2, cfg["in_channels"], cfg["img_size"], cfg["img_size"]),
                          jnp.float32)

    fwd = jax.jit(functools.partial(transformer_forward, cfg=cfg))
    encoded, attn_weights, features = fwd(params, x)
    jax.block_until_ready(encoded)

    S = (cfg["img_size"] // cfg["patch_size"]) ** 2
    assert encoded.shape == (2, S, cfg["hidden_size"])
    assert bool(jnp.all(jnp.isfinite(encoded)))

    # Validate against a pure-JAX f32 reference (tolerance covers bf16 MXU
    # operands + approximate EUP reciprocals inside the kernel).
    ref = transformer_reference(params, x, cfg)
    max_err = float(jnp.max(jnp.abs(encoded - ref)))
    assert max_err < 1e-1, f"max abs error vs reference: {max_err}"

    print("KERNEL_OK")
</pallas_src>

<mosaic_0001>
module attributes {stable_mosaic.version = 11 : i64} {
  func.func @_embed_kernel(%arg0: i32, %arg1: memref<1x16x48xf32, #tpu.memory_space<vmem>>, %arg2: memref<48x32xbf16, #tpu.memory_space<vmem>>, %arg3: memref<1x32xf32, #tpu.memory_space<vmem>>, %arg4: memref<1x16x32xf32, #tpu.memory_space<vmem>>, %arg5: memref<1x16x32xf32, #tpu.memory_space<vmem>>) attributes {dimension_semantics = [#tpu.dimension_semantics<parallel>], iteration_bounds = array<i64: 2>, scalar_prefetch = 0 : i64, scratch_operands = 0 : i64, tpu.core_type = #tpu.core_type<tc>, window_params = [{transform_indices = @transform_0, window_bounds = array<i64: 1, 16, 48>}, {pipeline_mode = #tpu.pipeline_mode<synchronous>, transform_indices = @transform_1, window_bounds = array<i64: 48, 32>}, {pipeline_mode = #tpu.pipeline_mode<synchronous>, transform_indices = @transform_2, window_bounds = array<i64: 1, 32>}, {pipeline_mode = #tpu.pipeline_mode<synchronous>, transform_indices = @transform_3, window_bounds = array<i64: 1, 16, 32>}, {transform_indices = @transform_4, window_bounds = array<i64: 1, 16, 32>}]} {
    %c0 = arith.constant 0 : index
    %c0_0 = arith.constant 0 : index
    %c0_1 = arith.constant 0 : index
    %0 = vector.load %arg1[%c0, %c0_0, %c0_1] : memref<1x16x48xf32, #tpu.memory_space<vmem>>, vector<1x16x48xf32>
    %1 = vector.shape_cast %0 : vector<1x16x48xf32> to vector<16x48xf32>
    %2 = arith.truncf %1 : vector<16x48xf32> to vector<16x48xbf16>
    %c0_2 = arith.constant 0 : index
    %c0_3 = arith.constant 0 : index
    %3 = vector.load %arg2[%c0_2, %c0_3] : memref<48x32xbf16, #tpu.memory_space<vmem>>, vector<48x32xbf16>
    %cst = arith.constant dense<0.000000e+00> : vector<16x32xf32>
    %4 = tpu.matmul %2, %3, %cst {dimension_numbers = #tpu.dot_dimension_numbers<[1], [0], [0], [1], [0, 0, 1, 1], [], []>} : vector<16x48xbf16>, vector<48x32xbf16>, vector<16x32xf32> -> vector<16x32xf32>
    %c0_4 = arith.constant 0 : index
    %c0_5 = arith.constant 0 : index
    %5 = vector.load %arg3[%c0_4, %c0_5] : memref<1x32xf32, #tpu.memory_space<vmem>>, vector<1x32xf32>
    %6 = vector.broadcast %5 : vector<1x32xf32> to vector<16x32xf32>
    %7 = arith.addf %4, %6 : vector<16x32xf32>
    %c0_6 = arith.constant 0 : index
    %c0_7 = arith.constant 0 : index
    %c0_8 = arith.constant 0 : index
    %8 = vector.load %arg4[%c0_6, %c0_7, %c0_8] : memref<1x16x32xf32, #tpu.memory_space<vmem>>, vector<1x16x32xf32>
    %9 = vector.shape_cast %8 : vector<1x16x32xf32> to vector<16x32xf32>
    %10 = arith.addf %7, %9 : vector<16x32xf32>
    %c0_9 = arith.constant 0 : index
    %c0_10 = arith.constant 0 : index
    %c0_11 = arith.constant 0 : index
    %11 = vector.load %arg5[%c0_9, %c0_10, %c0_11] : memref<1x16x32xf32, #tpu.memory_space<vmem>>, vector<1x16x32xf32>
    %12 = vector.shape_cast %11 : vector<1x16x32xf32> to vector<16x32xf32>
    %13 = vector.shape_cast %10 : vector<16x32xf32> to vector<1x16x32xf32>
    tpu.vector_store %arg5[%c0_9, %c0_10, %c0_11], %13 {strides = array<i32>} : memref<1x16x32xf32, #tpu.memory_space<vmem>>, vector<1x16x32xf32>,
    return
  }
  func.func @transform_0(%arg0: i32) -> (i32, i32, i32) {
    %c0_i32 = arith.constant 0 : i32
    %c0_i32_0 = arith.constant 0 : i32
    %c0_i32_1 = arith.constant 0 : i32
    return %arg0, %c0_i32, %c0_i32_0 : i32, i32, i32
  }
  func.func @transform_1(%arg0: i32) -> (i32, i32) {
    %c0_i32 = arith.constant 0 : i32
    %c0_i32_0 = arith.constant 0 : i32
    %c0_i32_1 = arith.constant 0 : i32
    return %c0_i32, %c0_i32_0 : i32, i32
  }
  func.func @transform_2(%arg0: i32) -> (i32, i32) {
    %c0_i32 = arith.constant 0 : i32
    %c0_i32_0 = arith.constant 0 : i32
    %c0_i32_1 = arith.constant 0 : i32
    return %c0_i32, %c0_i32_0 : i32, i32
  }
  func.func @transform_3(%arg0: i32) -> (i32, i32, i32) {
    %c0_i32 = arith.constant 0 : i32
    %c0_i32_0 = arith.constant 0 : i32
    %c0_i32_1 = arith.constant 0 : i32
    %c0_i32_2 = arith.constant 0 : i32
    return %c0_i32, %c0_i32_0, %c0_i32_1 : i32, i32, i32
  }
  func.func @transform_4(%arg0: i32) -> (i32, i32, i32) {
    %c0_i32 = arith.constant 0 : i32
    %c0_i32_0 = arith.constant 0 : i32
    %c0_i32_1 = arith.constant 0 : i32
    return %arg0, %c0_i32, %c0_i32_0 : i32, i32, i32
  }
}

module attributes {stable_mosaic.version = 11 : i64} {
  func.func @_block_kernel(%arg0: i32, %arg1: memref<1x16x32xf32, #tpu.memory_space<vmem>>, %arg2: memref<1x32xf32, #tpu.memory_space<vmem>>, %arg3: memref<1x32xf32, #tpu.memory_space<vmem>>, %arg4: memref<32x96xbf16, #tpu.memory_space<vmem>>, %arg5: memref<1x96xf32, #tpu.memory_space<vmem>>, %arg6: memref<32x32xbf16, #tpu.memory_space<vmem>>, %arg7: memref<1x32xf32, #tpu.memory_space<vmem>>, %arg8: memref<1x32xf32, #tpu.memory_space<vmem>>, %arg9: memref<1x32xf32, #tpu.memory_space<vmem>>, %arg10: memref<32x64xbf16, #tpu.memory_space<vmem>>, %arg11: memref<1x64xf32, #tpu.memory_space<vmem>>, %arg12: memref<64x32xbf16, #tpu.memory_space<vmem>>, %arg13: memref<1x32xf32, #tpu.memory_space<vmem>>, %arg14: memref<1x4xf32, #tpu.memory_space<vmem>>, %arg15: memref<16x16xf32, #tpu.memory_space<vmem>>, %arg16: memref<1x32xf32, #tpu.memory_space<vmem>>, %arg17: memref<1x32xf32, #tpu.memory_space<vmem>>, %arg18: memref<1x16x32xf32, #tpu.memory_space<vmem>>) attributes {dimension_semantics = [#tpu.dimension_semantics<parallel>], iteration_bounds = array<i64: 2>, scalar_prefetch = 0 : i64, scratch_operands = 0 : i64, tpu.core_type = #tpu.core_type<tc>, window_params = [{transform_indices = @transform_0, window_bounds = array<i64: 1, 16, 32>}, {pipeline_mode = #tpu.pipeline_mode<synchronous>, transform_indices = @transform_1, window_bounds = array<i64: 1, 32>}, {pipeline_mode = #tpu.pipeline_mode<synchronous>, transform_indices = @transform_2, window_bounds = array<i64: 1, 32>}, {pipeline_mode = #tpu.pipeline_mode<synchronous>, transform_indices = @transform_3, window_bounds = array<i64: 32, 96>}, {pipeline_mode = #tpu.pipeline_mode<synchronous>, transform_indices = @transform_4, window_bounds = array<i64: 1, 96>}, {pipeline_mode = #tpu.pipeline_mode<synchronous>, transform_indices = @transform_5, window_bounds = array<i64: 32, 32>}, {pipeline_mode = #tpu.pipeline_mode<synchronous>, transform_indices = @transform_6, window_bounds = array<i64: 1, 32>}, {pipeline_mode = #tpu.pipeline_mode<synchronous>, transform_indices = @transform_7, window_bounds = array<i64: 1, 32>}, {pipeline_mode = #tpu.pipeline_mode<synchronous>, transform_indices = @transform_8, window_bounds = array<i64: 1, 32>}, {pipeline_mode = #tpu.pipeline_mode<synchronous>, transform_indices = @transform_9, window_bounds = array<i64: 32, 64>}, {pipeline_mode = #tpu.pipeline_mode<synchronous>, transform_indices = @transform_10, window_bounds = array<i64: 1, 64>}, {pipeline_mode = #tpu.pipeline_mode<synchronous>, transform_indices = @transform_11, window_bounds = array<i64: 64, 32>}, {pipeline_mode = #tpu.pipeline_mode<synchronous>, transform_indices = @transform_12, window_bounds = array<i64: 1, 32>}, {pipeline_mode = #tpu.pipeline_mode<synchronous>, transform_indices = @transform_13, window_bounds = array<i64: 1, 4>}, {pipeline_mode = #tpu.pipeline_mode<synchronous>, transform_indices = @transform_14, window_bounds = array<i64: 16, 16>}, {pipeline_mode = #tpu.pipeline_mode<synchronous>, transform_indices = @transform_15, window_bounds = array<i64: 1, 32>}, {pipeline_mode = #tpu.pipeline_mode<synchronous>, transform_indices = @transform_16, window_bounds = array<i64: 1, 32>}, {transform_indices = @transform_17, window_bounds = array<i64: 1, 16, 32>}]} {
    %c0 = arith.constant 0 : index
    %c0_0 = arith.constant 0 : index
    %c0_1 = arith.constant 0 : index
    %0 = vector.load %arg1[%c0, %c0_0, %c0_1] : memref<1x16x32xf32, #tpu.memory_space<vmem>>, vector<1x16x32xf32>
    %1 = vector.shape_cast %0 : vector<1x16x32xf32> to vector<16x32xf32>
    %c0_2 = arith.constant 0 : index
    %c0_3 = arith.constant 0 : index
    %2 = vector.load %arg2[%c0_2, %c0_3] : memref<1x32xf32, #tpu.memory_space<vmem>>, vector<1x32xf32>
    %c0_4 = arith.constant 0 : index
    %c0_5 = arith.constant 0 : index
    %3 = vector.load %arg3[%c0_4, %c0_5] : memref<1x32xf32, #tpu.memory_space<vmem>>, vector<1x32xf32>
    %cst = arith.constant dense<0.000000e+00> : vector<16xf32>
    %4 = vector.multi_reduction <add>, %1, %cst [1] : vector<16x32xf32> to vector<16xf32>
    %5 = vector.shape_cast %4 : vector<16xf32> to vector<16x1xf32>
    %cst_6 = arith.constant 3.200000e+01 : f32
    %6 = vector.broadcast %cst_6 : f32 to vector<16x1xf32>
    %7 = arith.divf %5, %6 : vector<16x1xf32>
    %8 = vector.broadcast %7 : vector<16x1xf32> to vector<16x32xf32>
    %9 = arith.subf %1, %8 : vector<16x32xf32>
    %10 = arith.mulf %9, %9 : vector<16x32xf32>
    %cst_7 = arith.constant dense<0.000000e+00> : vector<16xf32>
    %11 = vector.multi_reduction <add>, %10, %cst_7 [1] : vector<16x32xf32> to vector<16xf32>
    %12 = vector.shape_cast %11 : vector<16xf32> to vector<16x1xf32>
    %cst_8 = arith.constant 3.200000e+01 : f32
    %13 = vector.broadcast %cst_8 : f32 to vector<16x1xf32>
    %14 = arith.divf %12, %13 : vector<16x1xf32>
    %15 = vector.broadcast %7 : vector<16x1xf32> to vector<16x32xf32>
    %16 = arith.subf %1, %15 : vector<16x32xf32>
    %cst_9 = arith.constant 9.99999997E-7 : f32
    %17 = vector.broadcast %cst_9 : f32 to vector<16x1xf32>
    %18 = arith.addf %14, %17 : vector<16x1xf32>
    %19 = math.rsqrt %18 : vector<16x1xf32>
    %20 = vector.broadcast %19 : vector<16x1xf32> to vector<16x32xf32>
    %21 = arith.mulf %16, %20 : vector<16x32xf32>
    %22 = vector.broadcast %2 : vector<1x32xf32> to vector<16x32xf32>
    %23 = arith.mulf %21, %22 : vector<16x32xf32>
    %24 = vector.broadcast %3 : vector<1x32xf32> to vector<16x32xf32>
    %25 = arith.addf %23, %24 : vector<16x32xf32>
    %26 = arith.truncf %25 : vector<16x32xf32> to vector<16x32xbf16>
    %c0_10 = arith.constant 0 : index
    %c0_11 = arith.constant 0 : index
    %27 = vector.load %arg4[%c0_10, %c0_11] : memref<32x96xbf16, #tpu.memory_space<vmem>>, vector<32x96xbf16>
    %cst_12 = arith.constant dense<0.000000e+00> : vector<16x96xf32>
    %28 = tpu.matmul %26, %27, %cst_12 {dimension_numbers = #tpu.dot_dimension_numbers<[1], [0], [0], [1], [0, 0, 1, 1], [], []>} : vector<16x32xbf16>, vector<32x96xbf16>, vector<16x96xf32> -> vector<16x96xf32>
    %c0_13 = arith.constant 0 : index
    %c0_14 = arith.constant 0 : index
    %29 = vector.load %arg5[%c0_13, %c0_14] : memref<1x96xf32, #tpu.memory_space<vmem>>, vector<1x96xf32>
    %30 = vector.broadcast %29 : vector<1x96xf32> to vector<16x96xf32>
    %31 = arith.addf %28, %30 : vector<16x96xf32>
    %c0_15 = arith.constant 0 : index
    %c0_16 = arith.constant 0 : index
    %32 = vector.load %arg15[%c0_15, %c0_16] : memref<16x16xf32, #tpu.memory_space<vmem>>, vector<16x16xf32>
    %33 = vector.extract_strided_slice %31 {offsets = [0, 0], sizes = [16, 8], strides = [1, 1]} : vector<16x96xf32> to vector<16x8xf32>
    %34 = vector.extract_strided_slice %31 {offsets = [0, 32], sizes = [16, 8], strides = [1, 1]} : vector<16x96xf32> to vector<16x8xf32>
    %35 = vector.extract_strided_slice %31 {offsets = [0, 64], sizes = [16, 8], strides = [1, 1]} : vector<16x96xf32> to vector<16x8xf32>
    %36 = arith.truncf %33 : vector<16x8xf32> to vector<16x8xbf16>
    %37 = arith.truncf %34 : vector<16x8xf32> to vector<16x8xbf16>
    %cst_17 = arith.constant dense<0.000000e+00> : vector<16x16xf32>
    %38 = tpu.matmul %36, %37, %cst_17 {dimension_numbers = #tpu.dot_dimension_numbers<[1], [1], [0], [0], [0, 0, 1, 0], [], []>} : vector<16x8xbf16>, vector<16x8xbf16>, vector<16x16xf32> -> vector<16x16xf32>
    %39 = arith.mulf %33, %33 : vector<16x8xf32>
    %cst_18 = arith.constant dense<0.000000e+00> : vector<16xf32>
    %40 = vector.multi_reduction <add>, %39, %cst_18 [1] : vector<16x8xf32> to vector<16xf32>
    %41 = vector.shape_cast %40 : vector<16xf32> to vector<16x1xf32>
    %cst_19 = arith.constant 9.99999974E-5 : f32
    %42 = vector.broadcast %cst_19 : f32 to vector<16x1xf32>
    %43 = arith.addf %41, %42 : vector<16x1xf32>
    %44 = math.sqrt %43 : vector<16x1xf32>
    %45 = arith.mulf %34, %34 : vector<16x8xf32>
    %cst_20 = arith.constant dense<0.000000e+00> : vector<16xf32>
    %46 = vector.multi_reduction <add>, %45, %cst_20 [1] : vector<16x8xf32> to vector<16xf32>
    %47 = vector.shape_cast %46 : vector<16xf32> to vector<16x1xf32>
    %cst_21 = arith.constant 9.99999974E-5 : f32
    %48 = vector.broadcast %cst_21 : f32 to vector<16x1xf32>
    %49 = arith.addf %47, %48 : vector<16x1xf32>
    %50 = math.sqrt %49 : vector<16x1xf32>
    %51 = tpu.transpose %50, [1, 0] : vector<16x1xf32> -> vector<1x16xf32>
    %52 = vector.broadcast %44 : vector<16x1xf32> to vector<16x16xf32>
    %53 = vector.broadcast %51 : vector<1x16xf32> to vector<16x16xf32>
    %54 = arith.mulf %52, %53 : vector<16x16xf32>
    %cst_22 = arith.constant 9.99999974E-5 : f32
    %55 = vector.broadcast %cst_22 : f32 to vector<16x16xf32>
    %56 = arith.addf %54, %55 : vector<16x16xf32>
    %57 = tpu.reciprocal %56 {approx = true} : vector<16x16xf32> -> vector<16x16xf32>
    %58 = arith.mulf %38, %57 : vector<16x16xf32>
    %c0_23 = arith.constant 0 : index
    %c0_24 = arith.constant 0 : index
    %59 = vector.load %arg14[%c0_23, %c0_24] : memref<1x4xf32, #tpu.memory_space<vmem>>, vector<1x1xf32>
    %60 = vector.broadcast %59 : vector<1x1xf32> to vector<16x16xf32>
    %61 = arith.mulf %60, %32 : vector<16x16xf32>
    %62 = math.exp %61 : vector<16x16xf32>
    %cst_25 = arith.constant dense<0.000000e+00> : vector<16xf32>
    %63 = vector.multi_reduction <add>, %62, %cst_25 [1] : vector<16x16xf32> to vector<16xf32>
    %64 = vector.shape_cast %63 : vector<16xf32> to vector<16x1xf32>
    %65 = tpu.reciprocal %64 {approx = true} : vector<16x1xf32> -> vector<16x1xf32>
    %66 = vector.broadcast %65 : vector<16x1xf32> to vector<16x16xf32>
    %67 = arith.mulf %62, %66 : vector<16x16xf32>
    %68 = arith.mulf %58, %67 : vector<16x16xf32>
    %69 = arith.truncf %68 : vector<16x16xf32> to vector<16x16xbf16>
    %70 = arith.truncf %35 : vector<16x8xf32> to vector<16x8xbf16>
    %cst_26 = arith.constant dense<0.000000e+00> : vector<16x8xf32>
    %71 = tpu.matmul %69, %70, %cst_26 {dimension_numbers = #tpu.dot_dimension_numbers<[1], [0], [0], [1], [0, 0, 1, 1], [], []>} : vector<16x16xbf16>, vector<16x8xbf16>, vector<16x8xf32> -> vector<16x8xf32>
    %72 = vector.extract_strided_slice %31 {offsets = [0, 8], sizes = [16, 8], strides = [1, 1]} : vector<16x96xf32> to vector<16x8xf32>
    %73 = vector.extract_strided_slice %31 {offsets = [0, 40], sizes = [16, 8], strides = [1, 1]} : vector<16x96xf32> to vector<16x8xf32>
    %74 = vector.extract_strided_slice %31 {offsets = [0, 72], sizes = [16, 8], strides = [1, 1]} : vector<16x96xf32> to vector<16x8xf32>
    %75 = arith.truncf %72 : vector<16x8xf32> to vector<16x8xbf16>
    %76 = arith.truncf %73 : vector<16x8xf32> to vector<16x8xbf16>
    %cst_27 = arith.constant dense<0.000000e+00> : vector<16x16xf32>
    %77 = tpu.matmul %75, %76, %cst_27 {dimension_numbers = #tpu.dot_dimension_numbers<[1], [1], [0], [0], [0, 0, 1, 0], [], []>} : vector<16x8xbf16>, vector<16x8xbf16>, vector<16x16xf32> -> vector<16x16xf32>
    %78 = arith.mulf %72, %72 : vector<16x8xf32>
    %cst_28 = arith.constant dense<0.000000e+00> : vector<16xf32>
    %79 = vector.multi_reduction <add>, %78, %cst_28 [1] : vector<16x8xf32> to vector<16xf32>
    %80 = vector.shape_cast %79 : vector<16xf32> to vector<16x1xf32>
    %cst_29 = arith.constant 9.99999974E-5 : f32
    %81 = vector.broadcast %cst_29 : f32 to vector<16x1xf32>
    %82 = arith.addf %80, %81 : vector<16x1xf32>
    %83 = math.sqrt %82 : vector<16x1xf32>
    %84 = arith.mulf %73, %73 : vector<16x8xf32>
    %cst_30 = arith.constant dense<0.000000e+00> : vector<16xf32>
    %85 = vector.multi_reduction <add>, %84, %cst_30 [1] : vector<16x8xf32> to vector<16xf32>
    %86 = vector.shape_cast %85 : vector<16xf32> to vector<16x1xf32>
    %cst_31 = arith.constant 9.99999974E-5 : f32
    %87 = vector.broadcast %cst_31 : f32 to vector<16x1xf32>
    %88 = arith.addf %86, %87 : vector<16x1xf32>
    %89 = math.sqrt %88 : vector<16x1xf32>
    %90 = tpu.transpose %89, [1, 0] : vector<16x1xf32> -> vector<1x16xf32>
    %91 = vector.broadcast %83 : vector<16x1xf32> to vector<16x16xf32>
    %92 = vector.broadcast %90 : vector<1x16xf32> to vector<16x16xf32>
    %93 = arith.mulf %91, %92 : vector<16x16xf32>
    %cst_32 = arith.constant 9.99999974E-5 : f32
    %94 = vector.broadcast %cst_32 : f32 to vector<16x16xf32>
    %95 = arith.addf %93, %94 : vector<16x16xf32>
    %96 = tpu.reciprocal %95 {approx = true} : vector<16x16xf32> -> vector<16x16xf32>
    %97 = arith.mulf %77, %96 : vector<16x16xf32>
    %c0_33 = arith.constant 0 : index
    %c1 = arith.constant 1 : index
    %98 = vector.load %arg14[%c0_33, %c1] : memref<1x4xf32, #tpu.memory_space<vmem>>, vector<1x1xf32>
    %99 = vector.broadcast %98 : vector<1x1xf32> to vector<16x16xf32>
    %100 = arith.mulf %99, %32 : vector<16x16xf32>
    %101 = math.exp %100 : vector<16x16xf32>
    %cst_34 = arith.constant dense<0.000000e+00> : vector<16xf32>
    %102 = vector.multi_reduction <add>, %101, %cst_34 [1] : vector<16x16xf32> to vector<16xf32>
    %103 = vector.shape_cast %102 : vector<16xf32> to vector<16x1xf32>
    %104 = tpu.reciprocal %103 {approx = true} : vector<16x1xf32> -> vector<16x1xf32>
    %105 = vector.broadcast %104 : vector<16x1xf32> to vector<16x16xf32>
    %106 = arith.mulf %101, %105 : vector<16x16xf32>
    %107 = arith.mulf %97, %106 : vector<16x16xf32>
    %108 = arith.truncf %107 : vector<16x16xf32> to vector<16x16xbf16>
    %109 = arith.truncf %74 : vector<16x8xf32> to vector<16x8xbf16>
    %cst_35 = arith.constant dense<0.000000e+00> : vector<16x8xf32>
    %110 = tpu.matmul %108, %109, %cst_35 {dimension_numbers = #tpu.dot_dimension_numbers<[1], [0], [0], [1], [0, 0, 1, 1], [], []>} : vector<16x16xbf16>, vector<16x8xbf16>, vector<16x8xf32> -> vector<16x8xf32>
    %111 = vector.extract_strided_slice %31 {offsets = [0, 16], sizes = [16, 8], strides = [1, 1]} : vector<16x96xf32> to vector<16x8xf32>
    %112 = vector.extract_strided_slice %31 {offsets = [0, 48], sizes = [16, 8], strides = [1, 1]} : vector<16x96xf32> to vector<16x8xf32>
    %113 = vector.extract_strided_slice %31 {offsets = [0, 80], sizes = [16, 8], strides = [1, 1]} : vector<16x96xf32> to vector<16x8xf32>
    %114 = arith.truncf %111 : vector<16x8xf32> to vector<16x8xbf16>
    %115 = arith.truncf %112 : vector<16x8xf32> to vector<16x8xbf16>
    %cst_36 = arith.constant dense<0.000000e+00> : vector<16x16xf32>
    %116 = tpu.matmul %114, %115, %cst_36 {dimension_numbers = #tpu.dot_dimension_numbers<[1], [1], [0], [0], [0, 0, 1, 0], [], []>} : vector<16x8xbf16>, vector<16x8xbf16>, vector<16x16xf32> -> vector<16x16xf32>
    %117 = arith.mulf %111, %111 : vector<16x8xf32>
    %cst_37 = arith.constant dense<0.000000e+00> : vector<16xf32>
    %118 = vector.multi_reduction <add>, %117, %cst_37 [1] : vector<16x8xf32> to vector<16xf32>
    %119 = vector.shape_cast %118 : vector<16xf32> to vector<16x1xf32>
    %cst_38 = arith.constant 9.99999974E-5 : f32
    %120 = vector.broadcast %cst_38 : f32 to vector<16x1xf32>
    %121 = arith.addf %119, %120 : vector<16x1xf32>
    %122 = math.sqrt %121 : vector<16x1xf32>
    %123 = arith.mulf %112, %112 : vector<16x8xf32>
    %cst_39 = arith.constant dense<0.000000e+00> : vector<16xf32>
    %124 = vector.multi_reduction <add>, %123, %cst_39 [1] : vector<16x8xf32> to vector<16xf32>
    %125 = vector.shape_cast %124 : vector<16xf32> to vector<16x1xf32>
    %cst_40 = arith.constant 9.99999974E-5 : f32
    %126 = vector.broadcast %cst_40 : f32 to vector<16x1xf32>
    %127 = arith.addf %125, %126 : vector<16x1xf32>
    %128 = math.sqrt %127 : vector<16x1xf32>
    %129 = tpu.transpose %128, [1, 0] : vector<16x1xf32> -> vector<1x16xf32>
    %130 = vector.broadcast %122 : vector<16x1xf32> to vector<16x16xf32>
    %131 = vector.broadcast %129 : vector<1x16xf32> to vector<16x16xf32>
    %132 = arith.mulf %130, %131 : vector<16x16xf32>
    %cst_41 = arith.constant 9.99999974E-5 : f32
    %133 = vector.broadcast %cst_41 : f32 to vector<16x16xf32>
    %134 = arith.addf %132, %133 : vector<16x16xf32>
    %135 = tpu.reciprocal %134 {approx = true} : vector<16x16xf32> -> vector<16x16xf32>
    %136 = arith.mulf %116, %135 : vector<16x16xf32>
    %c0_42 = arith.constant 0 : index
    %c2 = arith.constant 2 : index
    %137 = vector.load %arg14[%c0_42, %c2] : memref<1x4xf32, #tpu.memory_space<vmem>>, vector<1x1xf32>
    %138 = vector.broadcast %137 : vector<1x1xf32> to vector<16x16xf32>
    %139 = arith.mulf %138, %32 : vector<16x16xf32>
    %140 = math.exp %139 : vector<16x16xf32>
    %cst_43 = arith.constant dense<0.000000e+00> : vector<16xf32>
    %141 = vector.multi_reduction <add>, %140, %cst_43 [1] : vector<16x16xf32> to vector<16xf32>
    %142 = vector.shape_cast %141 : vector<16xf32> to vector<16x1xf32>
    %143 = tpu.reciprocal %142 {approx = true} : vector<16x1xf32> -> vector<16x1xf32>
    %144 = vector.broadcast %143 : vector<16x1xf32> to vector<16x16xf32>
    %145 = arith.mulf %140, %144 : vector<16x16xf32>
    %146 = arith.mulf %136, %145 : vector<16x16xf32>
    %147 = arith.truncf %146 : vector<16x16xf32> to vector<16x16xbf16>
    %148 = arith.truncf %113 : vector<16x8xf32> to vector<16x8xbf16>
    %cst_44 = arith.constant dense<0.000000e+00> : vector<16x8xf32>
    %149 = tpu.matmul %147, %148, %cst_44 {dimension_numbers = #tpu.dot_dimension_numbers<[1], [0], [0], [1], [0, 0, 1, 1], [], []>} : vector<16x16xbf16>, vector<16x8xbf16>, vector<16x8xf32> -> vector<16x8xf32>
    %150 = vector.extract_strided_slice %31 {offsets = [0, 24], sizes = [16, 8], strides = [1, 1]} : vector<16x96xf32> to vector<16x8xf32>
    %151 = vector.extract_strided_slice %31 {offsets = [0, 56], sizes = [16, 8], strides = [1, 1]} : vector<16x96xf32> to vector<16x8xf32>
    %152 = vector.extract_strided_slice %31 {offsets = [0, 88], sizes = [16, 8], strides = [1, 1]} : vector<16x96xf32> to vector<16x8xf32>
    %153 = arith.truncf %150 : vector<16x8xf32> to vector<16x8xbf16>
    %154 = arith.truncf %151 : vector<16x8xf32> to vector<16x8xbf16>
    %cst_45 = arith.constant dense<0.000000e+00> : vector<16x16xf32>
    %155 = tpu.matmul %153, %154, %cst_45 {dimension_numbers = #tpu.dot_dimension_numbers<[1], [1], [0], [0], [0, 0, 1, 0], [], []>} : vector<16x8xbf16>, vector<16x8xbf16>, vector<16x16xf32> -> vector<16x16xf32>
    %156 = arith.mulf %150, %150 : vector<16x8xf32>
    %cst_46 = arith.constant dense<0.000000e+00> : vector<16xf32>
    %157 = vector.multi_reduction <add>, %156, %cst_46 [1] : vector<16x8xf32> to vector<16xf32>
    %158 = vector.shape_cast %157 : vector<16xf32> to vector<16x1xf32>
    %cst_47 = arith.constant 9.99999974E-5 : f32
    %159 = vector.broadcast %cst_47 : f32 to vector<16x1xf32>
    %160 = arith.addf %158, %159 : vector<16x1xf32>
    %161 = math.sqrt %160 : vector<16x1xf32>
    %162 = arith.mulf %151, %151 : vector<16x8xf32>
    %cst_48 = arith.constant dense<0.000000e+00> : vector<16xf32>
    %163 = vector.multi_reduction <add>, %162, %cst_48 [1] : vector<16x8xf32> to vector<16xf32>
    %164 = vector.shape_cast %163 : vector<16xf32> to vector<16x1xf32>
    %cst_49 = arith.constant 9.99999974E-5 : f32
    %165 = vector.broadcast %cst_49 : f32 to vector<16x1xf32>
    %166 = arith.addf %164, %165 : vector<16x1xf32>
    %167 = math.sqrt %166 : vector<16x1xf32>
    %168 = tpu.transpose %167, [1, 0] : vector<16x1xf32> -> vector<1x16xf32>
    %169 = vector.broadcast %161 : vector<16x1xf32> to vector<16x16xf32>
    %170 = vector.broadcast %168 : vector<1x16xf32> to vector<16x16xf32>
    %171 = arith.mulf %169, %170 : vector<16x16xf32>
    %cst_50 = arith.constant 9.99999974E-5 : f32
    %172 = vector.broadcast %cst_50 : f32 to vector<16x16xf32>
    %173 = arith.addf %171, %172 : vector<16x16xf32>
    %174 = tpu.reciprocal %173 {approx = true} : vector<16x16xf32> -> vector<16x16xf32>
    %175 = arith.mulf %155, %174 : vector<16x16xf32>
    %c0_51 = arith.constant 0 : index
    %c3 = arith.constant 3 : index
    %176 = vector.load %arg14[%c0_51, %c3] : memref<1x4xf32, #tpu.memory_space<vmem>>, vector<1x1xf32>
    %177 = vector.broadcast %176 : vector<1x1xf32> to vector<16x16xf32>
    %178 = arith.mulf %177, %32 : vector<16x16xf32>
    %179 = math.exp %178 : vector<16x16xf32>
    %cst_52 = arith.constant dense<0.000000e+00> : vector<16xf32>
    %180 = vector.multi_reduction <add>, %179, %cst_52 [1] : vector<16x16xf32> to vector<16xf32>
    %181 = vector.shape_cast %180 : vector<16xf32> to vector<16x1xf32>
    %182 = tpu.reciprocal %181 {approx = true} : vector<16x1xf32> -> vector<16x1xf32>
    %183 = vector.broadcast %182 : vector<16x1xf32> to vector<16x16xf32>
    %184 = arith.mulf %179, %183 : vector<16x16xf32>
    %185 = arith.mulf %175, %184 : vector<16x16xf32>
    %186 = arith.truncf %185 : vector<16x16xf32> to vector<16x16xbf16>
    %187 = arith.truncf %152 : vector<16x8xf32> to vector<16x8xbf16>
    %cst_53 = arith.constant dense<0.000000e+00> : vector<16x8xf32>
    %188 = tpu.matmul %186, %187, %cst_53 {dimension_numbers = #tpu.dot_dimension_numbers<[1], [0], [0], [1], [0, 0, 1, 1], [], []>} : vector<16x16xbf16>, vector<16x8xbf16>, vector<16x8xf32> -> vector<16x8xf32>
    %189 = tpu.concatenate %71, %110, %149, %188 in 1 : vector<16x8xf32>, vector<16x8xf32>, vector<16x8xf32>, vector<16x8xf32> -> vector<16x32xf32>
    %190 = arith.truncf %189 : vector<16x32xf32> to vector<16x32xbf16>
    %c0_54 = arith.constant 0 : index
    %c0_55 = arith.constant 0 : index
    %191 = vector.load %arg6[%c0_54, %c0_55] : memref<32x32xbf16, #tpu.memory_space<vmem>>, vector<32x32xbf16>
    %cst_56 = arith.constant dense<0.000000e+00> : vector<16x32xf32>
    %192 = tpu.matmul %190, %191, %cst_56 {dimension_numbers = #tpu.dot_dimension_numbers<[1], [0], [0], [1], [0, 0, 1, 1], [], []>} : vector<16x32xbf16>, vector<32x32xbf16>, vector<16x32xf32> -> vector<16x32xf32>
    %c0_57 = arith.constant 0 : index
    %c0_58 = arith.constant 0 : index
    %193 = vector.load %arg7[%c0_57, %c0_58] : memref<1x32xf32, #tpu.memory_space<vmem>>, vector<1x32xf32>
    %194 = vector.broadcast %193 : vector<1x32xf32> to vector<16x32xf32>
    %195 = arith.addf %192, %194 : vector<16x32xf32>
    %196 = arith.addf %195, %1 : vector<16x32xf32>
    %c0_59 = arith.constant 0 : index
    %c0_60 = arith.constant 0 : index
    %197 = vector.load %arg8[%c0_59, %c0_60] : memref<1x32xf32, #tpu.memory_space<vmem>>, vector<1x32xf32>
    %c0_61 = arith.constant 0 : index
    %c0_62 = arith.constant 0 : index
    %198 = vector.load %arg9[%c0_61, %c0_62] : memref<1x32xf32, #tpu.memory_space<vmem>>, vector<1x32xf32>
    %cst_63 = arith.constant dense<0.000000e+00> : vector<16xf32>
    %199 = vector.multi_reduction <add>, %196, %cst_63 [1] : vector<16x32xf32> to vector<16xf32>
    %200 = vector.shape_cast %199 : vector<16xf32> to vector<16x1xf32>
    %cst_64 = arith.constant 3.200000e+01 : f32
    %201 = vector.broadcast %cst_64 : f32 to vector<16x1xf32>
    %202 = arith.divf %200, %201 : vector<16x1xf32>
    %203 = vector.broadcast %202 : vector<16x1xf32> to vector<16x32xf32>
    %204 = arith.subf %196, %203 : vector<16x32xf32>
    %205 = arith.mulf %204, %204 : vector<16x32xf32>
    %cst_65 = arith.constant dense<0.000000e+00> : vector<16xf32>
    %206 = vector.multi_reduction <add>, %205, %cst_65 [1] : vector<16x32xf32> to vector<16xf32>
    %207 = vector.shape_cast %206 : vector<16xf32> to vector<16x1xf32>
    %cst_66 = arith.constant 3.200000e+01 : f32
    %208 = vector.broadcast %cst_66 : f32 to vector<16x1xf32>
    %209 = arith.divf %207, %208 : vector<16x1xf32>
    %210 = vector.broadcast %202 : vector<16x1xf32> to vector<16x32xf32>
    %211 = arith.subf %196, %210 : vector<16x32xf32>
    %cst_67 = arith.constant 9.99999997E-7 : f32
    %212 = vector.broadcast %cst_67 : f32 to vector<16x1xf32>
    %213 = arith.addf %209, %212 : vector<16x1xf32>
    %214 = math.rsqrt %213 : vector<16x1xf32>
    %215 = vector.broadcast %214 : vector<16x1xf32> to vector<16x32xf32>
    %216 = arith.mulf %211, %215 : vector<16x32xf32>
    %217 = vector.broadcast %197 : vector<1x32xf32> to vector<16x32xf32>
    %218 = arith.mulf %216, %217 : vector<16x32xf32>
    %219 = vector.broadcast %198 : vector<1x32xf32> to vector<16x32xf32>
    %220 = arith.addf %218, %219 : vector<16x32xf32>
    %221 = arith.truncf %220 : vector<16x32xf32> to vector<16x32xbf16>
    %c0_68 = arith.constant 0 : index
    %c0_69 = arith.constant 0 : index
    %222 = vector.load %arg10[%c0_68, %c0_69] : memref<32x64xbf16, #tpu.memory_space<vmem>>, vector<32x64xbf16>
    %cst_70 = arith.constant dense<0.000000e+00> : vector<16x64xf32>
    %223 = tpu.matmul %221, %222, %cst_70 {dimension_numbers = #tpu.dot_dimension_numbers<[1], [0], [0], [1], [0, 0, 1, 1], [], []>} : vector<16x32xbf16>, vector<32x64xbf16>, vector<16x64xf32> -> vector<16x64xf32>
    %c0_71 = arith.constant 0 : index
    %c0_72 = arith.constant 0 : index
    %224 = vector.load %arg11[%c0_71, %c0_72] : memref<1x64xf32, #tpu.memory_space<vmem>>, vector<1x64xf32>
    %225 = vector.broadcast %224 : vector<1x64xf32> to vector<16x64xf32>
    %226 = arith.addf %223, %225 : vector<16x64xf32>
    %cst_73 = arith.constant 5.000000e-01 : f32
    %227 = vector.broadcast %cst_73 : f32 to vector<16x64xf32>
    %228 = arith.mulf %227, %226 : vector<16x64xf32>
    %cst_74 = arith.constant 0.707106769 : f32
    %229 = vector.broadcast %cst_74 : f32 to vector<16x64xf32>
    %230 = arith.mulf %226, %229 : vector<16x64xf32>
    %cst_75 = arith.constant 0.000000e+00 : f32
    %231 = vector.broadcast %cst_75 : f32 to vector<16x64xf32>
    %232 = arith.cmpf olt, %230, %231 : vector<16x64xf32>
    %cst_76 = arith.constant -1.000000e+00 : f32
    %cst_77 = arith.constant 1.000000e+00 : f32
    %233 = vector.broadcast %cst_76 : f32 to vector<16x64xf32>
    %234 = vector.broadcast %cst_77 : f32 to vector<16x64xf32>
    %235 = arith.select %232, %233, %234 : vector<16x64xi1>, vector<16x64xf32>
    %236 = math.absf %230 : vector<16x64xf32>
    %cst_78 = arith.constant 0.327591091 : f32
    %237 = vector.broadcast %cst_78 : f32 to vector<16x64xf32>
    %238 = arith.mulf %237, %236 : vector<16x64xf32>
    %cst_79 = arith.constant 1.000000e+00 : f32
    %239 = vector.broadcast %cst_79 : f32 to vector<16x64xf32>
    %240 = arith.addf %239, %238 : vector<16x64xf32>
    %cst_80 = arith.constant 1.000000e+00 : f32
    %241 = vector.broadcast %cst_80 : f32 to vector<16x64xf32>
    %242 = arith.divf %241, %240 : vector<16x64xf32>
    %cst_81 = arith.constant 1.06140542 : f32
    %243 = vector.broadcast %cst_81 : f32 to vector<16x64xf32>
    %244 = arith.mulf %243, %242 : vector<16x64xf32>
    %cst_82 = arith.constant -1.45315206 : f32
    %245 = vector.broadcast %cst_82 : f32 to vector<16x64xf32>
    %246 = arith.addf %244, %245 : vector<16x64xf32>
    %247 = arith.mulf %246, %242 : vector<16x64xf32>
    %cst_83 = arith.constant 1.42141378 : f32
    %248 = vector.broadcast %cst_83 : f32 to vector<16x64xf32>
    %249 = arith.addf %247, %248 : vector<16x64xf32>
    %250 = arith.mulf %249, %242 : vector<16x64xf32>
    %cst_84 = arith.constant -0.284496725 : f32
    %251 = vector.broadcast %cst_84 : f32 to vector<16x64xf32>
    %252 = arith.addf %250, %251 : vector<16x64xf32>
    %253 = arith.mulf %252, %242 : vector<16x64xf32>
    %cst_85 = arith.constant 0.254829586 : f32
    %254 = vector.broadcast %cst_85 : f32 to vector<16x64xf32>
    %255 = arith.addf %253, %254 : vector<16x64xf32>
    %256 = arith.mulf %255, %242 : vector<16x64xf32>
    %cst_86 = arith.constant 0.000000e+00 : f32
    %257 = vector.broadcast %cst_86 : f32 to vector<16x64xf32>
    %258 = arith.subf %257, %236 : vector<16x64xf32>
    %259 = arith.mulf %258, %236 : vector<16x64xf32>
    %260 = math.exp %259 : vector<16x64xf32>
    %261 = arith.mulf %256, %260 : vector<16x64xf32>
    %cst_87 = arith.constant 1.000000e+00 : f32
    %262 = vector.broadcast %cst_87 : f32 to vector<16x64xf32>
    %263 = arith.subf %262, %261 : vector<16x64xf32>
    %264 = arith.mulf %235, %263 : vector<16x64xf32>
    %cst_88 = arith.constant 1.000000e+00 : f32
    %265 = vector.broadcast %cst_88 : f32 to vector<16x64xf32>
    %266 = arith.addf %265, %264 : vector<16x64xf32>
    %267 = arith.mulf %228, %266 : vector<16x64xf32>
    %268 = arith.truncf %267 : vector<16x64xf32> to vector<16x64xbf16>
    %c0_89 = arith.constant 0 : index
    %c0_90 = arith.constant 0 : index
    %269 = vector.load %arg12[%c0_89, %c0_90] : memref<64x32xbf16, #tpu.memory_space<vmem>>, vector<64x32xbf16>
    %cst_91 = arith.constant dense<0.000000e+00> : vector<16x32xf32>
    %270 = tpu.matmul %268, %269, %cst_91 {dimension_numbers = #tpu.dot_dimension_numbers<[1], [0], [0], [1], [0, 0, 1, 1], [], []>} : vector<16x64xbf16>, vector<64x32xbf16>, vector<16x32xf32> -> vector<16x32xf32>
    %c0_92 = arith.constant 0 : index
    %c0_93 = arith.constant 0 : index
    %271 = vector.load %arg13[%c0_92, %c0_93] : memref<1x32xf32, #tpu.memory_space<vmem>>, vector<1x32xf32>
    %272 = vector.broadcast %271 : vector<1x32xf32> to vector<16x32xf32>
    %273 = arith.addf %270, %272 : vector<16x32xf32>
    %274 = arith.addf %273, %196 : vector<16x32xf32>
    %c0_94 = arith.constant 0 : index
    %c0_95 = arith.constant 0 : index
    %275 = vector.load %arg16[%c0_94, %c0_95] : memref<1x32xf32, #tpu.memory_space<vmem>>, vector<1x32xf32>
    %c0_96 = arith.constant 0 : index
    %c0_97 = arith.constant 0 : index
    %276 = vector.load %arg17[%c0_96, %c0_97] : memref<1x32xf32, #tpu.memory_space<vmem>>, vector<1x32xf32>
    %cst_98 = arith.constant dense<0.000000e+00> : vector<16xf32>
    %277 = vector.multi_reduction <add>, %274, %cst_98 [1] : vector<16x32xf32> to vector<16xf32>
    %278 = vector.shape_cast %277 : vector<16xf32> to vector<16x1xf32>
    %cst_99 = arith.constant 3.200000e+01 : f32
    %279 = vector.broadcast %cst_99 : f32 to vector<16x1xf32>
    %280 = arith.divf %278, %279 : vector<16x1xf32>
    %281 = vector.broadcast %280 : vector<16x1xf32> to vector<16x32xf32>
    %282 = arith.subf %274, %281 : vector<16x32xf32>
    %283 = arith.mulf %282, %282 : vector<16x32xf32>
    %cst_100 = arith.constant dense<0.000000e+00> : vector<16xf32>
    %284 = vector.multi_reduction <add>, %283, %cst_100 [1] : vector<16x32xf32> to vector<16xf32>
    %285 = vector.shape_cast %284 : vector<16xf32> to vector<16x1xf32>
    %cst_101 = arith.constant 3.200000e+01 : f32
    %286 = vector.broadcast %cst_101 : f32 to vector<16x1xf32>
    %287 = arith.divf %285, %286 : vector<16x1xf32>
    %288 = vector.broadcast %280 : vector<16x1xf32> to vector<16x32xf32>
    %289 = arith.subf %274, %288 : vector<16x32xf32>
    %cst_102 = arith.constant 9.99999997E-7 : f32
    %290 = vector.broadcast %cst_102 : f32 to vector<16x1xf32>
    %291 = arith.addf %287, %290 : vector<16x1xf32>
    %292 = math.rsqrt %291 : vector<16x1xf32>
    %293 = vector.broadcast %292 : vector<16x1xf32> to vector<16x32xf32>
    %294 = arith.mulf %289, %293 : vector<16x32xf32>
    %295 = vector.broadcast %275 : vector<1x32xf32> to vector<16x32xf32>
    %296 = arith.mulf %294, %295 : vector<16x32xf32>
    %297 = vector.broadcast %276 : vector<1x32xf32> to vector<16x32xf32>
    %298 = arith.addf %296, %297 : vector<16x32xf32>
    %c0_103 = arith.constant 0 : index
    %c0_104 = arith.constant 0 : index
    %c0_105 = arith.constant 0 : index
    %299 = vector.load %arg18[%c0_103, %c0_104, %c0_105] : memref<1x16x32xf32, #tpu.memory_space<vmem>>, vector<1x16x32xf32>
    %300 = vector.shape_cast %299 : vector<1x16x32xf32> to vector<16x32xf32>
    %301 = vector.shape_cast %298 : vector<16x32xf32> to vector<1x16x32xf32>
    tpu.vector_store %arg18[%c0_103, %c0_104, %c0_105], %301 {strides = array<i32>} : memref<1x16x32xf32, #tpu.memory_space<vmem>>, vector<1x16x32xf32>,
    return
  }
  func.func @transform_0(%arg0: i32) -> (i32, i32, i32) {
    %c0_i32 = arith.constant 0 : i32
    %c0_i32_0 = arith.constant 0 : i32
    %c0_i32_1 = arith.constant 0 : i32
    return %arg0, %c0_i32, %c0_i32_0 : i32, i32, i32
  }
  func.func @transform_1(%arg0: i32) -> (i32, i32) {
    %c0_i32 = arith.constant 0 : i32
    %c0_i32_0 = arith.constant 0 : i32
    %c0_i32_1 = arith.constant 0 : i32
    return %c0_i32, %c0_i32_0 : i32, i32
  }
  func.func @transform_2(%arg0: i32) -> (i32, i32) {
    %c0_i32 = arith.constant 0 : i32
    %c0_i32_0 = arith.constant 0 : i32
    %c0_i32_1 = arith.constant 0 : i32
    return %c0_i32, %c0_i32_0 : i32, i32
  }
  func.func @transform_3(%arg0: i32) -> (i32, i32) {
    %c0_i32 = arith.constant 0 : i32
    %c0_i32_0 = arith.constant 0 : i32
    %c0_i32_1 = arith.constant 0 : i32
    return %c0_i32, %c0_i32_0 : i32, i32
  }
  func.func @transform_4(%arg0: i32) -> (i32, i32) {
    %c0_i32 = arith.constant 0 : i32
    %c0_i32_0 = arith.constant 0 : i32
    %c0_i32_1 = arith.constant 0 : i32
    return %c0_i32, %c0_i32_0 : i32, i32
  }
  func.func @transform_5(%arg0: i32) -> (i32, i32) {
    %c0_i32 = arith.constant 0 : i32
    %c0_i32_0 = arith.constant 0 : i32
    %c0_i32_1 = arith.constant 0 : i32
    return %c0_i32, %c0_i32_0 : i32, i32
  }
  func.func @transform_6(%arg0: i32) -> (i32, i32) {
    %c0_i32 = arith.constant 0 : i32
    %c0_i32_0 = arith.constant 0 : i32
    %c0_i32_1 = arith.constant 0 : i32
    return %c0_i32, %c0_i32_0 : i32, i32
  }
  func.func @transform_7(%arg0: i32) -> (i32, i32) {
    %c0_i32 = arith.constant 0 : i32
    %c0_i32_0 = arith.constant 0 : i32
    %c0_i32_1 = arith.constant 0 : i32
    return %c0_i32, %c0_i32_0 : i32, i32
  }
  func.func @transform_8(%arg0: i32) -> (i32, i32) {
    %c0_i32 = arith.constant 0 : i32
    %c0_i32_0 = arith.constant 0 : i32
    %c0_i32_1 = arith.constant 0 : i32
    return %c0_i32, %c0_i32_0 : i32, i32
  }
  func.func @transform_9(%arg0: i32) -> (i32, i32) {
    %c0_i32 = arith.constant 0 : i32
    %c0_i32_0 = arith.constant 0 : i32
    %c0_i32_1 = arith.constant 0 : i32
    return %c0_i32, %c0_i32_0 : i32, i32
  }
  func.func @transform_10(%arg0: i32) -> (i32, i32) {
    %c0_i32 = arith.constant 0 : i32
    %c0_i32_0 = arith.constant 0 : i32
    %c0_i32_1 = arith.constant 0 : i32
    return %c0_i32, %c0_i32_0 : i32, i32
  }
  func.func @transform_11(%arg0: i32) -> (i32, i32) {
    %c0_i32 = arith.constant 0 : i32
    %c0_i32_0 = arith.constant 0 : i32
    %c0_i32_1 = arith.constant 0 : i32
    return %c0_i32, %c0_i32_0 : i32, i32
  }
  func.func @transform_12(%arg0: i32) -> (i32, i32) {
    %c0_i32 = arith.constant 0 : i32
    %c0_i32_0 = arith.constant 0 : i32
    %c0_i32_1 = arith.constant 0 : i32
    return %c0_i32, %c0_i32_0 : i32, i32
  }
  func.func @transform_13(%arg0: i32) -> (i32, i32) {
    %c0_i32 = arith.constant 0 : i32
    %c0_i32_0 = arith.constant 0 : i32
    %c0_i32_1 = arith.constant 0 : i32
    return %c0_i32, %c0_i32_0 : i32, i32
  }
  func.func @transform_14(%arg0: i32) -> (i32, i32) {
    %c0_i32 = arith.constant 0 : i32
    %c0_i32_0 = arith.constant 0 : i32
    %c0_i32_1 = arith.constant 0 : i32
    return %c0_i32, %c0_i32_0 : i32, i32
  }
  func.func @transform_15(%arg0: i32) -> (i32, i32) {
    %c0_i32 = arith.constant 0 : i32
    %c0_i32_0 = arith.constant 0 : i32
    %c0_i32_1 = arith.constant 0 : i32
    return %c0_i32, %c0_i32_0 : i32, i32
  }
  func.func @transform_16(%arg0: i32) -> (i32, i32) {
    %c0_i32 = arith.constant 0 : i32
    %c0_i32_0 = arith.constant 0 : i32
    %c0_i32_1 = arith.constant 0 : i32
    return %c0_i32, %c0_i32_0 : i32, i32
  }
  func.func @transform_17(%arg0: i32) -> (i32, i32, i32) {
    %c0_i32 = arith.constant 0 : i32
    %c0_i32_0 = arith.constant 0 : i32
    %c0_i32_1 = arith.constant 0 : i32
    return %arg0, %c0_i32, %c0_i32_0 : i32, i32, i32
  }
}

module attributes {stable_mosaic.version = 11 : i64} {
  func.func @_block_kernel(%arg0: i32, %arg1: memref<1x16x32xf32, #tpu.memory_space<vmem>>, %arg2: memref<1x32xf32, #tpu.memory_space<vmem>>, %arg3: memref<1x32xf32, #tpu.memory_space<vmem>>, %arg4: memref<32x96xbf16, #tpu.memory_space<vmem>>, %arg5: memref<1x96xf32, #tpu.memory_space<vmem>>, %arg6: memref<32x32xbf16, #tpu.memory_space<vmem>>, %arg7: memref<1x32xf32, #tpu.memory_space<vmem>>, %arg8: memref<1x32xf32, #tpu.memory_space<vmem>>, %arg9: memref<1x32xf32, #tpu.memory_space<vmem>>, %arg10: memref<32x64xbf16, #tpu.memory_space<vmem>>, %arg11: memref<1x64xf32, #tpu.memory_space<vmem>>, %arg12: memref<64x32xbf16, #tpu.memory_space<vmem>>, %arg13: memref<1x32xf32, #tpu.memory_space<vmem>>, %arg14: memref<1x4xf32, #tpu.memory_space<vmem>>, %arg15: memref<16x16xf32, #tpu.memory_space<vmem>>, %arg16: memref<1x16x32xf32, #tpu.memory_space<vmem>>) attributes {dimension_semantics = [#tpu.dimension_semantics<parallel>], iteration_bounds = array<i64: 2>, scalar_prefetch = 0 : i64, scratch_operands = 0 : i64, tpu.core_type = #tpu.core_type<tc>, window_params = [{transform_indices = @transform_0, window_bounds = array<i64: 1, 16, 32>}, {pipeline_mode = #tpu.pipeline_mode<synchronous>, transform_indices = @transform_1, window_bounds = array<i64: 1, 32>}, {pipeline_mode = #tpu.pipeline_mode<synchronous>, transform_indices = @transform_2, window_bounds = array<i64: 1, 32>}, {pipeline_mode = #tpu.pipeline_mode<synchronous>, transform_indices = @transform_3, window_bounds = array<i64: 32, 96>}, {pipeline_mode = #tpu.pipeline_mode<synchronous>, transform_indices = @transform_4, window_bounds = array<i64: 1, 96>}, {pipeline_mode = #tpu.pipeline_mode<synchronous>, transform_indices = @transform_5, window_bounds = array<i64: 32, 32>}, {pipeline_mode = #tpu.pipeline_mode<synchronous>, transform_indices = @transform_6, window_bounds = array<i64: 1, 32>}, {pipeline_mode = #tpu.pipeline_mode<synchronous>, transform_indices = @transform_7, window_bounds = array<i64: 1, 32>}, {pipeline_mode = #tpu.pipeline_mode<synchronous>, transform_indices = @transform_8, window_bounds = array<i64: 1, 32>}, {pipeline_mode = #tpu.pipeline_mode<synchronous>, transform_indices = @transform_9, window_bounds = array<i64: 32, 64>}, {pipeline_mode = #tpu.pipeline_mode<synchronous>, transform_indices = @transform_10, window_bounds = array<i64: 1, 64>}, {pipeline_mode = #tpu.pipeline_mode<synchronous>, transform_indices = @transform_11, window_bounds = array<i64: 64, 32>}, {pipeline_mode = #tpu.pipeline_mode<synchronous>, transform_indices = @transform_12, window_bounds = array<i64: 1, 32>}, {pipeline_mode = #tpu.pipeline_mode<synchronous>, transform_indices = @transform_13, window_bounds = array<i64: 1, 4>}, {pipeline_mode = #tpu.pipeline_mode<synchronous>, transform_indices = @transform_14, window_bounds = array<i64: 16, 16>}, {transform_indices = @transform_15, window_bounds = array<i64: 1, 16, 32>}]} {
    %c0 = arith.constant 0 : index
    %c0_0 = arith.constant 0 : index
    %c0_1 = arith.constant 0 : index
    %0 = vector.load %arg1[%c0, %c0_0, %c0_1] : memref<1x16x32xf32, #tpu.memory_space<vmem>>, vector<1x16x32xf32>
    %1 = vector.shape_cast %0 : vector<1x16x32xf32> to vector<16x32xf32>
    %c0_2 = arith.constant 0 : index
    %c0_3 = arith.constant 0 : index
    %2 = vector.load %arg2[%c0_2, %c0_3] : memref<1x32xf32, #tpu.memory_space<vmem>>, vector<1x32xf32>
    %c0_4 = arith.constant 0 : index
    %c0_5 = arith.constant 0 : index
    %3 = vector.load %arg3[%c0_4, %c0_5] : memref<1x32xf32, #tpu.memory_space<vmem>>, vector<1x32xf32>
    %cst = arith.constant dense<0.000000e+00> : vector<16xf32>
    %4 = vector.multi_reduction <add>, %1, %cst [1] : vector<16x32xf32> to vector<16xf32>
    %5 = vector.shape_cast %4 : vector<16xf32> to vector<16x1xf32>
    %cst_6 = arith.constant 3.200000e+01 : f32
    %6 = vector.broadcast %cst_6 : f32 to vector<16x1xf32>
    %7 = arith.divf %5, %6 : vector<16x1xf32>
    %8 = vector.broadcast %7 : vector<16x1xf32> to vector<16x32xf32>
    %9 = arith.subf %1, %8 : vector<16x32xf32>
    %10 = arith.mulf %9, %9 : vector<16x32xf32>
    %cst_7 = arith.constant dense<0.000000e+00> : vector<16xf32>
    %11 = vector.multi_reduction <add>, %10, %cst_7 [1] : vector<16x32xf32> to vector<16xf32>
    %12 = vector.shape_cast %11 : vector<16xf32> to vector<16x1xf32>
    %cst_8 = arith.constant 3.200000e+01 : f32
    %13 = vector.broadcast %cst_8 : f32 to vector<16x1xf32>
    %14 = arith.divf %12, %13 : vector<16x1xf32>
    %15 = vector.broadcast %7 : vector<16x1xf32> to vector<16x32xf32>
    %16 = arith.subf %1, %15 : vector<16x32xf32>
    %cst_9 = arith.constant 9.99999997E-7 : f32
    %17 = vector.broadcast %cst_9 : f32 to vector<16x1xf32>
    %18 = arith.addf %14, %17 : vector<16x1xf32>
    %19 = math.rsqrt %18 : vector<16x1xf32>
    %20 = vector.broadcast %19 : vector<16x1xf32> to vector<16x32xf32>
    %21 = arith.mulf %16, %20 : vector<16x32xf32>
    %22 = vector.broadcast %2 : vector<1x32xf32> to vector<16x32xf32>
    %23 = arith.mulf %21, %22 : vector<16x32xf32>
    %24 = vector.broadcast %3 : vector<1x32xf32> to vector<16x32xf32>
    %25 = arith.addf %23, %24 : vector<16x32xf32>
    %26 = arith.truncf %25 : vector<16x32xf32> to vector<16x32xbf16>
    %c0_10 = arith.constant 0 : index
    %c0_11 = arith.constant 0 : index
    %27 = vector.load %arg4[%c0_10, %c0_11] : memref<32x96xbf16, #tpu.memory_space<vmem>>, vector<32x96xbf16>
    %cst_12 = arith.constant dense<0.000000e+00> : vector<16x96xf32>
    %28 = tpu.matmul %26, %27, %cst_12 {dimension_numbers = #tpu.dot_dimension_numbers<[1], [0], [0], [1], [0, 0, 1, 1], [], []>} : vector<16x32xbf16>, vector<32x96xbf16>, vector<16x96xf32> -> vector<16x96xf32>
    %c0_13 = arith.constant 0 : index
    %c0_14 = arith.constant 0 : index
    %29 = vector.load %arg5[%c0_13, %c0_14] : memref<1x96xf32, #tpu.memory_space<vmem>>, vector<1x96xf32>
    %30 = vector.broadcast %29 : vector<1x96xf32> to vector<16x96xf32>
    %31 = arith.addf %28, %30 : vector<16x96xf32>
    %c0_15 = arith.constant 0 : index
    %c0_16 = arith.constant 0 : index
    %32 = vector.load %arg15[%c0_15, %c0_16] : memref<16x16xf32, #tpu.memory_space<vmem>>, vector<16x16xf32>
    %33 = vector.extract_strided_slice %31 {offsets = [0, 0], sizes = [16, 8], strides = [1, 1]} : vector<16x96xf32> to vector<16x8xf32>
    %34 = vector.extract_strided_slice %31 {offsets = [0, 32], sizes = [16, 8], strides = [1, 1]} : vector<16x96xf32> to vector<16x8xf32>
    %35 = vector.extract_strided_slice %31 {offsets = [0, 64], sizes = [16, 8], strides = [1, 1]} : vector<16x96xf32> to vector<16x8xf32>
    %36 = arith.truncf %33 : vector<16x8xf32> to vector<16x8xbf16>
    %37 = arith.truncf %34 : vector<16x8xf32> to vector<16x8xbf16>
    %cst_17 = arith.constant dense<0.000000e+00> : vector<16x16xf32>
    %38 = tpu.matmul %36, %37, %cst_17 {dimension_numbers = #tpu.dot_dimension_numbers<[1], [1], [0], [0], [0, 0, 1, 0], [], []>} : vector<16x8xbf16>, vector<16x8xbf16>, vector<16x16xf32> -> vector<16x16xf32>
    %39 = arith.mulf %33, %33 : vector<16x8xf32>
    %cst_18 = arith.constant dense<0.000000e+00> : vector<16xf32>
    %40 = vector.multi_reduction <add>, %39, %cst_18 [1] : vector<16x8xf32> to vector<16xf32>
    %41 = vector.shape_cast %40 : vector<16xf32> to vector<16x1xf32>
    %cst_19 = arith.constant 9.99999974E-5 : f32
    %42 = vector.broadcast %cst_19 : f32 to vector<16x1xf32>
    %43 = arith.addf %41, %42 : vector<16x1xf32>
    %44 = math.sqrt %43 : vector<16x1xf32>
    %45 = arith.mulf %34, %34 : vector<16x8xf32>
    %cst_20 = arith.constant dense<0.000000e+00> : vector<16xf32>
    %46 = vector.multi_reduction <add>, %45, %cst_20 [1] : vector<16x8xf32> to vector<16xf32>
    %47 = vector.shape_cast %46 : vector<16xf32> to vector<16x1xf32>
    %cst_21 = arith.constant 9.99999974E-5 : f32
    %48 = vector.broadcast %cst_21 : f32 to vector<16x1xf32>
    %49 = arith.addf %47, %48 : vector<16x1xf32>
    %50 = math.sqrt %49 : vector<16x1xf32>
    %51 = tpu.transpose %50, [1, 0] : vector<16x1xf32> -> vector<1x16xf32>
    %52 = vector.broadcast %44 : vector<16x1xf32> to vector<16x16xf32>
    %53 = vector.broadcast %51 : vector<1x16xf32> to vector<16x16xf32>
    %54 = arith.mulf %52, %53 : vector<16x16xf32>
    %cst_22 = arith.constant 9.99999974E-5 : f32
    %55 = vector.broadcast %cst_22 : f32 to vector<16x16xf32>
    %56 = arith.addf %54, %55 : vector<16x16xf32>
    %57 = tpu.reciprocal %56 {approx = true} : vector<16x16xf32> -> vector<16x16xf32>
    %58 = arith.mulf %38, %57 : vector<16x16xf32>
    %c0_23 = arith.constant 0 : index
    %c0_24 = arith.constant 0 : index
    %59 = vector.load %arg14[%c0_23, %c0_24] : memref<1x4xf32, #tpu.memory_space<vmem>>, vector<1x1xf32>
    %60 = vector.broadcast %59 : vector<1x1xf32> to vector<16x16xf32>
    %61 = arith.mulf %60, %32 : vector<16x16xf32>
    %62 = math.exp %61 : vector<16x16xf32>
    %cst_25 = arith.constant dense<0.000000e+00> : vector<16xf32>
    %63 = vector.multi_reduction <add>, %62, %cst_25 [1] : vector<16x16xf32> to vector<16xf32>
    %64 = vector.shape_cast %63 : vector<16xf32> to vector<16x1xf32>
    %65 = tpu.reciprocal %64 {approx = true} : vector<16x1xf32> -> vector<16x1xf32>
    %66 = vector.broadcast %65 : vector<16x1xf32> to vector<16x16xf32>
    %67 = arith.mulf %62, %66 : vector<16x16xf32>
    %68 = arith.mulf %58, %67 : vector<16x16xf32>
    %69 = arith.truncf %68 : vector<16x16xf32> to vector<16x16xbf16>
    %70 = arith.truncf %35 : vector<16x8xf32> to vector<16x8xbf16>
    %cst_26 = arith.constant dense<0.000000e+00> : vector<16x8xf32>
    %71 = tpu.matmul %69, %70, %cst_26 {dimension_numbers = #tpu.dot_dimension_numbers<[1], [0], [0], [1], [0, 0, 1, 1], [], []>} : vector<16x16xbf16>, vector<16x8xbf16>, vector<16x8xf32> -> vector<16x8xf32>
    %72 = vector.extract_strided_slice %31 {offsets = [0, 8], sizes = [16, 8], strides = [1, 1]} : vector<16x96xf32> to vector<16x8xf32>
    %73 = vector.extract_strided_slice %31 {offsets = [0, 40], sizes = [16, 8], strides = [1, 1]} : vector<16x96xf32> to vector<16x8xf32>
    %74 = vector.extract_strided_slice %31 {offsets = [0, 72], sizes = [16, 8], strides = [1, 1]} : vector<16x96xf32> to vector<16x8xf32>
    %75 = arith.truncf %72 : vector<16x8xf32> to vector<16x8xbf16>
    %76 = arith.truncf %73 : vector<16x8xf32> to vector<16x8xbf16>
    %cst_27 = arith.constant dense<0.000000e+00> : vector<16x16xf32>
    %77 = tpu.matmul %75, %76, %cst_27 {dimension_numbers = #tpu.dot_dimension_numbers<[1], [1], [0], [0], [0, 0, 1, 0], [], []>} : vector<16x8xbf16>, vector<16x8xbf16>, vector<16x16xf32> -> vector<16x16xf32>
    %78 = arith.mulf %72, %72 : vector<16x8xf32>
    %cst_28 = arith.constant dense<0.000000e+00> : vector<16xf32>
    %79 = vector.multi_reduction <add>, %78, %cst_28 [1] : vector<16x8xf32> to vector<16xf32>
    %80 = vector.shape_cast %79 : vector<16xf32> to vector<16x1xf32>
    %cst_29 = arith.constant 9.99999974E-5 : f32
    %81 = vector.broadcast %cst_29 : f32 to vector<16x1xf32>
    %82 = arith.addf %80, %81 : vector<16x1xf32>
    %83 = math.sqrt %82 : vector<16x1xf32>
    %84 = arith.mulf %73, %73 : vector<16x8xf32>
    %cst_30 = arith.constant dense<0.000000e+00> : vector<16xf32>
    %85 = vector.multi_reduction <add>, %84, %cst_30 [1] : vector<16x8xf32> to vector<16xf32>
    %86 = vector.shape_cast %85 : vector<16xf32> to vector<16x1xf32>
    %cst_31 = arith.constant 9.99999974E-5 : f32
    %87 = vector.broadcast %cst_31 : f32 to vector<16x1xf32>
    %88 = arith.addf %86, %87 : vector<16x1xf32>
    %89 = math.sqrt %88 : vector<16x1xf32>
    %90 = tpu.transpose %89, [1, 0] : vector<16x1xf32> -> vector<1x16xf32>
    %91 = vector.broadcast %83 : vector<16x1xf32> to vector<16x16xf32>
    %92 = vector.broadcast %90 : vector<1x16xf32> to vector<16x16xf32>
    %93 = arith.mulf %91, %92 : vector<16x16xf32>
    %cst_32 = arith.constant 9.99999974E-5 : f32
    %94 = vector.broadcast %cst_32 : f32 to vector<16x16xf32>
    %95 = arith.addf %93, %94 : vector<16x16xf32>
    %96 = tpu.reciprocal %95 {approx = true} : vector<16x16xf32> -> vector<16x16xf32>
    %97 = arith.mulf %77, %96 : vector<16x16xf32>
    %c0_33 = arith.constant 0 : index
    %c1 = arith.constant 1 : index
    %98 = vector.load %arg14[%c0_33, %c1] : memref<1x4xf32, #tpu.memory_space<vmem>>, vector<1x1xf32>
    %99 = vector.broadcast %98 : vector<1x1xf32> to vector<16x16xf32>
    %100 = arith.mulf %99, %32 : vector<16x16xf32>
    %101 = math.exp %100 : vector<16x16xf32>
    %cst_34 = arith.constant dense<0.000000e+00> : vector<16xf32>
    %102 = vector.multi_reduction <add>, %101, %cst_34 [1] : vector<16x16xf32> to vector<16xf32>
    %103 = vector.shape_cast %102 : vector<16xf32> to vector<16x1xf32>
    %104 = tpu.reciprocal %103 {approx = true} : vector<16x1xf32> -> vector<16x1xf32>
    %105 = vector.broadcast %104 : vector<16x1xf32> to vector<16x16xf32>
    %106 = arith.mulf %101, %105 : vector<16x16xf32>
    %107 = arith.mulf %97, %106 : vector<16x16xf32>
    %108 = arith.truncf %107 : vector<16x16xf32> to vector<16x16xbf16>
    %109 = arith.truncf %74 : vector<16x8xf32> to vector<16x8xbf16>
    %cst_35 = arith.constant dense<0.000000e+00> : vector<16x8xf32>
    %110 = tpu.matmul %108, %109, %cst_35 {dimension_numbers = #tpu.dot_dimension_numbers<[1], [0], [0], [1], [0, 0, 1, 1], [], []>} : vector<16x16xbf16>, vector<16x8xbf16>, vector<16x8xf32> -> vector<16x8xf32>
    %111 = vector.extract_strided_slice %31 {offsets = [0, 16], sizes = [16, 8], strides = [1, 1]} : vector<16x96xf32> to vector<16x8xf32>
    %112 = vector.extract_strided_slice %31 {offsets = [0, 48], sizes = [16, 8], strides = [1, 1]} : vector<16x96xf32> to vector<16x8xf32>
    %113 = vector.extract_strided_slice %31 {offsets = [0, 80], sizes = [16, 8], strides = [1, 1]} : vector<16x96xf32> to vector<16x8xf32>
    %114 = arith.truncf %111 : vector<16x8xf32> to vector<16x8xbf16>
    %115 = arith.truncf %112 : vector<16x8xf32> to vector<16x8xbf16>
    %cst_36 = arith.constant dense<0.000000e+00> : vector<16x16xf32>
    %116 = tpu.matmul %114, %115, %cst_36 {dimension_numbers = #tpu.dot_dimension_numbers<[1], [1], [0], [0], [0, 0, 1, 0], [], []>} : vector<16x8xbf16>, vector<16x8xbf16>, vector<16x16xf32> -> vector<16x16xf32>
    %117 = arith.mulf %111, %111 : vector<16x8xf32>
    %cst_37 = arith.constant dense<0.000000e+00> : vector<16xf32>
    %118 = vector.multi_reduction <add>, %117, %cst_37 [1] : vector<16x8xf32> to vector<16xf32>
    %119 = vector.shape_cast %118 : vector<16xf32> to vector<16x1xf32>
    %cst_38 = arith.constant 9.99999974E-5 : f32
    %120 = vector.broadcast %cst_38 : f32 to vector<16x1xf32>
    %121 = arith.addf %119, %120 : vector<16x1xf32>
    %122 = math.sqrt %121 : vector<16x1xf32>
    %123 = arith.mulf %112, %112 : vector<16x8xf32>
    %cst_39 = arith.constant dense<0.000000e+00> : vector<16xf32>
    %124 = vector.multi_reduction <add>, %123, %cst_39 [1] : vector<16x8xf32> to vector<16xf32>
    %125 = vector.shape_cast %124 : vector<16xf32> to vector<16x1xf32>
    %cst_40 = arith.constant 9.99999974E-5 : f32
    %126 = vector.broadcast %cst_40 : f32 to vector<16x1xf32>
    %127 = arith.addf %125, %126 : vector<16x1xf32>
    %128 = math.sqrt %127 : vector<16x1xf32>
    %129 = tpu.transpose %128, [1, 0] : vector<16x1xf32> -> vector<1x16xf32>
    %130 = vector.broadcast %122 : vector<16x1xf32> to vector<16x16xf32>
    %131 = vector.broadcast %129 : vector<1x16xf32> to vector<16x16xf32>
    %132 = arith.mulf %130, %131 : vector<16x16xf32>
    %cst_41 = arith.constant 9.99999974E-5 : f32
    %133 = vector.broadcast %cst_41 : f32 to vector<16x16xf32>
    %134 = arith.addf %132, %133 : vector<16x16xf32>
    %135 = tpu.reciprocal %134 {approx = true} : vector<16x16xf32> -> vector<16x16xf32>
    %136 = arith.mulf %116, %135 : vector<16x16xf32>
    %c0_42 = arith.constant 0 : index
    %c2 = arith.constant 2 : index
    %137 = vector.load %arg14[%c0_42, %c2] : memref<1x4xf32, #tpu.memory_space<vmem>>, vector<1x1xf32>
    %138 = vector.broadcast %137 : vector<1x1xf32> to vector<16x16xf32>
    %139 = arith.mulf %138, %32 : vector<16x16xf32>
    %140 = math.exp %139 : vector<16x16xf32>
    %cst_43 = arith.constant dense<0.000000e+00> : vector<16xf32>
    %141 = vector.multi_reduction <add>, %140, %cst_43 [1] : vector<16x16xf32> to vector<16xf32>
    %142 = vector.shape_cast %141 : vector<16xf32> to vector<16x1xf32>
    %143 = tpu.reciprocal %142 {approx = true} : vector<16x1xf32> -> vector<16x1xf32>
    %144 = vector.broadcast %143 : vector<16x1xf32> to vector<16x16xf32>
    %145 = arith.mulf %140, %144 : vector<16x16xf32>
    %146 = arith.mulf %136, %145 : vector<16x16xf32>
    %147 = arith.truncf %146 : vector<16x16xf32> to vector<16x16xbf16>
    %148 = arith.truncf %113 : vector<16x8xf32> to vector<16x8xbf16>
    %cst_44 = arith.constant dense<0.000000e+00> : vector<16x8xf32>
    %149 = tpu.matmul %147, %148, %cst_44 {dimension_numbers = #tpu.dot_dimension_numbers<[1], [0], [0], [1], [0, 0, 1, 1], [], []>} : vector<16x16xbf16>, vector<16x8xbf16>, vector<16x8xf32> -> vector<16x8xf32>
    %150 = vector.extract_strided_slice %31 {offsets = [0, 24], sizes = [16, 8], strides = [1, 1]} : vector<16x96xf32> to vector<16x8xf32>
    %151 = vector.extract_strided_slice %31 {offsets = [0, 56], sizes = [16, 8], strides = [1, 1]} : vector<16x96xf32> to vector<16x8xf32>
    %152 = vector.extract_strided_slice %31 {offsets = [0, 88], sizes = [16, 8], strides = [1, 1]} : vector<16x96xf32> to vector<16x8xf32>
    %153 = arith.truncf %150 : vector<16x8xf32> to vector<16x8xbf16>
    %154 = arith.truncf %151 : vector<16x8xf32> to vector<16x8xbf16>
    %cst_45 = arith.constant dense<0.000000e+00> : vector<16x16xf32>
    %155 = tpu.matmul %153, %154, %cst_45 {dimension_numbers = #tpu.dot_dimension_numbers<[1], [1], [0], [0], [0, 0, 1, 0], [], []>} : vector<16x8xbf16>, vector<16x8xbf16>, vector<16x16xf32> -> vector<16x16xf32>
    %156 = arith.mulf %150, %150 : vector<16x8xf32>
    %cst_46 = arith.constant dense<0.000000e+00> : vector<16xf32>
    %157 = vector.multi_reduction <add>, %156, %cst_46 [1] : vector<16x8xf32> to vector<16xf32>
    %158 = vector.shape_cast %157 : vector<16xf32> to vector<16x1xf32>
    %cst_47 = arith.constant 9.99999974E-5 : f32
    %159 = vector.broadcast %cst_47 : f32 to vector<16x1xf32>
    %160 = arith.addf %158, %159 : vector<16x1xf32>
    %161 = math.sqrt %160 : vector<16x1xf32>
    %162 = arith.mulf %151, %151 : vector<16x8xf32>
    %cst_48 = arith.constant dense<0.000000e+00> : vector<16xf32>
    %163 = vector.multi_reduction <add>, %162, %cst_48 [1] : vector<16x8xf32> to vector<16xf32>
    %164 = vector.shape_cast %163 : vector<16xf32> to vector<16x1xf32>
    %cst_49 = arith.constant 9.99999974E-5 : f32
    %165 = vector.broadcast %cst_49 : f32 to vector<16x1xf32>
    %166 = arith.addf %164, %165 : vector<16x1xf32>
    %167 = math.sqrt %166 : vector<16x1xf32>
    %168 = tpu.transpose %167, [1, 0] : vector<16x1xf32> -> vector<1x16xf32>
    %169 = vector.broadcast %161 : vector<16x1xf32> to vector<16x16xf32>
    %170 = vector.broadcast %168 : vector<1x16xf32> to vector<16x16xf32>
    %171 = arith.mulf %169, %170 : vector<16x16xf32>
    %cst_50 = arith.constant 9.99999974E-5 : f32
    %172 = vector.broadcast %cst_50 : f32 to vector<16x16xf32>
    %173 = arith.addf %171, %172 : vector<16x16xf32>
    %174 = tpu.reciprocal %173 {approx = true} : vector<16x16xf32> -> vector<16x16xf32>
    %175 = arith.mulf %155, %174 : vector<16x16xf32>
    %c0_51 = arith.constant 0 : index
    %c3 = arith.constant 3 : index
    %176 = vector.load %arg14[%c0_51, %c3] : memref<1x4xf32, #tpu.memory_space<vmem>>, vector<1x1xf32>
    %177 = vector.broadcast %176 : vector<1x1xf32> to vector<16x16xf32>
    %178 = arith.mulf %177, %32 : vector<16x16xf32>
    %179 = math.exp %178 : vector<16x16xf32>
    %cst_52 = arith.constant dense<0.000000e+00> : vector<16xf32>
    %180 = vector.multi_reduction <add>, %179, %cst_52 [1] : vector<16x16xf32> to vector<16xf32>
    %181 = vector.shape_cast %180 : vector<16xf32> to vector<16x1xf32>
    %182 = tpu.reciprocal %181 {approx = true} : vector<16x1xf32> -> vector<16x1xf32>
    %183 = vector.broadcast %182 : vector<16x1xf32> to vector<16x16xf32>
    %184 = arith.mulf %179, %183 : vector<16x16xf32>
    %185 = arith.mulf %175, %184 : vector<16x16xf32>
    %186 = arith.truncf %185 : vector<16x16xf32> to vector<16x16xbf16>
    %187 = arith.truncf %152 : vector<16x8xf32> to vector<16x8xbf16>
    %cst_53 = arith.constant dense<0.000000e+00> : vector<16x8xf32>
    %188 = tpu.matmul %186, %187, %cst_53 {dimension_numbers = #tpu.dot_dimension_numbers<[1], [0], [0], [1], [0, 0, 1, 1], [], []>} : vector<16x16xbf16>, vector<16x8xbf16>, vector<16x8xf32> -> vector<16x8xf32>
    %189 = tpu.concatenate %71, %110, %149, %188 in 1 : vector<16x8xf32>, vector<16x8xf32>, vector<16x8xf32>, vector<16x8xf32> -> vector<16x32xf32>
    %190 = arith.truncf %189 : vector<16x32xf32> to vector<16x32xbf16>
    %c0_54 = arith.constant 0 : index
    %c0_55 = arith.constant 0 : index
    %191 = vector.load %arg6[%c0_54, %c0_55] : memref<32x32xbf16, #tpu.memory_space<vmem>>, vector<32x32xbf16>
    %cst_56 = arith.constant dense<0.000000e+00> : vector<16x32xf32>
    %192 = tpu.matmul %190, %191, %cst_56 {dimension_numbers = #tpu.dot_dimension_numbers<[1], [0], [0], [1], [0, 0, 1, 1], [], []>} : vector<16x32xbf16>, vector<32x32xbf16>, vector<16x32xf32> -> vector<16x32xf32>
    %c0_57 = arith.constant 0 : index
    %c0_58 = arith.constant 0 : index
    %193 = vector.load %arg7[%c0_57, %c0_58] : memref<1x32xf32, #tpu.memory_space<vmem>>, vector<1x32xf32>
    %194 = vector.broadcast %193 : vector<1x32xf32> to vector<16x32xf32>
    %195 = arith.addf %192, %194 : vector<16x32xf32>
    %196 = arith.addf %195, %1 : vector<16x32xf32>
    %c0_59 = arith.constant 0 : index
    %c0_60 = arith.constant 0 : index
    %197 = vector.load %arg8[%c0_59, %c0_60] : memref<1x32xf32, #tpu.memory_space<vmem>>, vector<1x32xf32>
    %c0_61 = arith.constant 0 : index
    %c0_62 = arith.constant 0 : index
    %198 = vector.load %arg9[%c0_61, %c0_62] : memref<1x32xf32, #tpu.memory_space<vmem>>, vector<1x32xf32>
    %cst_63 = arith.constant dense<0.000000e+00> : vector<16xf32>
    %199 = vector.multi_reduction <add>, %196, %cst_63 [1] : vector<16x32xf32> to vector<16xf32>
    %200 = vector.shape_cast %199 : vector<16xf32> to vector<16x1xf32>
    %cst_64 = arith.constant 3.200000e+01 : f32
    %201 = vector.broadcast %cst_64 : f32 to vector<16x1xf32>
    %202 = arith.divf %200, %201 : vector<16x1xf32>
    %203 = vector.broadcast %202 : vector<16x1xf32> to vector<16x32xf32>
    %204 = arith.subf %196, %203 : vector<16x32xf32>
    %205 = arith.mulf %204, %204 : vector<16x32xf32>
    %cst_65 = arith.constant dense<0.000000e+00> : vector<16xf32>
    %206 = vector.multi_reduction <add>, %205, %cst_65 [1] : vector<16x32xf32> to vector<16xf32>
    %207 = vector.shape_cast %206 : vector<16xf32> to vector<16x1xf32>
    %cst_66 = arith.constant 3.200000e+01 : f32
    %208 = vector.broadcast %cst_66 : f32 to vector<16x1xf32>
    %209 = arith.divf %207, %208 : vector<16x1xf32>
    %210 = vector.broadcast %202 : vector<16x1xf32> to vector<16x32xf32>
    %211 = arith.subf %196, %210 : vector<16x32xf32>
    %cst_67 = arith.constant 9.99999997E-7 : f32
    %212 = vector.broadcast %cst_67 : f32 to vector<16x1xf32>
    %213 = arith.addf %209, %212 : vector<16x1xf32>
    %214 = math.rsqrt %213 : vector<16x1xf32>
    %215 = vector.broadcast %214 : vector<16x1xf32> to vector<16x32xf32>
    %216 = arith.mulf %211, %215 : vector<16x32xf32>
    %217 = vector.broadcast %197 : vector<1x32xf32> to vector<16x32xf32>
    %218 = arith.mulf %216, %217 : vector<16x32xf32>
    %219 = vector.broadcast %198 : vector<1x32xf32> to vector<16x32xf32>
    %220 = arith.addf %218, %219 : vector<16x32xf32>
    %221 = arith.truncf %220 : vector<16x32xf32> to vector<16x32xbf16>
    %c0_68 = arith.constant 0 : index
    %c0_69 = arith.constant 0 : index
    %222 = vector.load %arg10[%c0_68, %c0_69] : memref<32x64xbf16, #tpu.memory_space<vmem>>, vector<32x64xbf16>
    %cst_70 = arith.constant dense<0.000000e+00> : vector<16x64xf32>
    %223 = tpu.matmul %221, %222, %cst_70 {dimension_numbers = #tpu.dot_dimension_numbers<[1], [0], [0], [1], [0, 0, 1, 1], [], []>} : vector<16x32xbf16>, vector<32x64xbf16>, vector<16x64xf32> -> vector<16x64xf32>
    %c0_71 = arith.constant 0 : index
    %c0_72 = arith.constant 0 : index
    %224 = vector.load %arg11[%c0_71, %c0_72] : memref<1x64xf32, #tpu.memory_space<vmem>>, vector<1x64xf32>
    %225 = vector.broadcast %224 : vector<1x64xf32> to vector<16x64xf32>
    %226 = arith.addf %223, %225 : vector<16x64xf32>
    %cst_73 = arith.constant 5.000000e-01 : f32
    %227 = vector.broadcast %cst_73 : f32 to vector<16x64xf32>
    %228 = arith.mulf %227, %226 : vector<16x64xf32>
    %cst_74 = arith.constant 0.707106769 : f32
    %229 = vector.broadcast %cst_74 : f32 to vector<16x64xf32>
    %230 = arith.mulf %226, %229 : vector<16x64xf32>
    %cst_75 = arith.constant 0.000000e+00 : f32
    %231 = vector.broadcast %cst_75 : f32 to vector<16x64xf32>
    %232 = arith.cmpf olt, %230, %231 : vector<16x64xf32>
    %cst_76 = arith.constant -1.000000e+00 : f32
    %cst_77 = arith.constant 1.000000e+00 : f32
    %233 = vector.broadcast %cst_76 : f32 to vector<16x64xf32>
    %234 = vector.broadcast %cst_77 : f32 to vector<16x64xf32>
    %235 = arith.select %232, %233, %234 : vector<16x64xi1>, vector<16x64xf32>
    %236 = math.absf %230 : vector<16x64xf32>
    %cst_78 = arith.constant 0.327591091 : f32
    %237 = vector.broadcast %cst_78 : f32 to vector<16x64xf32>
    %238 = arith.mulf %237, %236 : vector<16x64xf32>
    %cst_79 = arith.constant 1.000000e+00 : f32
    %239 = vector.broadcast %cst_79 : f32 to vector<16x64xf32>
    %240 = arith.addf %239, %238 : vector<16x64xf32>
    %cst_80 = arith.constant 1.000000e+00 : f32
    %241 = vector.broadcast %cst_80 : f32 to vector<16x64xf32>
    %242 = arith.divf %241, %240 : vector<16x64xf32>
    %cst_81 = arith.constant 1.06140542 : f32
    %243 = vector.broadcast %cst_81 : f32 to vector<16x64xf32>
    %244 = arith.mulf %243, %242 : vector<16x64xf32>
    %cst_82 = arith.constant -1.45315206 : f32
    %245 = vector.broadcast %cst_82 : f32 to vector<16x64xf32>
    %246 = arith.addf %244, %245 : vector<16x64xf32>
    %247 = arith.mulf %246, %242 : vector<16x64xf32>
    %cst_83 = arith.constant 1.42141378 : f32
    %248 = vector.broadcast %cst_83 : f32 to vector<16x64xf32>
    %249 = arith.addf %247, %248 : vector<16x64xf32>
    %250 = arith.mulf %249, %242 : vector<16x64xf32>
    %cst_84 = arith.constant -0.284496725 : f32
    %251 = vector.broadcast %cst_84 : f32 to vector<16x64xf32>
    %252 = arith.addf %250, %251 : vector<16x64xf32>
    %253 = arith.mulf %252, %242 : vector<16x64xf32>
    %cst_85 = arith.constant 0.254829586 : f32
    %254 = vector.broadcast %cst_85 : f32 to vector<16x64xf32>
    %255 = arith.addf %253, %254 : vector<16x64xf32>
    %256 = arith.mulf %255, %242 : vector<16x64xf32>
    %cst_86 = arith.constant 0.000000e+00 : f32
    %257 = vector.broadcast %cst_86 : f32 to vector<16x64xf32>
    %258 = arith.subf %257, %236 : vector<16x64xf32>
    %259 = arith.mulf %258, %236 : vector<16x64xf32>
    %260 = math.exp %259 : vector<16x64xf32>
    %261 = arith.mulf %256, %260 : vector<16x64xf32>
    %cst_87 = arith.constant 1.000000e+00 : f32
    %262 = vector.broadcast %cst_87 : f32 to vector<16x64xf32>
    %263 = arith.subf %262, %261 : vector<16x64xf32>
    %264 = arith.mulf %235, %263 : vector<16x64xf32>
    %cst_88 = arith.constant 1.000000e+00 : f32
    %265 = vector.broadcast %cst_88 : f32 to vector<16x64xf32>
    %266 = arith.addf %265, %264 : vector<16x64xf32>
    %267 = arith.mulf %228, %266 : vector<16x64xf32>
    %268 = arith.truncf %267 : vector<16x64xf32> to vector<16x64xbf16>
    %c0_89 = arith.constant 0 : index
    %c0_90 = arith.constant 0 : index
    %269 = vector.load %arg12[%c0_89, %c0_90] : memref<64x32xbf16, #tpu.memory_space<vmem>>, vector<64x32xbf16>
    %cst_91 = arith.constant dense<0.000000e+00> : vector<16x32xf32>
    %270 = tpu.matmul %268, %269, %cst_91 {dimension_numbers = #tpu.dot_dimension_numbers<[1], [0], [0], [1], [0, 0, 1, 1], [], []>} : vector<16x64xbf16>, vector<64x32xbf16>, vector<16x32xf32> -> vector<16x32xf32>
    %c0_92 = arith.constant 0 : index
    %c0_93 = arith.constant 0 : index
    %271 = vector.load %arg13[%c0_92, %c0_93] : memref<1x32xf32, #tpu.memory_space<vmem>>, vector<1x32xf32>
    %272 = vector.broadcast %271 : vector<1x32xf32> to vector<16x32xf32>
    %273 = arith.addf %270, %272 : vector<16x32xf32>
    %274 = arith.addf %273, %196 : vector<16x32xf32>
    %c0_94 = arith.constant 0 : index
    %c0_95 = arith.constant 0 : index
    %c0_96 = arith.constant 0 : index
    %275 = vector.load %arg16[%c0_94, %c0_95, %c0_96] : memref<1x16x32xf32, #tpu.memory_space<vmem>>, vector<1x16x32xf32>
    %276 = vector.shape_cast %275 : vector<1x16x32xf32> to vector<16x32xf32>
    %277 = vector.shape_cast %274 : vector<16x32xf32> to vector<1x16x32xf32>
    tpu.vector_store %arg16[%c0_94, %c0_95, %c0_96], %277 {strides = array<i32>} : memref<1x16x32xf32, #tpu.memory_space<vmem>>, vector<1x16x32xf32>,
    return
  }
  func.func @transform_0(%arg0: i32) -> (i32, i32, i32) {
    %c0_i32 = arith.constant 0 : i32
    %c0_i32_0 = arith.constant 0 : i32
    %c0_i32_1 = arith.constant 0 : i32
    return %arg0, %c0_i32, %c0_i32_0 : i32, i32, i32
  }
  func.func @transform_1(%arg0: i32) -> (i32, i32) {
    %c0_i32 = arith.constant 0 : i32
    %c0_i32_0 = arith.constant 0 : i32
    %c0_i32_1 = arith.constant 0 : i32
    return %c0_i32, %c0_i32_0 : i32, i32
  }
  func.func @transform_2(%arg0: i32) -> (i32, i32) {
    %c0_i32 = arith.constant 0 : i32
    %c0_i32_0 = arith.constant 0 : i32
    %c0_i32_1 = arith.constant 0 : i32
    return %c0_i32, %c0_i32_0 : i32, i32
  }
  func.func @transform_3(%arg0: i32) -> (i32, i32) {
    %c0_i32 = arith.constant 0 : i32
    %c0_i32_0 = arith.constant 0 : i32
    %c0_i32_1 = arith.constant 0 : i32
    return %c0_i32, %c0_i32_0 : i32, i32
  }
  func.func @transform_4(%arg0: i32) -> (i32, i32) {
    %c0_i32 = arith.constant 0 : i32
    %c0_i32_0 = arith.constant 0 : i32
    %c0_i32_1 = arith.constant 0 : i32
    return %c0_i32, %c0_i32_0 : i32, i32
  }
  func.func @transform_5(%arg0: i32) -> (i32, i32) {
    %c0_i32 = arith.constant 0 : i32
    %c0_i32_0 = arith.constant 0 : i32
    %c0_i32_1 = arith.constant 0 : i32
    return %c0_i32, %c0_i32_0 : i32, i32
  }
  func.func @transform_6(%arg0: i32) -> (i32, i32) {
    %c0_i32 = arith.constant 0 : i32
    %c0_i32_0 = arith.constant 0 : i32
    %c0_i32_1 = arith.constant 0 : i32
    return %c0_i32, %c0_i32_0 : i32, i32
  }
  func.func @transform_7(%arg0: i32) -> (i32, i32) {
    %c0_i32 = arith.constant 0 : i32
    %c0_i32_0 = arith.constant 0 : i32
    %c0_i32_1 = arith.constant 0 : i32
    return %c0_i32, %c0_i32_0 : i32, i32
  }
  func.func @transform_8(%arg0: i32) -> (i32, i32) {
    %c0_i32 = arith.constant 0 : i32
    %c0_i32_0 = arith.constant 0 : i32
    %c0_i32_1 = arith.constant 0 : i32
    return %c0_i32, %c0_i32_0 : i32, i32
  }
  func.func @transform_9(%arg0: i32) -> (i32, i32) {
    %c0_i32 = arith.constant 0 : i32
    %c0_i32_0 = arith.constant 0 : i32
    %c0_i32_1 = arith.constant 0 : i32
    return %c0_i32, %c0_i32_0 : i32, i32
  }
  func.func @transform_10(%arg0: i32) -> (i32, i32) {
    %c0_i32 = arith.constant 0 : i32
    %c0_i32_0 = arith.constant 0 : i32
    %c0_i32_1 = arith.constant 0 : i32
    return %c0_i32, %c0_i32_0 : i32, i32
  }
  func.func @transform_11(%arg0: i32) -> (i32, i32) {
    %c0_i32 = arith.constant 0 : i32
    %c0_i32_0 = arith.constant 0 : i32
    %c0_i32_1 = arith.constant 0 : i32
    return %c0_i32, %c0_i32_0 : i32, i32
  }
  func.func @transform_12(%arg0: i32) -> (i32, i32) {
    %c0_i32 = arith.constant 0 : i32
    %c0_i32_0 = arith.constant 0 : i32
    %c0_i32_1 = arith.constant 0 : i32
    return %c0_i32, %c0_i32_0 : i32, i32
  }
  func.func @transform_13(%arg0: i32) -> (i32, i32) {
    %c0_i32 = arith.constant 0 : i32
    %c0_i32_0 = arith.constant 0 : i32
    %c0_i32_1 = arith.constant 0 : i32
    return %c0_i32, %c0_i32_0 : i32, i32
  }
  func.func @transform_14(%arg0: i32) -> (i32, i32) {
    %c0_i32 = arith.constant 0 : i32
    %c0_i32_0 = arith.constant 0 : i32
    %c0_i32_1 = arith.constant 0 : i32
    return %c0_i32, %c0_i32_0 : i32, i32
  }
  func.func @transform_15(%arg0: i32) -> (i32, i32, i32) {
    %c0_i32 = arith.constant 0 : i32
    %c0_i32_0 = arith.constant 0 : i32
    %c0_i32_1 = arith.constant 0 : i32
    return %arg0, %c0_i32, %c0_i32_0 : i32, i32, i32
  }
}

</mosaic_0001>

<llo_original>
// kernel: sub.8
$region0: #{sub.8}
  %s0 = inlined_call_operand.vmem [shape: s32[2,4,4], index: 0, kind: input, shape index: {}]
  %s1 = inlined_call_operand.vmem [shape: s32[2,16], index: 1, kind: output, shape index: {}]
  $region1: #{sub.8} parent=0
    #allocation0 [shape = 'u8[4096]{0}', space=vmem, size = 0x1000, scoped, tag = 'scoped mem for output reshape']
    #allocation1 [shape = 'u8[8192]{0}', space=vmem, size = 0x2000, scoped, tag = 'scoped mem for input reshape']
    %s3 = sshllo.u32 0, 4
    %s4 = scalar_lea.vmem %s0, 4
    %v5 = vld [vmem:[%s4] sm:%s3]
    %s6 = scalar_lea.vmem [#allocation1], 8
    %7 = vst [vmem:[%s6] sm:%s3] %v5
    %v8 = vld [vmem:[%s0] sm:%s3]
    %9 = vst [vmem:[#allocation1] sm:%s3] %v8
    %s10 = smov 3
    %v11 = vld [vmem:[#allocation1] ss:$8 sm:%s10]
    %vm12 = vcmask 31744
    %13 = vst.msk [vmem:[#allocation0] sm:$0x3] %vm12, %v11
    %s14 = scalar_lea.vmem [#allocation1], 3
    %s15 = smov 3
    %v16 = vld [vmem:[%s14] ss:$8 sm:%s15]
    %17 = vrot.lane.b32.xlu0 %v16, 12
    %v18 = vpop.permute.xlu0 %17
    %vm19 = vcmask 130144
    %20 = vst.msk [vmem:[#allocation0] sm:$0x3] %vm19, %v18
    %s21 = scalar_lea.vmem [#allocation1], 2
    %s22 = smov 3
    %v23 = vld [vmem:[%s21] ss:$8 sm:%s22]
    %24 = vrot.lane.b32.xlu0 %v23, 8
    %v25 = vpop.permute.xlu0 %24
    %vm26 = vcmask 97344
    %27 = vst.msk [vmem:[#allocation0] sm:$0x3] %vm26, %v25
    %s28 = scalar_lea.vmem [#allocation1], 1
    %s29 = smov 3
    %v30 = vld [vmem:[%s28] ss:$8 sm:%s29]
    %31 = vrot.lane.b32.xlu0 %v30, 4
    %v32 = vpop.permute.xlu0 %31
    %vm33 = vcmask 64544
    %34 = vst.msk [vmem:[#allocation0] sm:$0x3] %vm33, %v32
    %s36 = sshllo.u32 0, 2
    %v38 = vld [vmem:[#allocation0] sm:%s36]
    %s39 = sshllo.u32 0, 2
    %40 = vst [vmem:[%s1] sm:%s39] %v38

// kernel: transformer_forward.3
$region0: #{transformer_forward.3}
  #allocation0 [shape = 'u32[]', space=smem, size = 0x4, offset = 0x4, fixed_abs, tag = 'smem constant byte address 0x4 - core index']
  #allocation1 [shape = 'u32[144,128]{1,0:T(1,128)}', space=vmem, size = 0x12000, scoped, tag = 'internal scratch']
  %s0 = inlined_call_operand.vmem [shape: f32[2,16,48], index: 0, kind: input, shape index: {}]
  %s1 = inlined_call_operand.vmem [shape: bf16[48,32], index: 1, kind: input, shape index: {}]
  %s2 = inlined_call_operand.vmem [shape: f32[1,32], index: 2, kind: input, shape index: {}]
  %s3 = inlined_call_operand.vmem [shape: f32[1,16,32], index: 3, kind: input, shape index: {}]
  %s4 = inlined_call_operand.vmem [shape: f32[2,16,32], index: 4, kind: output, shape index: {}]
  %s5 = sld [smem:[#allocation0]]
  $region49: #{transformer_forward.3} parent=0
    _
  %s7 = ssub.s32 1, %s5
  %s8 = scalar_select 0, %s7, %s5
  loop: start=0, step=1, limit=4
  $region2: #{transformer_forward.3} parent=0 // loop_pre_header
    _
  $region3: #{transformer_forward.3} parent=0 // loop_header
    %s10 = sphi 0, %s14
    %p11 = scmp.ge.s32.totalorder %s10, 4
    %s20 = sphi 0, %s22
    %s23 = sphi 0, %s20
    %s24 = sphi 0, %s23
    %s40 = sphi 0, %s24
    %s44 = sphi 0, %s44
    %s46 = sphi 0, %s44
    %s47 = sphi 0, %s46
    %s61 = sphi 0, %s47
    %s65 = sphi 0, %s65
    %s67 = sphi 0, %s65
    %s68 = sphi 0, %s67
    %s82 = sphi 0, %s68
    %s86 = sphi 0, %s86
    %s88 = sphi 0, %s86
    %s89 = sphi 0, %s88
    %s103 = sphi 0, %s89
    %s109 = sphi 0, %s111
    %s112 = sphi 0, %s109
    %s113 = sphi 0, %s112
    %s129 = sphi 0, %s113
  $region4: #{transformer_forward.3} parent=0 // loop_header_branch
    %13 = sbr.rel (%p11) target = $region8
  $region5: #{transformer_forward.3} parent=0 // loop_body
    %s15 = ssub.s32 %s10, 1
    %s16 = ssub.s32 %s10, 2
    %s17 = sadd.s32 %s10, 1
    %s18 = ssub.s32 %s10, %s17
    %p19 = scmp.eq.s32.totalorder %s18, 0
    %s21 = sadd.s32 %s20, 1
    %s22 = scalar_select %p19, %s20, %s21
    %p25 = pneg %p19
    %p26 = scmp.eq.s32.totalorder %s10, 1
    %p27 = por %p25, %p26
    %p28 = scmp.ne.s32.totalorder %s20, %s23
    %p29 = scmp.eq.s32.totalorder %s10, 0
    %p30 = por %p28, %p29
    %p31 = scmp.ne.s32.totalorder %s20, %s23
    %p32 = scmp.eq.s32.totalorder %s15, 1
    %p33 = por %p31, %p32
    %p34 = scmp.ne.s32.totalorder %s23, %s24
    %p35 = scmp.eq.s32.totalorder %s15, 0
    %p36 = por %p34, %p35
    %p37 = scmp.ne.s32.totalorder %s23, %s24
    %p38 = scmp.eq.s32.totalorder %s16, 1
    %p39 = por %p37, %p38
    %p41 = scmp.ne.s32.totalorder %s24, %s40
    %p42 = scmp.eq.s32.totalorder %s16, 0
    %p43 = por %p41, %p42
    %s45 = sadd.s32 %s44, 1
    %p48 = scmp.eq.s32.totalorder %s10, 1
    %p49 = scmp.ne.s32.totalorder %s44, %s46
    %p50 = scmp.eq.s32.totalorder %s10, 0
    %p51 = por %p49, %p50
    %p52 = scmp.ne.s32.totalorder %s44, %s46
    %p53 = scmp.eq.s32.totalorder %s15, 1
    %p54 = por %p52, %p53
    %p55 = scmp.ne.s32.totalorder %s46, %s47
    %p56 = scmp.eq.s32.totalorder %s15, 0
    %p57 = por %p55, %p56
    %p58 = scmp.ne.s32.totalorder %s46, %s47
    %p59 = scmp.eq.s32.totalorder %s16, 1
    %p60 = por %p58, %p59
    %p62 = scmp.ne.s32.totalorder %s47, %s61
    %p63 = scmp.eq.s32.totalorder %s16, 0
    %p64 = por %p62, %p63
    %s66 = sadd.s32 %s65, 1
    %p69 = scmp.eq.s32.totalorder %s10, 1
    %p70 = scmp.ne.s32.totalorder %s65, %s67
    %p71 = scmp.eq.s32.totalorder %s10, 0
    %p72 = por %p70, %p71
    %p73 = scmp.ne.s32.totalorder %s65, %s67
    %p74 = scmp.eq.s32.totalorder %s15, 1
    %p75 = por %p73, %p74
    %p76 = scmp.ne.s32.totalorder %s67, %s68
    %p77 = scmp.eq.s32.totalorder %s15, 0
    %p78 = por %p76, %p77
    %p79 = scmp.ne.s32.totalorder %s67, %s68
    %p80 = scmp.eq.s32.totalorder %s16, 1
    %p81 = por %p79, %p80
    %p83 = scmp.ne.s32.totalorder %s68, %s82
    %p84 = scmp.eq.s32.totalorder %s16, 0
    %p85 = por %p83, %p84
    %s87 = sadd.s32 %s86, 1
    %p90 = scmp.eq.s32.totalorder %s10, 1
    %p91 = scmp.ne.s32.totalorder %s86, %s88
    %p92 = scmp.eq.s32.totalorder %s10, 0
    %p93 = por %p91, %p92
    %p94 = scmp.ne.s32.totalorder %s86, %s88
    %p95 = scmp.eq.s32.totalorder %s15, 1
    %p96 = por %p94, %p95
    %p97 = scmp.ne.s32.totalorder %s88, %s89
    %p98 = scmp.eq.s32.totalorder %s15, 0
    %p99 = por %p97, %p98
    %p100 = scmp.ne.s32.totalorder %s88, %s89
    %p101 = scmp.eq.s32.totalorder %s16, 1
    %p102 = por %p100, %p101
    %p104 = scmp.ne.s32.totalorder %s89, %s103
    %p105 = scmp.eq.s32.totalorder %s16, 0
    %p106 = por %p104, %p105
    %s107 = ssub.s32 %s10, %s17
    %p108 = scmp.eq.s32.totalorder %s107, 0
    %s110 = sadd.s32 %s109, 1
    %s111 = scalar_select %p108, %s109, %s110
    %p114 = pneg %p108
    %p115 = scmp.eq.s32.totalorder %s10, 1
    %p116 = por %p114, %p115
    %p117 = scmp.ne.s32.totalorder %s109, %s112
    %p118 = scmp.eq.s32.totalorder %s10, 0
    %p119 = por %p117, %p118
    %p120 = scmp.ne.s32.totalorder %s109, %s112
    %p121 = scmp.eq.s32.totalorder %s15, 1
    %p122 = por %p120, %p121
    %p123 = scmp.ne.s32.totalorder %s112, %s113
    %p124 = scmp.eq.s32.totalorder %s15, 0
    %p125 = por %p123, %p124
    %p126 = scmp.ne.s32.totalorder %s112, %s113
    %p127 = scmp.eq.s32.totalorder %s16, 1
    %p128 = por %p126, %p127
    %p130 = scmp.ne.s32.totalorder %s113, %s129
    %p131 = scmp.eq.s32.totalorder %s16, 0
    %p132 = por %p130, %p131
    %p133 = scmp.le.s32.totalorder 1, %s10
    %p134 = scmp.lt.s32.totalorder %s10, 3
    %p135 = pnand %p133, %p134
    %p136 = pneg %p135
    // Predicated region
    $region9: #{transformer_forward.3} parent=5 // pred_check
      _
    $region10: #{transformer_forward.3} parent=5 // pred_check_branch
      %138 = sbr.rel (%p135) target = $region12
    $region11: #{transformer_forward.3} parent=5 // pred_region
      %s139 = ssub.s32 %s10, 1
      // Predicated region
      $region13: #{transformer_forward.3} parent=11 // pred_check
        %p140 = pneg %p57
      $region14: #{transformer_forward.3} parent=11 // pred_check_branch
        %142 = sbr.rel (%p140) target = $region16
      $region15: #{transformer_forward.3} parent=11 // pred_region
        _
      $region16: #{transformer_forward.3} parent=11 // pred_fallthru
        _
      // Predicated region
      $region17: #{transformer_forward.3} parent=11 // pred_check
        %p143 = pneg %p78
      $region18: #{transformer_forward.3} parent=11 // pred_check_branch
        %145 = sbr.rel (%p143) target = $region20
      $region19: #{transformer_forward.3} parent=11 // pred_region
        _
      $region20: #{transformer_forward.3} parent=11 // pred_fallthru
        _
      // Predicated region
      $region21: #{transformer_forward.3} parent=11 // pred_check
        %p146 = pneg %p99
      $region22: #{transformer_forward.3} parent=11 // pred_check_branch
        %148 = sbr.rel (%p146) target = $region24
      $region23: #{transformer_forward.3} parent=11 // pred_region
        _
      $region24: #{transformer_forward.3} parent=11 // pred_fallthru
        _
    $region12: #{transformer_forward.3} parent=5 // pred_fallthru
      _
    %p149 = scmp.lt.s32.totalorder %s10, 2
    // Predicated region
    $region25: #{transformer_forward.3} parent=5 // pred_check
      %p150 = pneg %p149
    $region26: #{transformer_forward.3} parent=5 // pred_check_branch
      %152 = sbr.rel (%p150) target = $region28
    $region27: #{transformer_forward.3} parent=5 // pred_region
      // Predicated region
      $region29: #{transformer_forward.3} parent=27 // pred_check
        %p153 = pneg %p30
      $region30: #{transformer_forward.3} parent=27 // pred_check_branch
        %155 = sbr.rel (%p153) target = $region32
      $region31: #{transformer_forward.3} parent=27 // pred_region
        %p156 = scmp.lt.s32.totalorder %s10, 1
        %s157 = scalar_select %p156, %s10, 1
        %s158 = smul.addr %s157, 2
        %s159 = smul.addr %s158, 8
        %s160 = scalar_lea.vmem %s0, %s159
      $region32: #{transformer_forward.3} parent=27 // pred_fallthru
        _
    $region28: #{transformer_forward.3} parent=5 // pred_fallthru
      _
    %p161 = scmp.le.s32.totalorder 1, %s10
    %p162 = scmp.lt.s32.totalorder %s10, 3
    %p163 = pnand %p161, %p162
    %p164 = pneg %p163
    // Predicated region
    $region33: #{transformer_forward.3} parent=5 // pred_check
      _
    $region34: #{transformer_forward.3} parent=5 // pred_check_branch
      %166 = sbr.rel (%p163) target = $region36
    $region35: #{transformer_forward.3} parent=5 // pred_region
      %s167 = ssub.s32 %s10, 1
      %p168 = scmp.lt.s32.totalorder %s15, 1
      %s169 = scalar_select %p168, %s15, 1
      %s170 = smul.addr %s169, 2
      %s171 = smul.addr %s170, 8
      %s172 = scalar_lea.vmem %s0, %s171
      %p173 = pneg %p36
      %p174 = pneg %p33
      %p175 = pneg %p57
      %p176 = pneg %p54
      %p177 = pneg %p78
      %p178 = pneg %p75
      %p179 = pneg %p99
      %p180 = pneg %p96
      %p181 = pneg %p125
      %p182 = pneg %p122
      %p183 = scmp.lt.s32.totalorder %s15, 1
      %s184 = scalar_select %p183, %s15, 1
      %s185 = smul.addr %s184, 2
      %s186 = smul.addr %s185, 8
      %s187 = scalar_lea.vmem %s4, %s186
      %p188 = scmp.lt.s32.totalorder %s15, 1
      %s189 = scalar_select %p188, %s15, 1
      %s190 = smul.addr %s189, 2
      %s191 = smul.addr %s190, 8
      %s192 = scalar_lea.vmem %s0, %s191
      %p193 = scmp.lt.s32.totalorder %s15, 1
      %s194 = scalar_select %p193, %s15, 1
      %s195 = smul.addr %s194, 2
      %s196 = smul.addr %s195, 8
      %s197 = scalar_lea.vmem %s4, %s196
      %v199 = vld [vmem:[%s192] sm:$0xff]
      %v200 = vld [vmem:[%s192 + $0x8] sm:$0xff]
      %v201 = vpack.c.bf16 %v200, %v199
      %v202 = vld [vmem:[%s1] sm:$0xf]
      %v203 = vld [vmem:[%s1 + $0x4] sm:$0xf]
      %v204 = vld [vmem:[%s1 + $0x8] sm:$0xf]
      %v205 = vld [vmem:[%s1 + $0xc] sm:$0xf]
      %v206 = vld [vmem:[%s1 + $0x10] sm:$0xf]
      %v207 = vld [vmem:[%s1 + $0x14] sm:$0xf]
      %v208 = vld [vmem:[%s2] sm:$0x1]
      %v210 = vlaneseq
      %v211 = vshrl.u32 %v210, 7
      %v212 = vsub.s32 0, %v211
      %v213 = vrot.slane %v208, %v212
      %v221 = vunpack.c.l.b16 %v202
      %v222 = vunpack.c.l.b16 %v203
      %v223 = vunpack.c.l.b16 %v204
      %v224 = vunpack.c.l.b16 %v205
      %v225 = vunpack.c.l.b16 %v206
      %v226 = vunpack.c.l.b16 %v207
      %v227 = vpack.c.b16 %v222, %v221
      %v228 = vpack.c.b16 %v224, %v223
      %v229 = vpack.c.b16 %v226, %v225
      %vm233 = vcmask 392192
      %v235 = vsel %vm233, %v201, 0
      %237 = vmatprep.subr.bf16.mxu0 0
      %238 = vmatpush1.bf16.msra.mxu0 %v227
      %239 = vmatprep.subr.bf16.mxu0 0
      %240 = vmatpush1.bf16.msra.mxu0 %v228
      %241 = vmatprep.subr.bf16.mxu0 0
      %242 = vmatpush1.bf16.msra.mxu0 %v229
      %243 = vmatprep.subr.bf16.mxu0 0
      %244 = vmatpush1.bf16.msra.mxu0 0
      %245 = vmatprep.subr.bf16.mxu0 0
      %246 = vmatpush1.bf16.msra.mxu0 0
      %247 = vmatprep.subr.bf16.mxu0 0
      %248 = vmatpush1.bf16.msra.mxu0 0
      %249 = vmatprep.subr.bf16.mxu0 0
      %250 = vmatpush1.bf16.msra.mxu0 0
      %251 = vmatprep.subr.bf16.mxu0 0
      %252 = vmatpush1.bf16.msra.mxu0 0
      %253 = vmatprep.subr.bf16.mxu0 0
      %254 = vmatpush1.bf16.msra.mxu0 0
      %255 = vmatprep.subr.bf16.mxu0 0
      %256 = vmatpush1.bf16.msra.mxu0 0
      %257 = vmatprep.subr.bf16.mxu0 0
      %258 = vmatpush1.bf16.msra.mxu0 0
      %259 = vmatprep.subr.bf16.mxu0 0
      %260 = vmatpush1.bf16.msra.mxu0 0
      %261 = vmatprep.subr.bf16.mxu0 0
      %262 = vmatpush1.bf16.msra.mxu0 0
      %263 = vmatprep.subr.bf16.mxu0 0
      %264 = vmatpush1.bf16.msra.mxu0 0
      %265 = vmatprep.subr.bf16.mxu0 0
      %266 = vmatpush1.bf16.msra.mxu0 0
      %267 = vmatprep.subr.bf16.mxu0 0
      %268 = vmatpush1.bf16.msra.mxu0 0
      %269 = vmatprep.mubr.bf16.mxu0 0
      %270 = vmatmul.mubr.bf16.gmra.mrb[0].mxu0 %v235
      %v271 = vpop.f32.mrb[0].mxu0
      %v272 = vadd.f32 %v213, %v271
      %v273 = vpop.f32.mrb[0].mxu0
      %v274 = vpop.f32.mrb[0].mxu0
      %v275 = vadd.f32 %v213, %v274
      %v276 = vpop.f32.mrb[0].mxu0
      %277 = vdwg.mxu0
      %v278 = vld [vmem:[%s3] sm:$0xff]
      %v279 = vld [vmem:[%s3 + $0x8] sm:$0xff]
      %v280 = vadd.f32 %v272, %v278
      %v281 = vadd.f32 %v275, %v279
      %vm282 = vcmask 261120
      %283 = vst.msk [vmem:[%s197] sm:$0xff] %vm282, %v280
      %284 = vst.msk [vmem:[%s197 + $0x8] sm:$0xff] %vm282, %v281
      %p285 = scmp.lt.s32.totalorder %s15, 1
      %s286 = scalar_select %p285, %s15, 1
      %s287 = smul.addr %s286, 2
      %s288 = smul.addr %s287, 8
      %s289 = scalar_lea.vmem %s4, %s288
      // Predicated region
      $region37: #{transformer_forward.3} parent=35 // pred_check
        %p290 = pneg %p122
      $region38: #{transformer_forward.3} parent=35 // pred_check_branch
        %292 = sbr.rel (%p290) target = $region40
      $region39: #{transformer_forward.3} parent=35 // pred_region
        _
      $region40: #{transformer_forward.3} parent=35 // pred_fallthru
        _
    $region36: #{transformer_forward.3} parent=5 // pred_fallthru
      _
    %p293 = scmp.le.s32.totalorder 2, %s10
    // Predicated region
    $region41: #{transformer_forward.3} parent=5 // pred_check
      %p294 = pneg %p293
    $region42: #{transformer_forward.3} parent=5 // pred_check_branch
      %296 = sbr.rel (%p294) target = $region44
    $region43: #{transformer_forward.3} parent=5 // pred_region
      %s297 = ssub.s32 %s10, 2
      // Predicated region
      $region45: #{transformer_forward.3} parent=43 // pred_check
        %p298 = pneg %p128
      $region46: #{transformer_forward.3} parent=43 // pred_check_branch
        %300 = sbr.rel (%p298) target = $region48
      $region47: #{transformer_forward.3} parent=43 // pred_region
        %p301 = scmp.lt.s32.totalorder %s16, 1
        %s302 = scalar_select %p301, %s16, 1
        %s303 = smul.addr %s302, 2
        %s304 = smul.addr %s303, 8
        %s305 = scalar_lea.vmem %s4, %s304
      $region48: #{transformer_forward.3} parent=43 // pred_fallthru
        _
    $region44: #{transformer_forward.3} parent=5 // pred_fallthru
      _
  $region6: #{transformer_forward.3} parent=0 // loop_footer
    %s14 = sadd.s32 1, %s10
  $region7: #{transformer_forward.3} parent=0 // loop_footer_branch
    %9 = sbr.rel target = $region3
  $region8: #{transformer_forward.3} parent=0 // loop_exit
    _

// kernel: transformer_forward.4
$region0: #{transformer_forward.4}
  #allocation0 [shape = 'u32[]', space=smem, size = 0x4, offset = 0x4, fixed_abs, tag = 'smem constant byte address 0x4 - core index']
  #allocation1 [shape = 'u32[144,128]{1,0:T(1,128)}', space=vmem, size = 0x12000, scoped, tag = 'internal scratch']
  %s0 = inlined_call_operand.vmem [shape: f32[2,16,32], index: 0, kind: input, shape index: {}]
  %s1 = inlined_call_operand.vmem [shape: f32[1,32], index: 1, kind: input, shape index: {}]
  %s2 = inlined_call_operand.vmem [shape: f32[1,32], index: 2, kind: input, shape index: {}]
  %s3 = inlined_call_operand.vmem [shape: bf16[32,96], index: 3, kind: input, shape index: {}]
  %s4 = inlined_call_operand.vmem [shape: f32[1,96], index: 4, kind: input, shape index: {}]
  %s5 = inlined_call_operand.vmem [shape: bf16[32,32], index: 5, kind: input, shape index: {}]
  %s6 = inlined_call_operand.vmem [shape: f32[1,32], index: 6, kind: input, shape index: {}]
  %s7 = inlined_call_operand.vmem [shape: f32[1,32], index: 7, kind: input, shape index: {}]
  %s8 = inlined_call_operand.vmem [shape: f32[1,32], index: 8, kind: input, shape index: {}]
  %s9 = inlined_call_operand.vmem [shape: bf16[32,64], index: 9, kind: input, shape index: {}]
  %s10 = inlined_call_operand.vmem [shape: f32[1,64], index: 10, kind: input, shape index: {}]
  %s11 = inlined_call_operand.vmem [shape: bf16[64,32], index: 11, kind: input, shape index: {}]
  %s12 = inlined_call_operand.vmem [shape: f32[1,32], index: 12, kind: input, shape index: {}]
  %s13 = inlined_call_operand.vmem [shape: f32[1,4], index: 13, kind: input, shape index: {}]
  %s14 = inlined_call_operand.vmem [shape: f32[16,16], index: 14, kind: input, shape index: {}]
  %s15 = inlined_call_operand.vmem [shape: f32[2,16,32], index: 15, kind: output, shape index: {}]
  %s16 = sld [smem:[#allocation0]]
  $region93: #{transformer_forward.4} parent=0
    _
  %s18 = ssub.s32 1, %s16
  %s19 = scalar_select 0, %s18, %s16
  loop: start=0, step=1, limit=4
  $region2: #{transformer_forward.4} parent=0 // loop_pre_header
    _
  $region3: #{transformer_forward.4} parent=0 // loop_header
    %s21 = sphi 0, %s25
    %p22 = scmp.ge.s32.totalorder %s21, 4
    %s31 = sphi 0, %s33
    %s34 = sphi 0, %s31
    %s35 = sphi 0, %s34
    %s51 = sphi 0, %s35
    %s55 = sphi 0, %s55
    %s57 = sphi 0, %s55
    %s58 = sphi 0, %s57
    %s72 = sphi 0, %s58
    %s76 = sphi 0, %s76
    %s78 = sphi 0, %s76
    %s79 = sphi 0, %s78
    %s93 = sphi 0, %s79
    %s97 = sphi 0, %s97
    %s99 = sphi 0, %s97
    %s100 = sphi 0, %s99
    %s114 = sphi 0, %s100
    %s118 = sphi 0, %s118
    %s120 = sphi 0, %s118
    %s121 = sphi 0, %s120
    %s135 = sphi 0, %s121
    %s139 = sphi 0, %s139
    %s141 = sphi 0, %s139
    %s142 = sphi 0, %s141
    %s156 = sphi 0, %s142
    %s160 = sphi 0, %s160
    %s162 = sphi 0, %s160
    %s163 = sphi 0, %s162
    %s177 = sphi 0, %s163
    %s181 = sphi 0, %s181
    %s183 = sphi 0, %s181
    %s184 = sphi 0, %s183
    %s198 = sphi 0, %s184
    %s202 = sphi 0, %s202
    %s204 = sphi 0, %s202
    %s205 = sphi 0, %s204
    %s219 = sphi 0, %s205
    %s223 = sphi 0, %s223
    %s225 = sphi 0, %s223
    %s226 = sphi 0, %s225
    %s240 = sphi 0, %s226
    %s244 = sphi 0, %s244
    %s246 = sphi 0, %s244
    %s247 = sphi 0, %s246
    %s261 = sphi 0, %s247
    %s265 = sphi 0, %s265
    %s267 = sphi 0, %s265
    %s268 = sphi 0, %s267
    %s282 = sphi 0, %s268
    %s286 = sphi 0, %s286
    %s288 = sphi 0, %s286
    %s289 = sphi 0, %s288
    %s303 = sphi 0, %s289
    %s307 = sphi 0, %s307
    %s309 = sphi 0, %s307
    %s310 = sphi 0, %s309
    %s324 = sphi 0, %s310
    %s328 = sphi 0, %s328
    %s330 = sphi 0, %s328
    %s331 = sphi 0, %s330
    %s345 = sphi 0, %s331
    %s351 = sphi 0, %s353
    %s354 = sphi 0, %s351
    %s355 = sphi 0, %s354
    %s371 = sphi 0, %s355
  $region4: #{transformer_forward.4} parent=0 // loop_header_branch
    %24 = sbr.rel (%p22) target = $region8
  $region5: #{transformer_forward.4} parent=0 // loop_body
    %s26 = ssub.s32 %s21, 1
    %s27 = ssub.s32 %s21, 2
    %s28 = sadd.s32 %s21, 1
    %s29 = ssub.s32 %s21, %s28
    %p30 = scmp.eq.s32.totalorder %s29, 0
    %s32 = sadd.s32 %s31, 1
    %s33 = scalar_select %p30, %s31, %s32
    %p36 = pneg %p30
    %p37 = scmp.eq.s32.totalorder %s21, 1
    %p38 = por %p36, %p37
    %p39 = scmp.ne.s32.totalorder %s31, %s34
    %p40 = scmp.eq.s32.totalorder %s21, 0
    %p41 = por %p39, %p40
    %p42 = scmp.ne.s32.totalorder %s31, %s34
    %p43 = scmp.eq.s32.totalorder %s26, 1
    %p44 = por %p42, %p43
    %p45 = scmp.ne.s32.totalorder %s34, %s35
    %p46 = scmp.eq.s32.totalorder %s26, 0
    %p47 = por %p45, %p46
    %p48 = scmp.ne.s32.totalorder %s34, %s35
    %p49 = scmp.eq.s32.totalorder %s27, 1
    %p50 = por %p48, %p49
    %p52 = scmp.ne.s32.totalorder %s35, %s51
    %p53 = scmp.eq.s32.totalorder %s27, 0
    %p54 = por %p52, %p53
    %s56 = sadd.s32 %s55, 1
    %p59 = scmp.eq.s32.totalorder %s21, 1
    %p60 = scmp.ne.s32.totalorder %s55, %s57
    %p61 = scmp.eq.s32.totalorder %s21, 0
    %p62 = por %p60, %p61
    %p63 = scmp.ne.s32.totalorder %s55, %s57
    %p64 = scmp.eq.s32.totalorder %s26, 1
    %p65 = por %p63, %p64
    %p66 = scmp.ne.s32.totalorder %s57, %s58
    %p67 = scmp.eq.s32.totalorder %s26, 0
    %p68 = por %p66, %p67
    %p69 = scmp.ne.s32.totalorder %s57, %s58
    %p70 = scmp.eq.s32.totalorder %s27, 1
    %p71 = por %p69, %p70
    %p73 = scmp.ne.s32.totalorder %s58, %s72
    %p74 = scmp.eq.s32.totalorder %s27, 0
    %p75 = por %p73, %p74
    %s77 = sadd.s32 %s76, 1
    %p80 = scmp.eq.s32.totalorder %s21, 1
    %p81 = scmp.ne.s32.totalorder %s76, %s78
    %p82 = scmp.eq.s32.totalorder %s21, 0
    %p83 = por %p81, %p82
    %p84 = scmp.ne.s32.totalorder %s76, %s78
    %p85 = scmp.eq.s32.totalorder %s26, 1
    %p86 = por %p84, %p85
    %p87 = scmp.ne.s32.totalorder %s78, %s79
    %p88 = scmp.eq.s32.totalorder %s26, 0
    %p89 = por %p87, %p88
    %p90 = scmp.ne.s32.totalorder %s78, %s79
    %p91 = scmp.eq.s32.totalorder %s27, 1
    %p92 = por %p90, %p91
    %p94 = scmp.ne.s32.totalorder %s79, %s93
    %p95 = scmp.eq.s32.totalorder %s27, 0
    %p96 = por %p94, %p95
    %s98 = sadd.s32 %s97, 1
    %p101 = scmp.eq.s32.totalorder %s21, 1
    %p102 = scmp.ne.s32.totalorder %s97, %s99
    %p103 = scmp.eq.s32.totalorder %s21, 0
    %p104 = por %p102, %p103
    %p105 = scmp.ne.s32.totalorder %s97, %s99
    %p106 = scmp.eq.s32.totalorder %s26, 1
    %p107 = por %p105, %p106
    %p108 = scmp.ne.s32.totalorder %s99, %s100
    %p109 = scmp.eq.s32.totalorder %s26, 0
    %p110 = por %p108, %p109
    %p111 = scmp.ne.s32.totalorder %s99, %s100
    %p112 = scmp.eq.s32.totalorder %s27, 1
    %p113 = por %p111, %p112
    %p115 = scmp.ne.s32.totalorder %s100, %s114
    %p116 = scmp.eq.s32.totalorder %s27, 0
    %p117 = por %p115, %p116
    %s119 = sadd.s32 %s118, 1
    %p122 = scmp.eq.s32.totalorder %s21, 1
    %p123 = scmp.ne.s32.totalorder %s118, %s120
    %p124 = scmp.eq.s32.totalorder %s21, 0
    %p125 = por %p123, %p124
    %p126 = scmp.ne.s32.totalorder %s118, %s120
    %p127 = scmp.eq.s32.totalorder %s26, 1
    %p128 = por %p126, %p127
    %p129 = scmp.ne.s32.totalorder %s120, %s121
    %p130 = scmp.eq.s32.totalorder %s26, 0
    %p131 = por %p129, %p130
    %p132 = scmp.ne.s32.totalorder %s120, %s121
    %p133 = scmp.eq.s32.totalorder %s27, 1
    %p134 = por %p132, %p133
    %p136 = scmp.ne.s32.totalorder %s121, %s135
    %p137 = scmp.eq.s32.totalorder %s27, 0
    %p138 = por %p136, %p137
    %s140 = sadd.s32 %s139, 1
    %p143 = scmp.eq.s32.totalorder %s21, 1
    %p144 = scmp.ne.s32.totalorder %s139, %s141
    %p145 = scmp.eq.s32.totalorder %s21, 0
    %p146 = por %p144, %p145
    %p147 = scmp.ne.s32.totalorder %s139, %s141
    %p148 = scmp.eq.s32.totalorder %s26, 1
    %p149 = por %p147, %p148
    %p150 = scmp.ne.s32.totalorder %s141, %s142
    %p151 = scmp.eq.s32.totalorder %s26, 0
    %p152 = por %p150, %p151
    %p153 = scmp.ne.s32.totalorder %s141, %s142
    %p154 = scmp.eq.s32.totalorder %s27, 1
    %p155 = por %p153, %p154
    %p157 = scmp.ne.s32.totalorder %s142, %s156
    %p158 = scmp.eq.s32.totalorder %s27, 0
    %p159 = por %p157, %p158
    %s161 = sadd.s32 %s160, 1
    %p164 = scmp.eq.s32.totalorder %s21, 1
    %p165 = scmp.ne.s32.totalorder %s160, %s162
    %p166 = scmp.eq.s32.totalorder %s21, 0
    %p167 = por %p165, %p166
    %p168 = scmp.ne.s32.totalorder %s160, %s162
    %p169 = scmp.eq.s32.totalorder %s26, 1
    %p170 = por %p168, %p169
    %p171 = scmp.ne.s32.totalorder %s162, %s163
    %p172 = scmp.eq.s32.totalorder %s26, 0
    %p173 = por %p171, %p172
    %p174 = scmp.ne.s32.totalorder %s162, %s163
    %p175 = scmp.eq.s32.totalorder %s27, 1
    %p176 = por %p174, %p175
    %p178 = scmp.ne.s32.totalorder %s163, %s177
    %p179 = scmp.eq.s32.totalorder %s27, 0
    %p180 = por %p178, %p179
    %s182 = sadd.s32 %s181, 1
    %p185 = scmp.eq.s32.totalorder %s21, 1
    %p186 = scmp.ne.s32.totalorder %s181, %s183
    %p187 = scmp.eq.s32.totalorder %s21, 0
    %p188 = por %p186, %p187
    %p189 = scmp.ne.s32.totalorder %s181, %s183
    %p190 = scmp.eq.s32.totalorder %s26, 1
    %p191 = por %p189, %p190
    %p192 = scmp.ne.s32.totalorder %s183, %s184
    %p193 = scmp.eq.s32.totalorder %s26, 0
    %p194 = por %p192, %p193
    %p195 = scmp.ne.s32.totalorder %s183, %s184
    %p196 = scmp.eq.s32.totalorder %s27, 1
    %p197 = por %p195, %p196
    %p199 = scmp.ne.s32.totalorder %s184, %s198
    %p200 = scmp.eq.s32.totalorder %s27, 0
    %p201 = por %p199, %p200
    %s203 = sadd.s32 %s202, 1
    %p206 = scmp.eq.s32.totalorder %s21, 1
    %p207 = scmp.ne.s32.totalorder %s202, %s204
    %p208 = scmp.eq.s32.totalorder %s21, 0
    %p209 = por %p207, %p208
    %p210 = scmp.ne.s32.totalorder %s202, %s204
    %p211 = scmp.eq.s32.totalorder %s26, 1
    %p212 = por %p210, %p211
    %p213 = scmp.ne.s32.totalorder %s204, %s205
    %p214 = scmp.eq.s32.totalorder %s26, 0
    %p215 = por %p213, %p214
    %p216 = scmp.ne.s32.totalorder %s204, %s205
    %p217 = scmp.eq.s32.totalorder %s27, 1
    %p218 = por %p216, %p217
    %p220 = scmp.ne.s32.totalorder %s205, %s219
    %p221 = scmp.eq.s32.totalorder %s27, 0
    %p222 = por %p220, %p221
    %s224 = sadd.s32 %s223, 1
    %p227 = scmp.eq.s32.totalorder %s21, 1
    %p228 = scmp.ne.s32.totalorder %s223, %s225
    %p229 = scmp.eq.s32.totalorder %s21, 0
    %p230 = por %p228, %p229
    %p231 = scmp.ne.s32.totalorder %s223, %s225
    %p232 = scmp.eq.s32.totalorder %s26, 1
    %p233 = por %p231, %p232
    %p234 = scmp.ne.s32.totalorder %s225, %s226
    %p235 = scmp.eq.s32.totalorder %s26, 0
    %p236 = por %p234, %p235
    %p237 = scmp.ne.s32.totalorder %s225, %s226
    %p238 = scmp.eq.s32.totalorder %s27, 1
    %p239 = por %p237, %p238
    %p241 = scmp.ne.s32.totalorder %s226, %s240
    %p242 = scmp.eq.s32.totalorder %s27, 0
    %p243 = por %p241, %p242
    %s245 = sadd.s32 %s244, 1
    %p248 = scmp.eq.s32.totalorder %s21, 1
    %p249 = scmp.ne.s32.totalorder %s244, %s246
    %p250 = scmp.eq.s32.totalorder %s21, 0
    %p251 = por %p249, %p250
    %p252 = scmp.ne.s32.totalorder %s244, %s246
    %p253 = scmp.eq.s32.totalorder %s26, 1
    %p254 = por %p252, %p253
    %p255 = scmp.ne.s32.totalorder %s246, %s247
    %p256 = scmp.eq.s32.totalorder %s26, 0
    %p257 = por %p255, %p256
    %p258 = scmp.ne.s32.totalorder %s246, %s247
    %p259 = scmp.eq.s32.totalorder %s27, 1
    %p260 = por %p258, %p259
    %p262 = scmp.ne.s32.totalorder %s247, %s261
    %p263 = scmp.eq.s32.totalorder %s27, 0
    %p264 = por %p262, %p263
    %s266 = sadd.s32 %s265, 1
    %p269 = scmp.eq.s32.totalorder %s21, 1
    %p270 = scmp.ne.s32.totalorder %s265, %s267
    %p271 = scmp.eq.s32.totalorder %s21, 0
    %p272 = por %p270, %p271
    %p273 = scmp.ne.s32.totalorder %s265, %s267
    %p274 = scmp.eq.s32.totalorder %s26, 1
    %p275 = por %p273, %p274
    %p276 = scmp.ne.s32.totalorder %s267, %s268
    %p277 = scmp.eq.s32.totalorder %s26, 0
    %p278 = por %p276, %p277
    %p279 = scmp.ne.s32.totalorder %s267, %s268
    %p280 = scmp.eq.s32.totalorder %s27, 1
    %p281 = por %p279, %p280
    %p283 = scmp.ne.s32.totalorder %s268, %s282
    %p284 = scmp.eq.s32.totalorder %s27, 0
    %p285 = por %p283, %p284
    %s287 = sadd.s32 %s286, 1
    %p290 = scmp.eq.s32.totalorder %s21, 1
    %p291 = scmp.ne.s32.totalorder %s286, %s288
    %p292 = scmp.eq.s32.totalorder %s21, 0
    %p293 = por %p291, %p292
    %p294 = scmp.ne.s32.totalorder %s286, %s288
    %p295 = scmp.eq.s32.totalorder %s26, 1
    %p296 = por %p294, %p295
    %p297 = scmp.ne.s32.totalorder %s288, %s289
    %p298 = scmp.eq.s32.totalorder %s26, 0
    %p299 = por %p297, %p298
    %p300 = scmp.ne.s32.totalorder %s288, %s289
    %p301 = scmp.eq.s32.totalorder %s27, 1
    %p302 = por %p300, %p301
    %p304 = scmp.ne.s32.totalorder %s289, %s303
    %p305 = scmp.eq.s32.totalorder %s27, 0
    %p306 = por %p304, %p305
    %s308 = sadd.s32 %s307, 1
    %p311 = scmp.eq.s32.totalorder %s21, 1
    %p312 = scmp.ne.s32.totalorder %s307, %s309
    %p313 = scmp.eq.s32.totalorder %s21, 0
    %p314 = por %p312, %p313
    %p315 = scmp.ne.s32.totalorder %s307, %s309
    %p316 = scmp.eq.s32.totalorder %s26, 1
    %p317 = por %p315, %p316
    %p318 = scmp.ne.s32.totalorder %s309, %s310
    %p319 = scmp.eq.s32.totalorder %s26, 0
    %p320 = por %p318, %p319
    %p321 = scmp.ne.s32.totalorder %s309, %s310
    %p322 = scmp.eq.s32.totalorder %s27, 1
    %p323 = por %p321, %p322
    %p325 = scmp.ne.s32.totalorder %s310, %s324
    %p326 = scmp.eq.s32.totalorder %s27, 0
    %p327 = por %p325, %p326
    %s329 = sadd.s32 %s328, 1
    %p332 = scmp.eq.s32.totalorder %s21, 1
    %p333 = scmp.ne.s32.totalorder %s328, %s330
    %p334 = scmp.eq.s32.totalorder %s21, 0
    %p335 = por %p333, %p334
    %p336 = scmp.ne.s32.totalorder %s328, %s330
    %p337 = scmp.eq.s32.totalorder %s26, 1
    %p338 = por %p336, %p337
    %p339 = scmp.ne.s32.totalorder %s330, %s331
    %p340 = scmp.eq.s32.totalorder %s26, 0
    %p341 = por %p339, %p340
    %p342 = scmp.ne.s32.totalorder %s330, %s331
    %p343 = scmp.eq.s32.totalorder %s27, 1
    %p344 = por %p342, %p343
    %p346 = scmp.ne.s32.totalorder %s331, %s345
    %p347 = scmp.eq.s32.totalorder %s27, 0
    %p348 = por %p346, %p347
    %s349 = ssub.s32 %s21, %s28
    %p350 = scmp.eq.s32.totalorder %s349, 0
    %s352 = sadd.s32 %s351, 1
    %s353 = scalar_select %p350, %s351, %s352
    %p356 = pneg %p350
    %p357 = scmp.eq.s32.totalorder %s21, 1
    %p358 = por %p356, %p357
    %p359 = scmp.ne.s32.totalorder %s351, %s354
    %p360 = scmp.eq.s32.totalorder %s21, 0
    %p361 = por %p359, %p360
    %p362 = scmp.ne.s32.totalorder %s351, %s354
    %p363 = scmp.eq.s32.totalorder %s26, 1
    %p364 = por %p362, %p363
    %p365 = scmp.ne.s32.totalorder %s354, %s355
    %p366 = scmp.eq.s32.totalorder %s26, 0
    %p367 = por %p365, %p366
    %p368 = scmp.ne.s32.totalorder %s354, %s355
    %p369 = scmp.eq.s32.totalorder %s27, 1
    %p370 = por %p368, %p369
    %p372 = scmp.ne.s32.totalorder %s355, %s371
    %p373 = scmp.eq.s32.totalorder %s27, 0
    %p374 = por %p372, %p373
    %p375 = scmp.le.s32.totalorder 1, %s21
    %p376 = scmp.lt.s32.totalorder %s21, 3
    %p377 = pnand %p375, %p376
    %p378 = pneg %p377
    // Predicated region
    $region9: #{transformer_forward.4} parent=5 // pred_check
      _
    $region10: #{transformer_forward.4} parent=5 // pred_check_branch
      %380 = sbr.rel (%p377) target = $region12
    $region11: #{transformer_forward.4} parent=5 // pred_region
      %s381 = ssub.s32 %s21, 1
      // Predicated region
      $region13: #{transformer_forward.4} parent=11 // pred_check
        %p382 = pneg %p68
      $region14: #{transformer_forward.4} parent=11 // pred_check_branch
        %384 = sbr.rel (%p382) target = $region16
      $region15: #{transformer_forward.4} parent=11 // pred_region
        _
      $region16: #{transformer_forward.4} parent=11 // pred_fallthru
        _
      // Predicated region
      $region17: #{transformer_forward.4} parent=11 // pred_check
        %p385 = pneg %p89
      $region18: #{transformer_forward.4} parent=11 // pred_check_branch
        %387 = sbr.rel (%p385) target = $region20
      $region19: #{transformer_forward.4} parent=11 // pred_region
        _
      $region20: #{transformer_forward.4} parent=11 // pred_fallthru
        _
      // Predicated region
      $region21: #{transformer_forward.4} parent=11 // pred_check
        %p388 = pneg %p110
      $region22: #{transformer_forward.4} parent=11 // pred_check_branch
        %390 = sbr.rel (%p388) target = $region24
      $region23: #{transformer_forward.4} parent=11 // pred_region
        _
      $region24: #{transformer_forward.4} parent=11 // pred_fallthru
        _
      // Predicated region
      $region25: #{transformer_forward.4} parent=11 // pred_check
        %p391 = pneg %p131
      $region26: #{transformer_forward.4} parent=11 // pred_check_branch
        %393 = sbr.rel (%p391) target = $region28
      $region27: #{transformer_forward.4} parent=11 // pred_region
        _
      $region28: #{transformer_forward.4} parent=11 // pred_fallthru
        _
      // Predicated region
      $region29: #{transformer_forward.4} parent=11 // pred_check
        %p394 = pneg %p152
      $region30: #{transformer_forward.4} parent=11 // pred_check_branch
        %396 = sbr.rel (%p394) target = $region32
      $region31: #{transformer_forward.4} parent=11 // pred_region
        _
      $region32: #{transformer_forward.4} parent=11 // pred_fallthru
        _
      // Predicated region
      $region33: #{transformer_forward.4} parent=11 // pred_check
        %p397 = pneg %p173
      $region34: #{transformer_forward.4} parent=11 // pred_check_branch
        %399 = sbr.rel (%p397) target = $region36
      $region35: #{transformer_forward.4} parent=11 // pred_region
        _
      $region36: #{transformer_forward.4} parent=11 // pred_fallthru
        _
      // Predicated region
      $region37: #{transformer_forward.4} parent=11 // pred_check
        %p400 = pneg %p194
      $region38: #{transformer_forward.4} parent=11 // pred_check_branch
        %402 = sbr.rel (%p400) target = $region40
      $region39: #{transformer_forward.4} parent=11 // pred_region
        _
      $region40: #{transformer_forward.4} parent=11 // pred_fallthru
        _
      // Predicated region
      $region41: #{transformer_forward.4} parent=11 // pred_check
        %p403 = pneg %p215
      $region42: #{transformer_forward.4} parent=11 // pred_check_branch
        %405 = sbr.rel (%p403) target = $region44
      $region43: #{transformer_forward.4} parent=11 // pred_region
        _
      $region44: #{transformer_forward.4} parent=11 // pred_fallthru
        _
      // Predicated region
      $region45: #{transformer_forward.4} parent=11 // pred_check
        %p406 = pneg %p236
      $region46: #{transformer_forward.4} parent=11 // pred_check_branch
        %408 = sbr.rel (%p406) target = $region48
      $region47: #{transformer_forward.4} parent=11 // pred_region
        _
      $region48: #{transformer_forward.4} parent=11 // pred_fallthru
        _
      // Predicated region
      $region49: #{transformer_forward.4} parent=11 // pred_check
        %p409 = pneg %p257
      $region50: #{transformer_forward.4} parent=11 // pred_check_branch
        %411 = sbr.rel (%p409) target = $region52
      $region51: #{transformer_forward.4} parent=11 // pred_region
        _
      $region52: #{transformer_forward.4} parent=11 // pred_fallthru
        _
      // Predicated region
      $region53: #{transformer_forward.4} parent=11 // pred_check
        %p412 = pneg %p278
      $region54: #{transformer_forward.4} parent=11 // pred_check_branch
        %414 = sbr.rel (%p412) target = $region56
      $region55: #{transformer_forward.4} parent=11 // pred_region
        _
      $region56: #{transformer_forward.4} parent=11 // pred_fallthru
        _
      // Predicated region
      $region57: #{transformer_forward.4} parent=11 // pred_check
        %p415 = pneg %p299
      $region58: #{transformer_forward.4} parent=11 // pred_check_branch
        %417 = sbr.rel (%p415) target = $region60
      $region59: #{transformer_forward.4} parent=11 // pred_region
        _
      $region60: #{transformer_forward.4} parent=11 // pred_fallthru
        _
      // Predicated region
      $region61: #{transformer_forward.4} parent=11 // pred_check
        %p418 = pneg %p320
      $region62: #{transformer_forward.4} parent=11 // pred_check_branch
        %420 = sbr.rel (%p418) target = $region64
      $region63: #{transformer_forward.4} parent=11 // pred_region
        _
      $region64: #{transformer_forward.4} parent=11 // pred_fallthru
        _
      // Predicated region
      $region65: #{transformer_forward.4} parent=11 // pred_check
        %p421 = pneg %p341
      $region66: #{transformer_forward.4} parent=11 // pred_check_branch
        %423 = sbr.rel (%p421) target = $region68
      $region67: #{transformer_forward.4} parent=11 // pred_region
        _
      $region68: #{transformer_forward.4} parent=11 // pred_fallthru
        _
    $region12: #{transformer_forward.4} parent=5 // pred_fallthru
      _
    %p424 = scmp.lt.s32.totalorder %s21, 2
    // Predicated region
    $region69: #{transformer_forward.4} parent=5 // pred_check
      %p425 = pneg %p424
    $region70: #{transformer_forward.4} parent=5 // pred_check_branch
      %427 = sbr.rel (%p425) target = $region72
    $region71: #{transformer_forward.4} parent=5 // pred_region
      // Predicated region
      $region73: #{transformer_forward.4} parent=71 // pred_check
        %p428 = pneg %p41
      $region74: #{transformer_forward.4} parent=71 // pred_check_branch
        %430 = sbr.rel (%p428) target = $region76
      $region75: #{transformer_forward.4} parent=71 // pred_region
        %p431 = scmp.lt.s32.totalorder %s21, 1
        %s432 = scalar_select %p431, %s21, 1
        %s433 = smul.addr %s432, 2
        %s434 = smul.addr %s433, 8
        %s435 = scalar_lea.vmem %s0, %s434
      $region76: #{transformer_forward.4} parent=71 // pred_fallthru
        _
    $region72: #{transformer_forward.4} parent=5 // pred_fallthru
      _
    %p436 = scmp.le.s32.totalorder 1, %s21
    %p437 = scmp.lt.s32.totalorder %s21, 3
    %p438 = pnand %p436, %p437
    %p439 = pneg %p438
    // Predicated region
    $region77: #{transformer_forward.4} parent=5 // pred_check
      _
    $region78: #{transformer_forward.4} parent=5 // pred_check_branch
      %441 = sbr.rel (%p438) target = $region80
    $region79: #{transformer_forward.4} parent=5 // pred_region
      %s442 = ssub.s32 %s21, 1
      %p443 = scmp.lt.s32.totalorder %s26, 1
      %s444 = scalar_select %p443, %s26, 1
      %s445 = smul.addr %s444, 2
      %s446 = smul.addr %s445, 8
      %s447 = scalar_lea.vmem %s0, %s446
      %p448 = pneg %p47
      %p449 = pneg %p44
      %p450 = pneg %p68
      %p451 = pneg %p65
      %p452 = pneg %p89
      %p453 = pneg %p86
      %p454 = pneg %p110
      %p455 = pneg %p107
      %p456 = pneg %p131
      %p457 = pneg %p128
      %p458 = pneg %p152
      %p459 = pneg %p149
      %p460 = pneg %p173
      %p461 = pneg %p170
      %p462 = pneg %p194
      %p463 = pneg %p191
      %p464 = pneg %p215
      %p465 = pneg %p212
      %p466 = pneg %p236
      %p467 = pneg %p233
      %p468 = pneg %p257
      %p469 = pneg %p254
      %p470 = pneg %p278
      %p471 = pneg %p275
      %p472 = pneg %p299
      %p473 = pneg %p296
      %p474 = pneg %p320
      %p475 = pneg %p317
      %p476 = pneg %p341
      %p477 = pneg %p338
      %p478 = pneg %p367
      %p479 = pneg %p364
      %p480 = scmp.lt.s32.totalorder %s26, 1
      %s481 = scalar_select %p480, %s26, 1
      %s482 = smul.addr %s481, 2
      %s483 = smul.addr %s482, 8
      %s484 = scalar_lea.vmem %s15, %s483
      %p485 = scmp.lt.s32.totalorder %s26, 1
      %s486 = scalar_select %p485, %s26, 1
      %s487 = smul.addr %s486, 2
      %s488 = smul.addr %s487, 8
      %s489 = scalar_lea.vmem %s0, %s488
      %p490 = scmp.lt.s32.totalorder %s26, 1
      %s491 = scalar_select %p490, %s26, 1
      %s492 = smul.addr %s491, 2
      %s493 = smul.addr %s492, 8
      %s494 = scalar_lea.vmem %s15, %s493
      %v496 = vld [vmem:[%s489] sm:$0xff]
      %v497 = vld [vmem:[%s489 + $0x8] sm:$0xff]
      %v498 = vld [vmem:[%s1] sm:$0x1]
      %v499 = vld [vmem:[%s2] sm:$0x1]
      %vm500 = vcmask 261120
      %v501 = vsel %vm500, %v496, 0.0
      %502 = vadd.xlane.f32.xlu0 %v501
      %v503 = vpop.xlane.xlu0 %502
      %v504 = vsel %vm500, %v497, 0.0
      %505 = vadd.xlane.f32.xlu0 %v504
      %v506 = vpop.xlane.xlu0 %505
      %v507 = vrcp.pop 32.0
      %v508 = vmul.f32 %v503, %v507
      %v509 = vmul.f32 %v506, %v507
      %v510 = vsub.f32 %v496, %v508
      %v511 = vsub.f32 %v497, %v509
      %v512 = vmul.f32 %v510, %v510
      %v513 = vmul.f32 %v511, %v511
      %v514 = vsel %vm500, %v512, 0.0
      %515 = vadd.xlane.f32.xlu0 %v514
      %v516 = vpop.xlane.xlu0 %515
      %v517 = vsel %vm500, %v513, 0.0
      %518 = vadd.xlane.f32.xlu0 %v517
      %v519 = vpop.xlane.xlu0 %518
      %v520 = vmul.f32 %v516, %v507
      %v521 = vmul.f32 %v519, %v507
      %v522 = vadd.f32 %v520, 1e-06
      %v523 = vadd.f32 %v521, 1e-06
      %v524 = vrsqrt.pop %v522
      %v525 = vrsqrt.pop %v523
      %v526 = vmul.f32 %v510, %v524
      %v527 = vmul.f32 %v511, %v525
      %v529 = vlaneseq
      %v530 = vshrl.u32 %v529, 7
      %v531 = vsub.s32 0, %v530
      %v532 = vrot.slane %v498, %v531
      %v534 = vmul.f32 %v526, %v532
      %v535 = vmul.f32 %v527, %v532
      %v537 = vlaneseq
      %v538 = vshrl.u32 %v537, 7
      %v539 = vsub.s32 0, %v538
      %v540 = vrot.slane %v499, %v539
      %v542 = vadd.f32 %v534, %v540
      %v543 = vadd.f32 %v535, %v540
      %v544 = vpack.c.bf16 %v543, %v542
      %v545 = vld [vmem:[%s3] sm:$0xf]
      %v546 = vld [vmem:[%s3 + $0x4] sm:$0xf]
      %v547 = vld [vmem:[%s3 + $0x8] sm:$0xf]
      %v548 = vld [vmem:[%s3 + $0xc] sm:$0xf]
      %v549 = vld [vmem:[%s4] sm:$0x1]
      %v551 = vlaneseq
      %v552 = vshrl.u32 %v551, 7
      %v553 = vsub.s32 0, %v552
      %v554 = vrot.slane %v549, %v553
      %v560 = vunpack.c.l.b16 %v545
      %v561 = vunpack.c.l.b16 %v546
      %v562 = vunpack.c.l.b16 %v547
      %v563 = vunpack.c.l.b16 %v548
      %v564 = vpack.c.b16 %v561, %v560
      %v565 = vpack.c.b16 %v563, %v562
      %v569 = vsel %vm500, %v544, 0
      %571 = vmatprep.subr.bf16.mxu0 0
      %572 = vmatpush1.bf16.msra.mxu0 %v564
      %573 = vmatprep.subr.bf16.mxu0 0
      %574 = vmatpush1.bf16.msra.mxu0 %v565
      %575 = vmatprep.subr.bf16.mxu0 0
      %576 = vmatpush1.bf16.msra.mxu0 0
      %577 = vmatprep.subr.bf16.mxu0 0
      %578 = vmatpush1.bf16.msra.mxu0 0
      %579 = vmatprep.subr.bf16.mxu0 0
      %580 = vmatpush1.bf16.msra.mxu0 0
      %581 = vmatprep.subr.bf16.mxu0 0
      %582 = vmatpush1.bf16.msra.mxu0 0
      %583 = vmatprep.subr.bf16.mxu0 0
      %584 = vmatpush1.bf16.msra.mxu0 0
      %585 = vmatprep.subr.bf16.mxu0 0
      %586 = vmatpush1.bf16.msra.mxu0 0
      %587 = vmatprep.subr.bf16.mxu0 0
      %588 = vmatpush1.bf16.msra.mxu0 0
      %589 = vmatprep.subr.bf16.mxu0 0
      %590 = vmatpush1.bf16.msra.mxu0 0
      %591 = vmatprep.subr.bf16.mxu0 0
      %592 = vmatpush1.bf16.msra.mxu0 0
      %593 = vmatprep.subr.bf16.mxu0 0
      %594 = vmatpush1.bf16.msra.mxu0 0
      %595 = vmatprep.subr.bf16.mxu0 0
      %596 = vmatpush1.bf16.msra.mxu0 0
      %597 = vmatprep.subr.bf16.mxu0 0
      %598 = vmatpush1.bf16.msra.mxu0 0
      %599 = vmatprep.subr.bf16.mxu0 0
      %600 = vmatpush1.bf16.msra.mxu0 0
      %601 = vmatprep.subr.bf16.mxu0 0
      %602 = vmatpush1.bf16.msra.mxu0 0
      %603 = vmatprep.mubr.bf16.mxu0 0
      %604 = vmatmul.mubr.bf16.gmra.mrb[0].mxu0 %v569
      %v605 = vpop.f32.mrb[0].mxu0
      %v606 = vadd.f32 %v554, %v605
      %v607 = vpop.f32.mrb[0].mxu0
      %v608 = vpop.f32.mrb[0].mxu0
      %v609 = vadd.f32 %v554, %v608
      %v610 = vpop.f32.mrb[0].mxu0
      %611 = vdwg.mxu0
      %v612 = vld [vmem:[%s14] sm:$0xff]
      %v613 = vld [vmem:[%s14 + $0x8] sm:$0xff]
      %v614 = vpack.c.bf16 %v609, %v606
      %616 = vrot.lane.b32.xlu0 %v614, 96
      %v617 = vpop.permute.xlu0 %616
      %vm618 = vcmask 64512
      %v620 = vsel %vm618, %v614, 0
      %v623 = vsel %vm618, %v617, 0
      %625 = vmatprep.subr.bf16.mxu0 0
      %626 = vmatpush1.bf16.xpose.msra.mxu0 %v623
      %627 = vmatprep.subr.bf16.mxu0 0
      %628 = vmatpush1.bf16.xpose.msra.mxu0 0
      %629 = vmatprep.subr.bf16.mxu0 0
      %630 = vmatpush1.bf16.xpose.msra.mxu0 0
      %631 = vmatprep.subr.bf16.mxu0 0
      %632 = vmatpush1.bf16.xpose.msra.mxu0 0
      %633 = vmatprep.subr.bf16.mxu0 0
      %634 = vmatpush1.bf16.xpose.msra.mxu0 0
      %635 = vmatprep.subr.bf16.mxu0 0
      %636 = vmatpush1.bf16.xpose.msra.mxu0 0
      %637 = vmatprep.subr.bf16.mxu0 0
      %638 = vmatpush1.bf16.xpose.msra.mxu0 0
      %639 = vmatprep.subr.bf16.mxu0 0
      %640 = vmatpush1.bf16.xpose.msra.mxu0 0
      %641 = vmatprep.subr.bf16.mxu0 0
      %642 = vmatpush1.bf16.xpose.msra.mxu0 0
      %643 = vmatprep.subr.bf16.mxu0 0
      %644 = vmatpush1.bf16.xpose.msra.mxu0 0
      %645 = vmatprep.subr.bf16.mxu0 0
      %646 = vmatpush1.bf16.xpose.msra.mxu0 0
      %647 = vmatprep.subr.bf16.mxu0 0
      %648 = vmatpush1.bf16.xpose.msra.mxu0 0
      %649 = vmatprep.subr.bf16.mxu0 0
      %650 = vmatpush1.bf16.xpose.msra.mxu0 0
      %651 = vmatprep.subr.bf16.mxu0 0
      %652 = vmatpush1.bf16.xpose.msra.mxu0 0
      %653 = vmatprep.subr.bf16.mxu0 0
      %654 = vmatpush1.bf16.xpose.msra.mxu0 0
      %655 = vmatprep.subr.bf16.mxu0 0
      %656 = vmatpush1.bf16.xpose.msra.mxu0 0
      %657 = vmatprep.mubr.bf16.mxu0 0
      %658 = vmatmul.mubr.bf16.gmra.mrb[0].mxu0 %v620
      %v659 = vpop.f32.mrb[0].mxu0
      %v660 = vadd.f32 0.0, %v659
      %v661 = vpop.f32.mrb[0].mxu0
      %v662 = vpop.f32.mrb[0].mxu0
      %v663 = vadd.f32 0.0, %v662
      %v664 = vpop.f32.mrb[0].mxu0
      %665 = vdwg.mxu0
      %v666 = vmul.f32 %v606, %v606
      %v667 = vmul.f32 %v609, %v609
      %v668 = vsel %vm618, %v666, 0.0
      %669 = vadd.xlane.f32.xlu0 %v668
      %v670 = vpop.xlane.xlu0 %669
      %v671 = vsel %vm618, %v667, 0.0
      %672 = vadd.xlane.f32.xlu0 %v671
      %v673 = vpop.xlane.xlu0 %672
      %v674 = vadd.f32 %v670, 0.0001
      %v675 = vadd.f32 %v673, 0.0001
      %v676 = vrsqrt.pop %v674
      %v677 = vmul.f32 %v674, %v676
      %vm678 = vcmp.eq.f32.partialorder %v674, inf
      %v679 = vsel %vm678, %v674, %v677
      %vm680 = vcmp.eq.f32.partialorder %v674, 0.0
      %v681 = vand.u32 %v674, 2147483648
      %v682 = vsel %vm680, %v681, %v679
      %v683 = vrsqrt.pop %v675
      %v684 = vmul.f32 %v675, %v683
      %vm685 = vcmp.eq.f32.partialorder %v675, inf
      %v686 = vsel %vm685, %v675, %v684
      %vm687 = vcmp.eq.f32.partialorder %v675, 0.0
      %v688 = vand.u32 %v675, 2147483648
      %v689 = vsel %vm687, %v688, %v686
      %692 = vrot.lane.b32.xlu0 %v666, 96
      %v693 = vpop.permute.xlu0 %692
      %694 = vrot.lane.b32.xlu0 %v667, 96
      %v695 = vpop.permute.xlu0 %694
      %v698 = vsel %vm618, %v693, 0.0
      %699 = vadd.xlane.f32.xlu0 %v698
      %v700 = vpop.xlane.xlu0 %699
      %v701 = vsel %vm618, %v695, 0.0
      %702 = vadd.xlane.f32.xlu0 %v701
      %v703 = vpop.xlane.xlu0 %702
      %v704 = vadd.f32 %v700, 0.0001
      %v705 = vadd.f32 %v703, 0.0001
      %v706 = vrsqrt.pop %v704
      %v707 = vmul.f32 %v704, %v706
      %vm708 = vcmp.eq.f32.partialorder %v704, inf
      %v709 = vsel %vm708, %v704, %v707
      %vm710 = vcmp.eq.f32.partialorder %v704, 0.0
      %v711 = vand.u32 %v704, 2147483648
      %v712 = vsel %vm710, %v711, %v709
      %v713 = vrsqrt.pop %v705
      %v714 = vmul.f32 %v705, %v713
      %vm715 = vcmp.eq.f32.partialorder %v705, inf
      %v716 = vsel %vm715, %v705, %v714
      %vm717 = vcmp.eq.f32.partialorder %v705, 0.0
      %v718 = vand.u32 %v705, 2147483648
      %v719 = vsel %vm717, %v718, %v716
      %720 = vxpose.xlu0.b32.start [1/16] %v712, 128
      %721 = vxpose.xlu0.b32.cont [2/16] %v719, 128
      %722 = vxpose.xlu0.b32.cont [3/16] 0.0, 128
      %723 = vxpose.xlu0.b32.cont [4/16] 0.0, 128
      %724 = vxpose.xlu0.b32.cont [5/16] 0.0, 128
      %725 = vxpose.xlu0.b32.cont [6/16] 0.0, 128
      %726 = vxpose.xlu0.b32.cont [7/16] 0.0, 128
      %727 = vxpose.xlu0.b32.cont [8/16] 0.0, 128
      %728 = vxpose.xlu0.b32.cont [9/16] 0.0, 128
      %729 = vxpose.xlu0.b32.cont [10/16] 0.0, 128
      %730 = vxpose.xlu0.b32.cont [11/16] 0.0, 128
      %731 = vxpose.xlu0.b32.cont [12/16] 0.0, 128
      %732 = vxpose.xlu0.b32.cont [13/16] 0.0, 128
      %733 = vxpose.xlu0.b32.cont [14/16] 0.0, 128
      %734 = vxpose.xlu0.b32.cont [15/16] 0.0, 128
      %735 = vxpose.xlu0.b32.end [16/16] 0.0, 128
      %v736 = vpop.trf.xlu0
      %v737 = vpop.trf.xlu0
      %v738 = vpop.trf.xlu0
      %v739 = vpop.trf.xlu0
      %v740 = vpop.trf.xlu0
      %v741 = vpop.trf.xlu0
      %v742 = vpop.trf.xlu0
      %v743 = vpop.trf.xlu0
      %v744 = vpop.trf.xlu0
      %v745 = vpop.trf.xlu0
      %v746 = vpop.trf.xlu0
      %v747 = vpop.trf.xlu0
      %v748 = vpop.trf.xlu0
      %v749 = vpop.trf.xlu0
      %v750 = vpop.trf.xlu0
      %v751 = vpop.trf.xlu0
      %v752 = vlaneseq
      %v753 = vshrl.u32 %v752, 7
      %v754 = vsub.s32 0, %v753
      %v755 = vrot.slane %v736, %v754
      %v756 = vmul.f32 %v682, %v755
      %v757 = vmul.f32 %v689, %v755
      %v758 = vadd.f32 %v756, 0.0001
      %v759 = vadd.f32 %v757, 0.0001
      %v760 = vrcp.pop %v758
      %v761 = vrcp.pop %v759
      %v762 = vmul.f32 %v660, %v760
      %v763 = vmul.f32 %v663, %v761
      %v764 = vld [vmem:[%s13] sm:$0x1]
      %v766 = vlaneseq
      %v767 = vshrl.u32 %v766, 7
      %v768 = vsub.s32 0, %v767
      %v769 = vrot.slane %v764, %v768
      %770 = vset.pattern.permute.xlu0 0
      %771 = vperm.xlu0 %770, %v769
      %v772 = vpop.permute.xlu0 %771
      %v774 = vmul.f32 %v772, %v612
      %v775 = vmul.f32 %v772, %v613
      %v776 = vmul.f32 %v774, 1.442695
      %v777 = vpow.pop %v776
      %v778 = vmul.f32 %v775, 1.442695
      %v779 = vpow.pop %v778
      %vm780 = vcmask 130048
      %v781 = vsel %vm780, %v777, 0.0
      %782 = vadd.xlane.f32.xlu0 %v781
      %v783 = vpop.xlane.xlu0 %782
      %v784 = vsel %vm780, %v779, 0.0
      %785 = vadd.xlane.f32.xlu0 %v784
      %v786 = vpop.xlane.xlu0 %785
      %v787 = vrcp.pop %v783
      %v788 = vrcp.pop %v786
      %v789 = vmul.f32 %v777, %v787
      %v790 = vmul.f32 %v779, %v788
      %v791 = vmul.f32 %v762, %v789
      %v792 = vmul.f32 %v763, %v790
      %v793 = vpack.c.bf16 %v792, %v791
      %794 = vrot.lane.b32.xlu0 %v614, 64
      %v795 = vpop.permute.xlu0 %794
      %v798 = vsel %vm780, %v793, 0
      %800 = vmatprep.subr.bf16.mxu0 0
      %801 = vmatpush1.bf16.msra.mxu0 %v795
      %802 = vmatprep.subr.bf16.mxu0 0
      %803 = vmatpush1.bf16.msra.mxu0 0
      %804 = vmatprep.subr.bf16.mxu0 0
      %805 = vmatpush1.bf16.msra.mxu0 0
      %806 = vmatprep.subr.bf16.mxu0 0
      %807 = vmatpush1.bf16.msra.mxu0 0
      %808 = vmatprep.subr.bf16.mxu0 0
      %809 = vmatpush1.bf16.msra.mxu0 0
      %810 = vmatprep.subr.bf16.mxu0 0
      %811 = vmatpush1.bf16.msra.mxu0 0
      %812 = vmatprep.subr.bf16.mxu0 0
      %813 = vmatpush1.bf16.msra.mxu0 0
      %814 = vmatprep.subr.bf16.mxu0 0
      %815 = vmatpush1.bf16.msra.mxu0 0
      %816 = vmatprep.subr.bf16.mxu0 0
      %817 = vmatpush1.bf16.msra.mxu0 0
      %818 = vmatprep.subr.bf16.mxu0 0
      %819 = vmatpush1.bf16.msra.mxu0 0
      %820 = vmatprep.subr.bf16.mxu0 0
      %821 = vmatpush1.bf16.msra.mxu0 0
      %822 = vmatprep.subr.bf16.mxu0 0
      %823 = vmatpush1.bf16.msra.mxu0 0
      %824 = vmatprep.subr.bf16.mxu0 0
      %825 = vmatpush1.bf16.msra.mxu0 0
      %826 = vmatprep.subr.bf16.mxu0 0
      %827 = vmatpush1.bf16.msra.mxu0 0
      %828 = vmatprep.subr.bf16.mxu0 0
      %829 = vmatpush1.bf16.msra.mxu0 0
      %830 = vmatprep.subr.bf16.mxu0 0
      %831 = vmatpush1.bf16.msra.mxu0 0
      %832 = vmatprep.mubr.bf16.mxu0 0
      %833 = vmatmul.mubr.bf16.gmra.mrb[0].mxu0 %v798
      %v834 = vpop.f32.mrb[0].mxu0
      %v835 = vadd.f32 0.0, %v834
      %v836 = vpop.f32.mrb[0].mxu0
      %v837 = vpop.f32.mrb[0].mxu0
      %v838 = vadd.f32 0.0, %v837
      %v839 = vpop.f32.mrb[0].mxu0
      %840 = vdwg.mxu0
      %841 = vrot.lane.b32.xlu0 %v614, 120
      %v842 = vpop.permute.xlu0 %841
      %843 = vrot.lane.b32.xlu0 %v614, 88
      %v844 = vpop.permute.xlu0 %843
      %v846 = vsel %vm618, %v842, 0
      %v849 = vsel %vm618, %v844, 0
      %851 = vmatprep.subr.bf16.mxu0 0
      %852 = vmatpush1.bf16.xpose.msra.mxu0 %v849
      %853 = vmatprep.subr.bf16.mxu0 0
      %854 = vmatpush1.bf16.xpose.msra.mxu0 0
      %855 = vmatprep.subr.bf16.mxu0 0
      %856 = vmatpush1.bf16.xpose.msra.mxu0 0
      %857 = vmatprep.subr.bf16.mxu0 0
      %858 = vmatpush1.bf16.xpose.msra.mxu0 0
      %859 = vmatprep.subr.bf16.mxu0 0
      %860 = vmatpush1.bf16.xpose.msra.mxu0 0
      %861 = vmatprep.subr.bf16.mxu0 0
      %862 = vmatpush1.bf16.xpose.msra.mxu0 0
      %863 = vmatprep.subr.bf16.mxu0 0
      %864 = vmatpush1.bf16.xpose.msra.mxu0 0
      %865 = vmatprep.subr.bf16.mxu0 0
      %866 = vmatpush1.bf16.xpose.msra.mxu0 0
      %867 = vmatprep.subr.bf16.mxu0 0
      %868 = vmatpush1.bf16.xpose.msra.mxu0 0
      %869 = vmatprep.subr.bf16.mxu0 0
      %870 = vmatpush1.bf16.xpose.msra.mxu0 0
      %871 = vmatprep.subr.bf16.mxu0 0
      %872 = vmatpush1.bf16.xpose.msra.mxu0 0
      %873 = vmatprep.subr.bf16.mxu0 0
      %874 = vmatpush1.bf16.xpose.msra.mxu0 0
      %875 = vmatprep.subr.bf16.mxu0 0
      %876 = vmatpush1.bf16.xpose.msra.mxu0 0
      %877 = vmatprep.subr.bf16.mxu0 0
      %878 = vmatpush1.bf16.xpose.msra.mxu0 0
      %879 = vmatprep.subr.bf16.mxu0 0
      %880 = vmatpush1.bf16.xpose.msra.mxu0 0
      %881 = vmatprep.subr.bf16.mxu0 0
      %882 = vmatpush1.bf16.xpose.msra.mxu0 0
      %883 = vmatprep.mubr.bf16.mxu0 0
      %884 = vmatmul.mubr.bf16.gmra.mrb[0].mxu0 %v846
      %v885 = vpop.f32.mrb[0].mxu0
      %v886 = vadd.f32 0.0, %v885
      %v887 = vpop.f32.mrb[0].mxu0
      %v888 = vpop.f32.mrb[0].mxu0
      %v889 = vadd.f32 0.0, %v888
      %v890 = vpop.f32.mrb[0].mxu0
      %891 = vdwg.mxu0
      %892 = vrot.lane.b32.xlu0 %v666, 120
      %v893 = vpop.permute.xlu0 %892
      %894 = vrot.lane.b32.xlu0 %v667, 120
      %v895 = vpop.permute.xlu0 %894
      %v898 = vsel %vm618, %v893, 0.0
      %899 = vadd.xlane.f32.xlu0 %v898
      %v900 = vpop.xlane.xlu0 %899
      %v901 = vsel %vm618, %v895, 0.0
      %902 = vadd.xlane.f32.xlu0 %v901
      %v903 = vpop.xlane.xlu0 %902
      %v904 = vadd.f32 %v900, 0.0001
      %v905 = vadd.f32 %v903, 0.0001
      %v906 = vrsqrt.pop %v904
      %v907 = vmul.f32 %v904, %v906
      %vm908 = vcmp.eq.f32.partialorder %v904, inf
      %v909 = vsel %vm908, %v904, %v907
      %vm910 = vcmp.eq.f32.partialorder %v904, 0.0
      %v911 = vand.u32 %v904, 2147483648
      %v912 = vsel %vm910, %v911, %v909
      %v913 = vrsqrt.pop %v905
      %v914 = vmul.f32 %v905, %v913
      %vm915 = vcmp.eq.f32.partialorder %v905, inf
      %v916 = vsel %vm915, %v905, %v914
      %vm917 = vcmp.eq.f32.partialorder %v905, 0.0
      %v918 = vand.u32 %v905, 2147483648
      %v919 = vsel %vm917, %v918, %v916
      %920 = vrot.lane.b32.xlu0 %v666, 88
      %v921 = vpop.permute.xlu0 %920
      %922 = vrot.lane.b32.xlu0 %v667, 88
      %v923 = vpop.permute.xlu0 %922
      %v926 = vsel %vm618, %v921, 0.0
      %927 = vadd.xlane.f32.xlu0 %v926
      %v928 = vpop.xlane.xlu0 %927
      %v929 = vsel %vm618, %v923, 0.0
      %930 = vadd.xlane.f32.xlu0 %v929
      %v931 = vpop.xlane.xlu0 %930
      %v932 = vadd.f32 %v928, 0.0001
      %v933 = vadd.f32 %v931, 0.0001
      %v934 = vrsqrt.pop %v932
      %v935 = vmul.f32 %v932, %v934
      %vm936 = vcmp.eq.f32.partialorder %v932, inf
      %v937 = vsel %vm936, %v932, %v935
      %vm938 = vcmp.eq.f32.partialorder %v932, 0.0
      %v939 = vand.u32 %v932, 2147483648
      %v940 = vsel %vm938, %v939, %v937
      %v941 = vrsqrt.pop %v933
      %v942 = vmul.f32 %v933, %v941
      %vm943 = vcmp.eq.f32.partialorder %v933, inf
      %v944 = vsel %vm943, %v933, %v942
      %vm945 = vcmp.eq.f32.partialorder %v933, 0.0
      %v946 = vand.u32 %v933, 2147483648
      %v947 = vsel %vm945, %v946, %v944
      %948 = vxpose.xlu0.b32.start [1/16] %v940, 128
      %949 = vxpose.xlu0.b32.cont [2/16] %v947, 128
      %950 = vxpose.xlu0.b32.cont [3/16] 0.0, 128
      %951 = vxpose.xlu0.b32.cont [4/16] 0.0, 128
      %952 = vxpose.xlu0.b32.cont [5/16] 0.0, 128
      %953 = vxpose.xlu0.b32.cont [6/16] 0.0, 128
      %954 = vxpose.xlu0.b32.cont [7/16] 0.0, 128
      %955 = vxpose.xlu0.b32.cont [8/16] 0.0, 128
      %956 = vxpose.xlu0.b32.cont [9/16] 0.0, 128
      %957 = vxpose.xlu0.b32.cont [10/16] 0.0, 128
      %958 = vxpose.xlu0.b32.cont [11/16] 0.0, 128
      %959 = vxpose.xlu0.b32.cont [12/16] 0.0, 128
      %960 = vxpose.xlu0.b32.cont [13/16] 0.0, 128
      %961 = vxpose.xlu0.b32.cont [14/16] 0.0, 128
      %962 = vxpose.xlu0.b32.cont [15/16] 0.0, 128
      %963 = vxpose.xlu0.b32.end [16/16] 0.0, 128
      %v964 = vpop.trf.xlu0
      %v965 = vpop.trf.xlu0
      %v966 = vpop.trf.xlu0
      %v967 = vpop.trf.xlu0
      %v968 = vpop.trf.xlu0
      %v969 = vpop.trf.xlu0
      %v970 = vpop.trf.xlu0
      %v971 = vpop.trf.xlu0
      %v972 = vpop.trf.xlu0
      %v973 = vpop.trf.xlu0
      %v974 = vpop.trf.xlu0
      %v975 = vpop.trf.xlu0
      %v976 = vpop.trf.xlu0
      %v977 = vpop.trf.xlu0
      %v978 = vpop.trf.xlu0
      %v979 = vpop.trf.xlu0
      %v980 = vlaneseq
      %v981 = vshrl.u32 %v980, 7
      %v982 = vsub.s32 0, %v981
      %v983 = vrot.slane %v964, %v982
      %v984 = vmul.f32 %v912, %v983
      %v985 = vmul.f32 %v919, %v983
      %v986 = vadd.f32 %v984, 0.0001
      %v987 = vadd.f32 %v985, 0.0001
      %v988 = vrcp.pop %v986
      %v989 = vrcp.pop %v987
      %v990 = vmul.f32 %v886, %v988
      %v991 = vmul.f32 %v889, %v989
      %992 = vset.pattern.permute.xlu0 1
      %993 = vperm.xlu0 %992, %v769
      %v994 = vpop.permute.xlu0 %993
      %v996 = vmul.f32 %v994, %v612
      %v997 = vmul.f32 %v994, %v613
      %v998 = vmul.f32 %v996, 1.442695
      %v999 = vpow.pop %v998
      %v1000 = vmul.f32 %v997, 1.442695
      %v1001 = vpow.pop %v1000
      %v1002 = vsel %vm780, %v999, 0.0
      %1003 = vadd.xlane.f32.xlu0 %v1002
      %v1004 = vpop.xlane.xlu0 %1003
      %v1005 = vsel %vm780, %v1001, 0.0
      %1006 = vadd.xlane.f32.xlu0 %v1005
      %v1007 = vpop.xlane.xlu0 %1006
      %v1008 = vrcp.pop %v1004
      %v1009 = vrcp.pop %v1007
      %v1010 = vmul.f32 %v999, %v1008
      %v1011 = vmul.f32 %v1001, %v1009
      %v1012 = vmul.f32 %v990, %v1010
      %v1013 = vmul.f32 %v991, %v1011
      %v1014 = vpack.c.bf16 %v1013, %v1012
      %1015 = vrot.lane.b32.xlu0 %v614, 56
      %v1016 = vpop.permute.xlu0 %1015
      %v1019 = vsel %vm780, %v1014, 0
      %1021 = vmatprep.subr.bf16.mxu0 0
      %1022 = vmatpush1.bf16.msra.mxu0 %v1016
      %1023 = vmatprep.subr.bf16.mxu0 0
      %1024 = vmatpush1.bf16.msra.mxu0 0
      %1025 = vmatprep.subr.bf16.mxu0 0
      %1026 = vmatpush1.bf16.msra.mxu0 0
      %1027 = vmatprep.subr.bf16.mxu0 0
      %1028 = vmatpush1.bf16.msra.mxu0 0
      %1029 = vmatprep.subr.bf16.mxu0 0
      %1030 = vmatpush1.bf16.msra.mxu0 0
      %1031 = vmatprep.subr.bf16.mxu0 0
      %1032 = vmatpush1.bf16.msra.mxu0 0
      %1033 = vmatprep.subr.bf16.mxu0 0
      %1034 = vmatpush1.bf16.msra.mxu0 0
      %1035 = vmatprep.subr.bf16.mxu0 0
      %1036 = vmatpush1.bf16.msra.mxu0 0
      %1037 = vmatprep.subr.bf16.mxu0 0
      %1038 = vmatpush1.bf16.msra.mxu0 0
      %1039 = vmatprep.subr.bf16.mxu0 0
      %1040 = vmatpush1.bf16.msra.mxu0 0
      %1041 = vmatprep.subr.bf16.mxu0 0
      %1042 = vmatpush1.bf16.msra.mxu0 0
      %1043 = vmatprep.subr.bf16.mxu0 0
      %1044 = vmatpush1.bf16.msra.mxu0 0
      %1045 = vmatprep.subr.bf16.mxu0 0
      %1046 = vmatpush1.bf16.msra.mxu0 0
      %1047 = vmatprep.subr.bf16.mxu0 0
      %1048 = vmatpush1.bf16.msra.mxu0 0
      %1049 = vmatprep.subr.bf16.mxu0 0
      %1050 = vmatpush1.bf16.msra.mxu0 0
      %1051 = vmatprep.subr.bf16.mxu0 0
      %1052 = vmatpush1.bf16.msra.mxu0 0
      %1053 = vmatprep.mubr.bf16.mxu0 0
      %1054 = vmatmul.mubr.bf16.gmra.mrb[0].mxu0 %v1019
      %v1055 = vpop.f32.mrb[0].mxu0
      %v1056 = vadd.f32 0.0, %v1055
      %v1057 = vpop.f32.mrb[0].mxu0
      %v1058 = vpop.f32.mrb[0].mxu0
      %v1059 = vadd.f32 0.0, %v1058
      %v1060 = vpop.f32.mrb[0].mxu0
      %1061 = vdwg.mxu0
      %1062 = vrot.lane.b32.xlu0 %v614, 112
      %v1063 = vpop.permute.xlu0 %1062
      %1064 = vrot.lane.b32.xlu0 %v614, 80
      %v1065 = vpop.permute.xlu0 %1064
      %v1067 = vsel %vm618, %v1063, 0
      %v1070 = vsel %vm618, %v1065, 0
      %1072 = vmatprep.subr.bf16.mxu0 0
      %1073 = vmatpush1.bf16.xpose.msra.mxu0 %v1070
      %1074 = vmatprep.subr.bf16.mxu0 0
      %1075 = vmatpush1.bf16.xpose.msra.mxu0 0
      %1076 = vmatprep.subr.bf16.mxu0 0
      %1077 = vmatpush1.bf16.xpose.msra.mxu0 0
      %1078 = vmatprep.subr.bf16.mxu0 0
      %1079 = vmatpush1.bf16.xpose.msra.mxu0 0
      %1080 = vmatprep.subr.bf16.mxu0 0
      %1081 = vmatpush1.bf16.xpose.msra.mxu0 0
      %1082 = vmatprep.subr.bf16.mxu0 0
      %1083 = vmatpush1.bf16.xpose.msra.mxu0 0
      %1084 = vmatprep.subr.bf16.mxu0 0
      %1085 = vmatpush1.bf16.xpose.msra.mxu0 0
      %1086 = vmatprep.subr.bf16.mxu0 0
      %1087 = vmatpush1.bf16.xpose.msra.mxu0 0
      %1088 = vmatprep.subr.bf16.mxu0 0
      %1089 = vmatpush1.bf16.xpose.msra.mxu0 0
      %1090 = vmatprep.subr.bf16.mxu0 0
      %1091 = vmatpush1.bf16.xpose.msra.mxu0 0
      %1092 = vmatprep.subr.bf16.mxu0 0
      %1093 = vmatpush1.bf16.xpose.msra.mxu0 0
      %1094 = vmatprep.subr.bf16.mxu0 0
      %1095 = vmatpush1.bf16.xpose.msra.mxu0 0
      %1096 = vmatprep.subr.bf16.mxu0 0
      %1097 = vmatpush1.bf16.xpose.msra.mxu0 0
      %1098 = vmatprep.subr.bf16.mxu0 0
      %1099 = vmatpush1.bf16.xpose.msra.mxu0 0
      %1100 = vmatprep.subr.bf16.mxu0 0
      %1101 = vmatpush1.bf16.xpose.msra.mxu0 0
      %1102 = vmatprep.subr.bf16.mxu0 0
      %1103 = vmatpush1.bf16.xpose.msra.mxu0 0
      %1104 = vmatprep.mubr.bf16.mxu0 0
      %1105 = vmatmul.mubr.bf16.gmra.mrb[0].mxu0 %v1067
      %v1106 = vpop.f32.mrb[0].mxu0
      %v1107 = vadd.f32 0.0, %v1106
      %v1108 = vpop.f32.mrb[0].mxu0
      %v1109 = vpop.f32.mrb[0].mxu0
      %v1110 = vadd.f32 0.0, %v1109
      %v1111 = vpop.f32.mrb[0].mxu0
      %1112 = vdwg.mxu0
      %1113 = vrot.lane.b32.xlu0 %v666, 112
      %v1114 = vpop.permute.xlu0 %1113
      %1115 = vrot.lane.b32.xlu0 %v667, 112
      %v1116 = vpop.permute.xlu0 %1115
      %v1119 = vsel %vm618, %v1114, 0.0
      %1120 = vadd.xlane.f32.xlu0 %v1119
      %v1121 = vpop.xlane.xlu0 %1120
      %v1122 = vsel %vm618, %v1116, 0.0
      %1123 = vadd.xlane.f32.xlu0 %v1122
      %v1124 = vpop.xlane.xlu0 %1123
      %v1125 = vadd.f32 %v1121, 0.0001
      %v1126 = vadd.f32 %v1124, 0.0001
      %v1127 = vrsqrt.pop %v1125
      %v1128 = vmul.f32 %v1125, %v1127
      %vm1129 = vcmp.eq.f32.partialorder %v1125, inf
      %v1130 = vsel %vm1129, %v1125, %v1128
      %vm1131 = vcmp.eq.f32.partialorder %v1125, 0.0
      %v1132 = vand.u32 %v1125, 2147483648
      %v1133 = vsel %vm1131, %v1132, %v1130
      %v1134 = vrsqrt.pop %v1126
      %v1135 = vmul.f32 %v1126, %v1134
      %vm1136 = vcmp.eq.f32.partialorder %v1126, inf
      %v1137 = vsel %vm1136, %v1126, %v1135
      %vm1138 = vcmp.eq.f32.partialorder %v1126, 0.0
      %v1139 = vand.u32 %v1126, 2147483648
      %v1140 = vsel %vm1138, %v1139, %v1137
      %1141 = vrot.lane.b32.xlu0 %v666, 80
      %v1142 = vpop.permute.xlu0 %1141
      %1143 = vrot.lane.b32.xlu0 %v667, 80
      %v1144 = vpop.permute.xlu0 %1143
      %v1147 = vsel %vm618, %v1142, 0.0
      %1148 = vadd.xlane.f32.xlu0 %v1147
      %v1149 = vpop.xlane.xlu0 %1148
      %v1150 = vsel %vm618, %v1144, 0.0
      %1151 = vadd.xlane.f32.xlu0 %v1150
      %v1152 = vpop.xlane.xlu0 %1151
      %v1153 = vadd.f32 %v1149, 0.0001
      %v1154 = vadd.f32 %v1152, 0.0001
      %v1155 = vrsqrt.pop %v1153
      %v1156 = vmul.f32 %v1153, %v1155
      %vm1157 = vcmp.eq.f32.partialorder %v1153, inf
      %v1158 = vsel %vm1157, %v1153, %v1156
      %vm1159 = vcmp.eq.f32.partialorder %v1153, 0.0
      %v1160 = vand.u32 %v1153, 2147483648
      %v1161 = vsel %vm1159, %v1160, %v1158
      %v1162 = vrsqrt.pop %v1154
      %v1163 = vmul.f32 %v1154, %v1162
      %vm1164 = vcmp.eq.f32.partialorder %v1154, inf
      %v1165 = vsel %vm1164, %v1154, %v1163
      %vm1166 = vcmp.eq.f32.partialorder %v1154, 0.0
      %v1167 = vand.u32 %v1154, 2147483648
      %v1168 = vsel %vm1166, %v1167, %v1165
      %1169 = vxpose.xlu0.b32.start [1/16] %v1161, 128
      %1170 = vxpose.xlu0.b32.cont [2/16] %v1168, 128
      %1171 = vxpose.xlu0.b32.cont [3/16] 0.0, 128
      %1172 = vxpose.xlu0.b32.cont [4/16] 0.0, 128
      %1173 = vxpose.xlu0.b32.cont [5/16] 0.0, 128
      %1174 = vxpose.xlu0.b32.cont [6/16] 0.0, 128
      %1175 = vxpose.xlu0.b32.cont [7/16] 0.0, 128
      %1176 = vxpose.xlu0.b32.cont [8/16] 0.0, 128
      %1177 = vxpose.xlu0.b32.cont [9/16] 0.0, 128
      %1178 = vxpose.xlu0.b32.cont [10/16] 0.0, 128
      %1179 = vxpose.xlu0.b32.cont [11/16] 0.0, 128
      %1180 = vxpose.xlu0.b32.cont [12/16] 0.0, 128
      %1181 = vxpose.xlu0.b32.cont [13/16] 0.0, 128
      %1182 = vxpose.xlu0.b32.cont [14/16] 0.0, 128
      %1183 = vxpose.xlu0.b32.cont [15/16] 0.0, 128
      %1184 = vxpose.xlu0.b32.end [16/16] 0.0, 128
      %v1185 = vpop.trf.xlu0
      %v1186 = vpop.trf.xlu0
      %v1187 = vpop.trf.xlu0
      %v1188 = vpop.trf.xlu0
      %v1189 = vpop.trf.xlu0
      %v1190 = vpop.trf.xlu0
      %v1191 = vpop.trf.xlu0
      %v1192 = vpop.trf.xlu0
      %v1193 = vpop.trf.xlu0
      %v1194 = vpop.trf.xlu0
      %v1195 = vpop.trf.xlu0
      %v1196 = vpop.trf.xlu0
      %v1197 = vpop.trf.xlu0
      %v1198 = vpop.trf.xlu0
      %v1199 = vpop.trf.xlu0
      %v1200 = vpop.trf.xlu0
      %v1201 = vlaneseq
      %v1202 = vshrl.u32 %v1201, 7
      %v1203 = vsub.s32 0, %v1202
      %v1204 = vrot.slane %v1185, %v1203
      %v1205 = vmul.f32 %v1133, %v1204
      %v1206 = vmul.f32 %v1140, %v1204
      %v1207 = vadd.f32 %v1205, 0.0001
      %v1208 = vadd.f32 %v1206, 0.0001
      %v1209 = vrcp.pop %v1207
      %v1210 = vrcp.pop %v1208
      %v1211 = vmul.f32 %v1107, %v1209
      %v1212 = vmul.f32 %v1110, %v1210
      %1213 = vset.pattern.permute.xlu0 2
      %1214 = vperm.xlu0 %1213, %v769
      %v1215 = vpop.permute.xlu0 %1214
      %v1217 = vmul.f32 %v1215, %v612
      %v1218 = vmul.f32 %v1215, %v613
      %v1219 = vmul.f32 %v1217, 1.442695
      %v1220 = vpow.pop %v1219
      %v1221 = vmul.f32 %v1218, 1.442695
      %v1222 = vpow.pop %v1221
      %v1223 = vsel %vm780, %v1220, 0.0
      %1224 = vadd.xlane.f32.xlu0 %v1223
      %v1225 = vpop.xlane.xlu0 %1224
      %v1226 = vsel %vm780, %v1222, 0.0
      %1227 = vadd.xlane.f32.xlu0 %v1226
      %v1228 = vpop.xlane.xlu0 %1227
      %v1229 = vrcp.pop %v1225
      %v1230 = vrcp.pop %v1228
      %v1231 = vmul.f32 %v1220, %v1229
      %v1232 = vmul.f32 %v1222, %v1230
      %v1233 = vmul.f32 %v1211, %v1231
      %v1234 = vmul.f32 %v1212, %v1232
      %v1235 = vpack.c.bf16 %v1234, %v1233
      %1236 = vrot.lane.b32.xlu0 %v614, 48
      %v1237 = vpop.permute.xlu0 %1236
      %v1240 = vsel %vm780, %v1235, 0
      %1242 = vmatprep.subr.bf16.mxu0 0
      %1243 = vmatpush1.bf16.msra.mxu0 %v1237
      %1244 = vmatprep.subr.bf16.mxu0 0
      %1245 = vmatpush1.bf16.msra.mxu0 0
      %1246 = vmatprep.subr.bf16.mxu0 0
      %1247 = vmatpush1.bf16.msra.mxu0 0
      %1248 = vmatprep.subr.bf16.mxu0 0
      %1249 = vmatpush1.bf16.msra.mxu0 0
      %1250 = vmatprep.subr.bf16.mxu0 0
      %1251 = vmatpush1.bf16.msra.mxu0 0
      %1252 = vmatprep.subr.bf16.mxu0 0
      %1253 = vmatpush1.bf16.msra.mxu0 0
      %1254 = vmatprep.subr.bf16.mxu0 0
      %1255 = vmatpush1.bf16.msra.mxu0 0
      %1256 = vmatprep.subr.bf16.mxu0 0
      %1257 = vmatpush1.bf16.msra.mxu0 0
      %1258 = vmatprep.subr.bf16.mxu0 0
      %1259 = vmatpush1.bf16.msra.mxu0 0
      %1260 = vmatprep.subr.bf16.mxu0 0
      %1261 = vmatpush1.bf16.msra.mxu0 0
      %1262 = vmatprep.subr.bf16.mxu0 0
      %1263 = vmatpush1.bf16.msra.mxu0 0
      %1264 = vmatprep.subr.bf16.mxu0 0
      %1265 = vmatpush1.bf16.msra.mxu0 0
      %1266 = vmatprep.subr.bf16.mxu0 0
      %1267 = vmatpush1.bf16.msra.mxu0 0
      %1268 = vmatprep.subr.bf16.mxu0 0
      %1269 = vmatpush1.bf16.msra.mxu0 0
      %1270 = vmatprep.subr.bf16.mxu0 0
      %1271 = vmatpush1.bf16.msra.mxu0 0
      %1272 = vmatprep.subr.bf16.mxu0 0
      %1273 = vmatpush1.bf16.msra.mxu0 0
      %1274 = vmatprep.mubr.bf16.mxu0 0
      %1275 = vmatmul.mubr.bf16.gmra.mrb[0].mxu0 %v1240
      %v1276 = vpop.f32.mrb[0].mxu0
      %v1277 = vadd.f32 0.0, %v1276
      %v1278 = vpop.f32.mrb[0].mxu0
      %v1279 = vpop.f32.mrb[0].mxu0
      %v1280 = vadd.f32 0.0, %v1279
      %v1281 = vpop.f32.mrb[0].mxu0
      %1282 = vdwg.mxu0
      %1283 = vrot.lane.b32.xlu0 %v614, 104
      %v1284 = vpop.permute.xlu0 %1283
      %1285 = vrot.lane.b32.xlu0 %v614, 72
      %v1286 = vpop.permute.xlu0 %1285
      %v1288 = vsel %vm618, %v1284, 0
      %v1291 = vsel %vm618, %v1286, 0
      %1293 = vmatprep.subr.bf16.mxu0 0
      %1294 = vmatpush1.bf16.xpose.msra.mxu0 %v1291
      %1295 = vmatprep.subr.bf16.mxu0 0
      %1296 = vmatpush1.bf16.xpose.msra.mxu0 0
      %1297 = vmatprep.subr.bf16.mxu0 0
      %1298 = vmatpush1.bf16.xpose.msra.mxu0 0
      %1299 = vmatprep.subr.bf16.mxu0 0
      %1300 = vmatpush1.bf16.xpose.msra.mxu0 0
      %1301 = vmatprep.subr.bf16.mxu0 0
      %1302 = vmatpush1.bf16.xpose.msra.mxu0 0
      %1303 = vmatprep.subr.bf16.mxu0 0
      %1304 = vmatpush1.bf16.xpose.msra.mxu0 0
      %1305 = vmatprep.subr.bf16.mxu0 0
      %1306 = vmatpush1.bf16.xpose.msra.mxu0 0
      %1307 = vmatprep.subr.bf16.mxu0 0
      %1308 = vmatpush1.bf16.xpose.msra.mxu0 0
      %1309 = vmatprep.subr.bf16.mxu0 0
      %1310 = vmatpush1.bf16.xpose.msra.mxu0 0
      %1311 = vmatprep.subr.bf16.mxu0 0
      %1312 = vmatpush1.bf16.xpose.msra.mxu0 0
      %1313 = vmatprep.subr.bf16.mxu0 0
      %1314 = vmatpush1.bf16.xpose.msra.mxu0 0
      %1315 = vmatprep.subr.bf16.mxu0 0
      %1316 = vmatpush1.bf16.xpose.msra.mxu0 0
      %1317 = vmatprep.subr.bf16.mxu0 0
      %1318 = vmatpush1.bf16.xpose.msra.mxu0 0
      %1319 = vmatprep.subr.bf16.mxu0 0
      %1320 = vmatpush1.bf16.xpose.msra.mxu0 0
      %1321 = vmatprep.subr.bf16.mxu0 0
      %1322 = vmatpush1.bf16.xpose.msra.mxu0 0
      %1323 = vmatprep.subr.bf16.mxu0 0
      %1324 = vmatpush1.bf16.xpose.msra.mxu0 0
      %1325 = vmatprep.mubr.bf16.mxu0 0
      %1326 = vmatmul.mubr.bf16.gmra.mrb[0].mxu0 %v1288
      %v1327 = vpop.f32.mrb[0].mxu0
      %v1328 = vadd.f32 0.0, %v1327
      %v1329 = vpop.f32.mrb[0].mxu0
      %v1330 = vpop.f32.mrb[0].mxu0
      %v1331 = vadd.f32 0.0, %v1330
      %v1332 = vpop.f32.mrb[0].mxu0
      %1333 = vdwg.mxu0
      %1334 = vrot.lane.b32.xlu0 %v666, 104
      %v1335 = vpop.permute.xlu0 %1334
      %1336 = vrot.lane.b32.xlu0 %v667, 104
      %v1337 = vpop.permute.xlu0 %1336
      %v1340 = vsel %vm618, %v1335, 0.0
      %1341 = vadd.xlane.f32.xlu0 %v1340
      %v1342 = vpop.xlane.xlu0 %1341
      %v1343 = vsel %vm618, %v1337, 0.0
      %1344 = vadd.xlane.f32.xlu0 %v1343
      %v1345 = vpop.xlane.xlu0 %1344
      %v1346 = vadd.f32 %v1342, 0.0001
      %v1347 = vadd.f32 %v1345, 0.0001
      %v1348 = vrsqrt.pop %v1346
      %v1349 = vmul.f32 %v1346, %v1348
      %vm1350 = vcmp.eq.f32.partialorder %v1346, inf
      %v1351 = vsel %vm1350, %v1346, %v1349
      %vm1352 = vcmp.eq.f32.partialorder %v1346, 0.0
      %v1353 = vand.u32 %v1346, 2147483648
      %v1354 = vsel %vm1352, %v1353, %v1351
      %v1355 = vrsqrt.pop %v1347
      %v1356 = vmul.f32 %v1347, %v1355
      %vm1357 = vcmp.eq.f32.partialorder %v1347, inf
      %v1358 = vsel %vm1357, %v1347, %v1356
      %vm1359 = vcmp.eq.f32.partialorder %v1347, 0.0
      %v1360 = vand.u32 %v1347, 2147483648
      %v1361 = vsel %vm1359, %v1360, %v1358
      %1362 = vrot.lane.b32.xlu0 %v666, 72
      %v1363 = vpop.permute.xlu0 %1362
      %1364 = vrot.lane.b32.xlu0 %v667, 72
      %v1365 = vpop.permute.xlu0 %1364
      %v1368 = vsel %vm618, %v1363, 0.0
      %1369 = vadd.xlane.f32.xlu0 %v1368
      %v1370 = vpop.xlane.xlu0 %1369
      %v1371 = vsel %vm618, %v1365, 0.0
      %1372 = vadd.xlane.f32.xlu0 %v1371
      %v1373 = vpop.xlane.xlu0 %1372
      %v1374 = vadd.f32 %v1370, 0.0001
      %v1375 = vadd.f32 %v1373, 0.0001
      %v1376 = vrsqrt.pop %v1374
      %v1377 = vmul.f32 %v1374, %v1376
      %vm1378 = vcmp.eq.f32.partialorder %v1374, inf
      %v1379 = vsel %vm1378, %v1374, %v1377
      %vm1380 = vcmp.eq.f32.partialorder %v1374, 0.0
      %v1381 = vand.u32 %v1374, 2147483648
      %v1382 = vsel %vm1380, %v1381, %v1379
      %v1383 = vrsqrt.pop %v1375
      %v1384 = vmul.f32 %v1375, %v1383
      %vm1385 = vcmp.eq.f32.partialorder %v1375, inf
      %v1386 = vsel %vm1385, %v1375, %v1384
      %vm1387 = vcmp.eq.f32.partialorder %v1375, 0.0
      %v1388 = vand.u32 %v1375, 2147483648
      %v1389 = vsel %vm1387, %v1388, %v1386
      %1390 = vxpose.xlu0.b32.start [1/16] %v1382, 128
      %1391 = vxpose.xlu0.b32.cont [2/16] %v1389, 128
      %1392 = vxpose.xlu0.b32.cont [3/16] 0.0, 128
      %1393 = vxpose.xlu0.b32.cont [4/16] 0.0, 128
      %1394 = vxpose.xlu0.b32.cont [5/16] 0.0, 128
      %1395 = vxpose.xlu0.b32.cont [6/16] 0.0, 128
      %1396 = vxpose.xlu0.b32.cont [7/16] 0.0, 128
      %1397 = vxpose.xlu0.b32.cont [8/16] 0.0, 128
      %1398 = vxpose.xlu0.b32.cont [9/16] 0.0, 128
      %1399 = vxpose.xlu0.b32.cont [10/16] 0.0, 128
      %1400 = vxpose.xlu0.b32.cont [11/16] 0.0, 128
      %1401 = vxpose.xlu0.b32.cont [12/16] 0.0, 128
      %1402 = vxpose.xlu0.b32.cont [13/16] 0.0, 128
      %1403 = vxpose.xlu0.b32.cont [14/16] 0.0, 128
      %1404 = vxpose.xlu0.b32.cont [15/16] 0.0, 128
      %1405 = vxpose.xlu0.b32.end [16/16] 0.0, 128
      %v1406 = vpop.trf.xlu0
      %v1407 = vpop.trf.xlu0
      %v1408 = vpop.trf.xlu0
      %v1409 = vpop.trf.xlu0
      %v1410 = vpop.trf.xlu0
      %v1411 = vpop.trf.xlu0
      %v1412 = vpop.trf.xlu0
      %v1413 = vpop.trf.xlu0
      %v1414 = vpop.trf.xlu0
      %v1415 = vpop.trf.xlu0
      %v1416 = vpop.trf.xlu0
      %v1417 = vpop.trf.xlu0
      %v1418 = vpop.trf.xlu0
      %v1419 = vpop.trf.xlu0
      %v1420 = vpop.trf.xlu0
      %v1421 = vpop.trf.xlu0
      %v1422 = vlaneseq
      %v1423 = vshrl.u32 %v1422, 7
      %v1424 = vsub.s32 0, %v1423
      %v1425 = vrot.slane %v1406, %v1424
      %v1426 = vmul.f32 %v1354, %v1425
      %v1427 = vmul.f32 %v1361, %v1425
      %v1428 = vadd.f32 %v1426, 0.0001
      %v1429 = vadd.f32 %v1427, 0.0001
      %v1430 = vrcp.pop %v1428
      %v1431 = vrcp.pop %v1429
      %v1432 = vmul.f32 %v1328, %v1430
      %v1433 = vmul.f32 %v1331, %v1431
      %1434 = vset.pattern.permute.xlu0 3
      %1435 = vperm.xlu0 %1434, %v769
      %v1436 = vpop.permute.xlu0 %1435
      %v1438 = vmul.f32 %v1436, %v612
      %v1439 = vmul.f32 %v1436, %v613
      %v1440 = vmul.f32 %v1438, 1.442695
      %v1441 = vpow.pop %v1440
      %v1442 = vmul.f32 %v1439, 1.442695
      %v1443 = vpow.pop %v1442
      %v1444 = vsel %vm780, %v1441, 0.0
      %1445 = vadd.xlane.f32.xlu0 %v1444
      %v1446 = vpop.xlane.xlu0 %1445
      %v1447 = vsel %vm780, %v1443, 0.0
      %1448 = vadd.xlane.f32.xlu0 %v1447
      %v1449 = vpop.xlane.xlu0 %1448
      %v1450 = vrcp.pop %v1446
      %v1451 = vrcp.pop %v1449
      %v1452 = vmul.f32 %v1441, %v1450
      %v1453 = vmul.f32 %v1443, %v1451
      %v1454 = vmul.f32 %v1432, %v1452
      %v1455 = vmul.f32 %v1433, %v1453
      %v1456 = vpack.c.bf16 %v1455, %v1454
      %1457 = vrot.lane.b32.xlu0 %v614, 40
      %v1458 = vpop.permute.xlu0 %1457
      %v1461 = vsel %vm780, %v1456, 0
      %1463 = vmatprep.subr.bf16.mxu0 0
      %1464 = vmatpush1.bf16.msra.mxu0 %v1458
      %1465 = vmatprep.subr.bf16.mxu0 0
      %1466 = vmatpush1.bf16.msra.mxu0 0
      %1467 = vmatprep.subr.bf16.mxu0 0
      %1468 = vmatpush1.bf16.msra.mxu0 0
      %1469 = vmatprep.subr.bf16.mxu0 0
      %1470 = vmatpush1.bf16.msra.mxu0 0
      %1471 = vmatprep.subr.bf16.mxu0 0
      %1472 = vmatpush1.bf16.msra.mxu0 0
      %1473 = vmatprep.subr.bf16.mxu0 0
      %1474 = vmatpush1.bf16.msra.mxu0 0
      %1475 = vmatprep.subr.bf16.mxu0 0
      %1476 = vmatpush1.bf16.msra.mxu0 0
      %1477 = vmatprep.subr.bf16.mxu0 0
      %1478 = vmatpush1.bf16.msra.mxu0 0
      %1479 = vmatprep.subr.bf16.mxu0 0
      %1480 = vmatpush1.bf16.msra.mxu0 0
      %1481 = vmatprep.subr.bf16.mxu0 0
      %1482 = vmatpush1.bf16.msra.mxu0 0
      %1483 = vmatprep.subr.bf16.mxu0 0
      %1484 = vmatpush1.bf16.msra.mxu0 0
      %1485 = vmatprep.subr.bf16.mxu0 0
      %1486 = vmatpush1.bf16.msra.mxu0 0
      %1487 = vmatprep.subr.bf16.mxu0 0
      %1488 = vmatpush1.bf16.msra.mxu0 0
      %1489 = vmatprep.subr.bf16.mxu0 0
      %1490 = vmatpush1.bf16.msra.mxu0 0
      %1491 = vmatprep.subr.bf16.mxu0 0
      %1492 = vmatpush1.bf16.msra.mxu0 0
      %1493 = vmatprep.subr.bf16.mxu0 0
      %1494 = vmatpush1.bf16.msra.mxu0 0
      %1495 = vmatprep.mubr.bf16.mxu0 0
      %1496 = vmatmul.mubr.bf16.gmra.mrb[0].mxu0 %v1461
      %v1497 = vpop.f32.mrb[0].mxu0
      %v1498 = vadd.f32 0.0, %v1497
      %v1499 = vpop.f32.mrb[0].mxu0
      %v1500 = vpop.f32.mrb[0].mxu0
      %v1501 = vadd.f32 0.0, %v1500
      %v1502 = vpop.f32.mrb[0].mxu0
      %1503 = vdwg.mxu0
      %1506 = vrot.lane.b32.xlu0 %v1056, 8
      %v1507 = vpop.permute.xlu0 %1506
      %1508 = vrot.lane.b32.xlu0 %v1059, 8
      %v1509 = vpop.permute.xlu0 %1508
      %1514 = vrot.lane.b32.xlu0 %v1277, 16
      %v1515 = vpop.permute.xlu0 %1514
      %1516 = vrot.lane.b32.xlu0 %v1280, 16
      %v1517 = vpop.permute.xlu0 %1516
      %1522 = vrot.lane.b32.xlu0 %v1498, 24
      %v1523 = vpop.permute.xlu0 %1522
      %1524 = vrot.lane.b32.xlu0 %v1501, 24
      %v1525 = vpop.permute.xlu0 %1524
      %v1528 = vsel %vm618, %v835, %v1507
      %v1529 = vsel %vm618, %v838, %v1509
      %v1530 = vsel %vm780, %v1528, %v1515
      %v1531 = vsel %vm780, %v1529, %v1517
      %vm1532 = vcmask 195584
      %v1533 = vsel %vm1532, %v1530, %v1523
      %v1534 = vsel %vm1532, %v1531, %v1525
      %v1535 = vpack.c.bf16 %v1534, %v1533
      %v1536 = vld [vmem:[%s5] sm:$0xf]
      %v1537 = vld [vmem:[%s5 + $0x4] sm:$0xf]
      %v1538 = vld [vmem:[%s5 + $0x8] sm:$0xf]
      %v1539 = vld [vmem:[%s5 + $0xc] sm:$0xf]
      %v1540 = vld [vmem:[%s6] sm:$0x1]
      %v1542 = vlaneseq
      %v1543 = vshrl.u32 %v1542, 7
      %v1544 = vsub.s32 0, %v1543
      %v1545 = vrot.slane %v1540, %v1544
      %v1551 = vunpack.c.l.b16 %v1536
      %v1552 = vunpack.c.l.b16 %v1537
      %v1553 = vunpack.c.l.b16 %v1538
      %v1554 = vunpack.c.l.b16 %v1539
      %v1555 = vpack.c.b16 %v1552, %v1551
      %v1556 = vpack.c.b16 %v1554, %v1553
      %v1560 = vsel %vm500, %v1535, 0
      %1562 = vmatprep.subr.bf16.mxu0 0
      %1563 = vmatpush1.bf16.msra.mxu0 %v1555
      %1564 = vmatprep.subr.bf16.mxu0 0
      %1565 = vmatpush1.bf16.msra.mxu0 %v1556
      %1566 = vmatprep.subr.bf16.mxu0 0
      %1567 = vmatpush1.bf16.msra.mxu0 0
      %1568 = vmatprep.subr.bf16.mxu0 0
      %1569 = vmatpush1.bf16.msra.mxu0 0
      %1570 = vmatprep.subr.bf16.mxu0 0
      %1571 = vmatpush1.bf16.msra.mxu0 0
      %1572 = vmatprep.subr.bf16.mxu0 0
      %1573 = vmatpush1.bf16.msra.mxu0 0
      %1574 = vmatprep.subr.bf16.mxu0 0
      %1575 = vmatpush1.bf16.msra.mxu0 0
      %1576 = vmatprep.subr.bf16.mxu0 0
      %1577 = vmatpush1.bf16.msra.mxu0 0
      %1578 = vmatprep.subr.bf16.mxu0 0
      %1579 = vmatpush1.bf16.msra.mxu0 0
      %1580 = vmatprep.subr.bf16.mxu0 0
      %1581 = vmatpush1.bf16.msra.mxu0 0
      %1582 = vmatprep.subr.bf16.mxu0 0
      %1583 = vmatpush1.bf16.msra.mxu0 0
      %1584 = vmatprep.subr.bf16.mxu0 0
      %1585 = vmatpush1.bf16.msra.mxu0 0
      %1586 = vmatprep.subr.bf16.mxu0 0
      %1587 = vmatpush1.bf16.msra.mxu0 0
      %1588 = vmatprep.subr.bf16.mxu0 0
      %1589 = vmatpush1.bf16.msra.mxu0 0
      %1590 = vmatprep.subr.bf16.mxu0 0
      %1591 = vmatpush1.bf16.msra.mxu0 0
      %1592 = vmatprep.subr.bf16.mxu0 0
      %1593 = vmatpush1.bf16.msra.mxu0 0
      %1594 = vmatprep.mubr.bf16.mxu0 0
      %1595 = vmatmul.mubr.bf16.gmra.mrb[0].mxu0 %v1560
      %v1596 = vpop.f32.mrb[0].mxu0
      %v1597 = vadd.f32 %v1545, %v1596
      %v1598 = vpop.f32.mrb[0].mxu0
      %v1599 = vpop.f32.mrb[0].mxu0
      %v1600 = vadd.f32 %v1545, %v1599
      %v1601 = vpop.f32.mrb[0].mxu0
      %1602 = vdwg.mxu0
      %v1603 = vadd.f32 %v1597, %v496
      %v1604 = vadd.f32 %v1600, %v497
      %v1605 = vld [vmem:[%s7] sm:$0x1]
      %v1606 = vld [vmem:[%s8] sm:$0x1]
      %v1607 = vsel %vm500, %v1603, 0.0
      %1608 = vadd.xlane.f32.xlu0 %v1607
      %v1609 = vpop.xlane.xlu0 %1608
      %v1610 = vsel %vm500, %v1604, 0.0
      %1611 = vadd.xlane.f32.xlu0 %v1610
      %v1612 = vpop.xlane.xlu0 %1611
      %v1613 = vmul.f32 %v1609, %v507
      %v1614 = vmul.f32 %v1612, %v507
      %v1615 = vsub.f32 %v1603, %v1613
      %v1616 = vsub.f32 %v1604, %v1614
      %v1617 = vmul.f32 %v1615, %v1615
      %v1618 = vmul.f32 %v1616, %v1616
      %v1619 = vsel %vm500, %v1617, 0.0
      %1620 = vadd.xlane.f32.xlu0 %v1619
      %v1621 = vpop.xlane.xlu0 %1620
      %v1622 = vsel %vm500, %v1618, 0.0
      %1623 = vadd.xlane.f32.xlu0 %v1622
      %v1624 = vpop.xlane.xlu0 %1623
      %v1625 = vmul.f32 %v1621, %v507
      %v1626 = vmul.f32 %v1624, %v507
      %v1627 = vadd.f32 %v1625, 1e-06
      %v1628 = vadd.f32 %v1626, 1e-06
      %v1629 = vrsqrt.pop %v1627
      %v1630 = vrsqrt.pop %v1628
      %v1631 = vmul.f32 %v1615, %v1629
      %v1632 = vmul.f32 %v1616, %v1630
      %v1634 = vlaneseq
      %v1635 = vshrl.u32 %v1634, 7
      %v1636 = vsub.s32 0, %v1635
      %v1637 = vrot.slane %v1605, %v1636
      %v1639 = vmul.f32 %v1631, %v1637
      %v1640 = vmul.f32 %v1632, %v1637
      %v1642 = vlaneseq
      %v1643 = vshrl.u32 %v1642, 7
      %v1644 = vsub.s32 0, %v1643
      %v1645 = vrot.slane %v1606, %v1644
      %v1647 = vadd.f32 %v1639, %v1645
      %v1648 = vadd.f32 %v1640, %v1645
      %v1649 = vpack.c.bf16 %v1648, %v1647
      %v1650 = vld [vmem:[%s9] sm:$0xf]
      %v1651 = vld [vmem:[%s9 + $0x4] sm:$0xf]
      %v1652 = vld [vmem:[%s9 + $0x8] sm:$0xf]
      %v1653 = vld [vmem:[%s9 + $0xc] sm:$0xf]
      %v1654 = vld [vmem:[%s10] sm:$0x1]
      %v1656 = vlaneseq
      %v1657 = vshrl.u32 %v1656, 7
      %v1658 = vsub.s32 0, %v1657
      %v1659 = vrot.slane %v1654, %v1658
      %v1665 = vunpack.c.l.b16 %v1650
      %v1666 = vunpack.c.l.b16 %v1651
      %v1667 = vunpack.c.l.b16 %v1652
      %v1668 = vunpack.c.l.b16 %v1653
      %v1669 = vpack.c.b16 %v1666, %v1665
      %v1670 = vpack.c.b16 %v1668, %v1667
      %v1674 = vsel %vm500, %v1649, 0
      %1676 = vmatprep.subr.bf16.mxu0 0
      %1677 = vmatpush1.bf16.msra.mxu0 %v1669
      %1678 = vmatprep.subr.bf16.mxu0 0
      %1679 = vmatpush1.bf16.msra.mxu0 %v1670
      %1680 = vmatprep.subr.bf16.mxu0 0
      %1681 = vmatpush1.bf16.msra.mxu0 0
      %1682 = vmatprep.subr.bf16.mxu0 0
      %1683 = vmatpush1.bf16.msra.mxu0 0
      %1684 = vmatprep.subr.bf16.mxu0 0
      %1685 = vmatpush1.bf16.msra.mxu0 0
      %1686 = vmatprep.subr.bf16.mxu0 0
      %1687 = vmatpush1.bf16.msra.mxu0 0
      %1688 = vmatprep.subr.bf16.mxu0 0
      %1689 = vmatpush1.bf16.msra.mxu0 0
      %1690 = vmatprep.subr.bf16.mxu0 0
      %1691 = vmatpush1.bf16.msra.mxu0 0
      %1692 = vmatprep.subr.bf16.mxu0 0
      %1693 = vmatpush1.bf16.msra.mxu0 0
      %1694 = vmatprep.subr.bf16.mxu0 0
      %1695 = vmatpush1.bf16.msra.mxu0 0
      %1696 = vmatprep.subr.bf16.mxu0 0
      %1697 = vmatpush1.bf16.msra.mxu0 0
      %1698 = vmatprep.subr.bf16.mxu0 0
      %1699 = vmatpush1.bf16.msra.mxu0 0
      %1700 = vmatprep.subr.bf16.mxu0 0
      %1701 = vmatpush1.bf16.msra.mxu0 0
      %1702 = vmatprep.subr.bf16.mxu0 0
      %1703 = vmatpush1.bf16.msra.mxu0 0
      %1704 = vmatprep.subr.bf16.mxu0 0
      %1705 = vmatpush1.bf16.msra.mxu0 0
      %1706 = vmatprep.subr.bf16.mxu0 0
      %1707 = vmatpush1.bf16.msra.mxu0 0
      %1708 = vmatprep.mubr.bf16.mxu0 0
      %1709 = vmatmul.mubr.bf16.gmra.mrb[0].mxu0 %v1674
      %v1710 = vpop.f32.mrb[0].mxu0
      %v1711 = vadd.f32 %v1659, %v1710
      %v1712 = vpop.f32.mrb[0].mxu0
      %v1713 = vpop.f32.mrb[0].mxu0
      %v1714 = vadd.f32 %v1659, %v1713
      %v1715 = vpop.f32.mrb[0].mxu0
      %1716 = vdwg.mxu0
      %v1717 = vmul.f32 %v1711, 0.5
      %v1718 = vmul.f32 %v1714, 0.5
      %v1719 = vmul.f32 %v1711, 0.70710677
      %v1720 = vmul.f32 %v1714, 0.70710677
      %vm1721 = vcmp.lt.f32.partialorder %v1719, 0.0
      %vm1722 = vcmp.lt.f32.partialorder %v1720, 0.0
      %v1723 = vsel %vm1721, -1.0, 1.0
      %v1724 = vsel %vm1722, -1.0, 1.0
      %v1725 = vand.u32 2147483647, %v1719
      %v1726 = vand.u32 2147483647, %v1720
      %v1727 = vmul.f32 %v1725, 0.3275911
      %v1728 = vmul.f32 %v1726, 0.3275911
      %v1729 = vadd.f32 %v1727, 1.0
      %v1730 = vadd.f32 %v1728, 1.0
      %v1731 = vrcp.pop %v1729
      %v1732 = vmul.f32 1.0, %v1731
      %v1733 = vrcp.pop %v1730
      %v1734 = vmul.f32 1.0, %v1733
      %v1735 = vmul.f32 %v1732, 1.0614054
      %v1736 = vmul.f32 %v1734, 1.0614054
      %v1737 = vadd.f32 %v1735, -1.4531521
      %v1738 = vadd.f32 %v1736, -1.4531521
      %v1739 = vmul.f32 %v1737, %v1732
      %v1740 = vmul.f32 %v1738, %v1734
      %v1741 = vadd.f32 %v1739, 1.4214138
      %v1742 = vadd.f32 %v1740, 1.4214138
      %v1743 = vmul.f32 %v1741, %v1732
      %v1744 = vmul.f32 %v1742, %v1734
      %v1745 = vadd.f32 %v1743, -0.28449672
      %v1746 = vadd.f32 %v1744, -0.28449672
      %v1747 = vmul.f32 %v1745, %v1732
      %v1748 = vmul.f32 %v1746, %v1734
      %v1749 = vadd.f32 %v1747, 0.2548296
      %v1750 = vadd.f32 %v1748, 0.2548296
      %v1751 = vmul.f32 %v1749, %v1732
      %v1752 = vmul.f32 %v1750, %v1734
      %v1753 = vsub.f32 0.0, %v1725
      %v1754 = vsub.f32 0.0, %v1726
      %v1755 = vmul.f32 %v1753, %v1725
      %v1756 = vmul.f32 %v1754, %v1726
      %v1757 = vmul.f32 %v1755, 1.442695
      %v1758 = vpow.pop %v1757
      %v1759 = vmul.f32 %v1756, 1.442695
      %v1760 = vpow.pop %v1759
      %v1761 = vmul.f32 %v1751, %v1758
      %v1762 = vmul.f32 %v1752, %v1760
      %v1763 = vsub.f32 1.0, %v1761
      %v1764 = vsub.f32 1.0, %v1762
      %v1765 = vmul.f32 %v1723, %v1763
      %v1766 = vmul.f32 %v1724, %v1764
      %v1767 = vadd.f32 %v1765, 1.0
      %v1768 = vadd.f32 %v1766, 1.0
      %v1769 = vmul.f32 %v1717, %v1767
      %v1770 = vmul.f32 %v1718, %v1768
      %v1771 = vpack.c.bf16 %v1770, %v1769
      %v1772 = vld [vmem:[%s11] sm:$0xf]
      %v1773 = vld [vmem:[%s11 + $0x4] sm:$0xf]
      %v1774 = vld [vmem:[%s11 + $0x8] sm:$0xf]
      %v1775 = vld [vmem:[%s11 + $0xc] sm:$0xf]
      %v1776 = vld [vmem:[%s11 + $0x10] sm:$0xf]
      %v1777 = vld [vmem:[%s11 + $0x14] sm:$0xf]
      %v1778 = vld [vmem:[%s11 + $0x18] sm:$0xf]
      %v1779 = vld [vmem:[%s11 + $0x1c] sm:$0xf]
      %v1780 = vld [vmem:[%s12] sm:$0x1]
      %v1782 = vlaneseq
      %v1783 = vshrl.u32 %v1782, 7
      %v1784 = vsub.s32 0, %v1783
      %v1785 = vrot.slane %v1780, %v1784
      %v1795 = vunpack.c.l.b16 %v1772
      %v1796 = vunpack.c.l.b16 %v1773
      %v1797 = vunpack.c.l.b16 %v1774
      %v1798 = vunpack.c.l.b16 %v1775
      %v1799 = vunpack.c.l.b16 %v1776
      %v1800 = vunpack.c.l.b16 %v1777
      %v1801 = vunpack.c.l.b16 %v1778
      %v1802 = vunpack.c.l.b16 %v1779
      %v1803 = vpack.c.b16 %v1796, %v1795
      %v1804 = vpack.c.b16 %v1798, %v1797
      %v1805 = vpack.c.b16 %v1800, %v1799
      %v1806 = vpack.c.b16 %v1802, %v1801
      %vm1811 = vcmask 523264
      %v1813 = vsel %vm1811, %v1771, 0
      %1815 = vmatprep.subr.bf16.mxu0 0
      %1816 = vmatpush1.bf16.msra.mxu0 %v1803
      %1817 = vmatprep.subr.bf16.mxu0 0
      %1818 = vmatpush1.bf16.msra.mxu0 %v1804
      %1819 = vmatprep.subr.bf16.mxu0 0
      %1820 = vmatpush1.bf16.msra.mxu0 %v1805
      %1821 = vmatprep.subr.bf16.mxu0 0
      %1822 = vmatpush1.bf16.msra.mxu0 %v1806
      %1823 = vmatprep.subr.bf16.mxu0 0
      %1824 = vmatpush1.bf16.msra.mxu0 0
      %1825 = vmatprep.subr.bf16.mxu0 0
      %1826 = vmatpush1.bf16.msra.mxu0 0
      %1827 = vmatprep.subr.bf16.mxu0 0
      %1828 = vmatpush1.bf16.msra.mxu0 0
      %1829 = vmatprep.subr.bf16.mxu0 0
      %1830 = vmatpush1.bf16.msra.mxu0 0
      %1831 = vmatprep.subr.bf16.mxu0 0
      %1832 = vmatpush1.bf16.msra.mxu0 0
      %1833 = vmatprep.subr.bf16.mxu0 0
      %1834 = vmatpush1.bf16.msra.mxu0 0
      %1835 = vmatprep.subr.bf16.mxu0 0
      %1836 = vmatpush1.bf16.msra.mxu0 0
      %1837 = vmatprep.subr.bf16.mxu0 0
      %1838 = vmatpush1.bf16.msra.mxu0 0
      %1839 = vmatprep.subr.bf16.mxu0 0
      %1840 = vmatpush1.bf16.msra.mxu0 0
      %1841 = vmatprep.subr.bf16.mxu0 0
      %1842 = vmatpush1.bf16.msra.mxu0 0
      %1843 = vmatprep.subr.bf16.mxu0 0
      %1844 = vmatpush1.bf16.msra.mxu0 0
      %1845 = vmatprep.subr.bf16.mxu0 0
      %1846 = vmatpush1.bf16.msra.mxu0 0
      %1847 = vmatprep.mubr.bf16.mxu0 0
      %1848 = vmatmul.mubr.bf16.gmra.mrb[0].mxu0 %v1813
      %v1849 = vpop.f32.mrb[0].mxu0
      %v1850 = vadd.f32 %v1785, %v1849
      %v1851 = vpop.f32.mrb[0].mxu0
      %v1852 = vpop.f32.mrb[0].mxu0
      %v1853 = vadd.f32 %v1785, %v1852
      %v1854 = vpop.f32.mrb[0].mxu0
      %1855 = vdwg.mxu0
      %v1856 = vadd.f32 %v1850, %v1603
      %v1857 = vadd.f32 %v1853, %v1604
      %1858 = vst.msk [vmem:[%s494] sm:$0xff] %vm500, %v1856
      %1859 = vst.msk [vmem:[%s494 + $0x8] sm:$0xff] %vm500, %v1857
      %p1860 = scmp.lt.s32.totalorder %s26, 1
      %s1861 = scalar_select %p1860, %s26, 1
      %s1862 = smul.addr %s1861, 2
      %s1863 = smul.addr %s1862, 8
      %s1864 = scalar_lea.vmem %s15, %s1863
      // Predicated region
      $region81: #{transformer_forward.4} parent=79 // pred_check
        %p1865 = pneg %p364
      $region82: #{transformer_forward.4} parent=79 // pred_check_branch
        %1867 = sbr.rel (%p1865) target = $region84
      $region83: #{transformer_forward.4} parent=79 // pred_region
        _
      $region84: #{transformer_forward.4} parent=79 // pred_fallthru
        _
    $region80: #{transformer_forward.4} parent=5 // pred_fallthru
      _
    %p1868 = scmp.le.s32.totalorder 2, %s21
    // Predicated region
    $region85: #{transformer_forward.4} parent=5 // pred_check
      %p1869 = pneg %p1868
    $region86: #{transformer_forward.4} parent=5 // pred_check_branch
      %1871 = sbr.rel (%p1869) target = $region88
    $region87: #{transformer_forward.4} parent=5 // pred_region
      %s1872 = ssub.s32 %s21, 2
      // Predicated region
      $region89: #{transformer_forward.4} parent=87 // pred_check
        %p1873 = pneg %p370
      $region90: #{transformer_forward.4} parent=87 // pred_check_branch
        %1875 = sbr.rel (%p1873) target = $region92
      $region91: #{transformer_forward.4} parent=87 // pred_region
        %p1876 = scmp.lt.s32.totalorder %s27, 1
        %s1877 = scalar_select %p1876, %s27, 1
        %s1878 = smul.addr %s1877, 2
        %s1879 = smul.addr %s1878, 8
        %s1880 = scalar_lea.vmem %s15, %s1879
      $region92: #{transformer_forward.4} parent=87 // pred_fallthru
        _
    $region88: #{transformer_forward.4} parent=5 // pred_fallthru
      _
  $region6: #{transformer_forward.4} parent=0 // loop_footer
    %s25 = sadd.s32 1, %s21
  $region7: #{transformer_forward.4} parent=0 // loop_footer_branch
    %20 = sbr.rel target = $region3
  $region8: #{transformer_forward.4} parent=0 // loop_exit
    _

// kernel: transformer_forward.5
$region0: #{transformer_forward.5}
  #allocation0 [shape = 'u32[]', space=smem, size = 0x4, offset = 0x4, fixed_abs, tag = 'smem constant byte address 0x4 - core index']
  #allocation1 [shape = 'u32[144,128]{1,0:T(1,128)}', space=vmem, size = 0x12000, scoped, tag = 'internal scratch']
  %s0 = inlined_call_operand.vmem [shape: f32[2,16,32], index: 0, kind: input, shape index: {}]
  %s1 = inlined_call_operand.vmem [shape: f32[1,32], index: 1, kind: input, shape index: {}]
  %s2 = inlined_call_operand.vmem [shape: f32[1,32], index: 2, kind: input, shape index: {}]
  %s3 = inlined_call_operand.vmem [shape: bf16[32,96], index: 3, kind: input, shape index: {}]
  %s4 = inlined_call_operand.vmem [shape: f32[1,96], index: 4, kind: input, shape index: {}]
  %s5 = inlined_call_operand.vmem [shape: bf16[32,32], index: 5, kind: input, shape index: {}]
  %s6 = inlined_call_operand.vmem [shape: f32[1,32], index: 6, kind: input, shape index: {}]
  %s7 = inlined_call_operand.vmem [shape: f32[1,32], index: 7, kind: input, shape index: {}]
  %s8 = inlined_call_operand.vmem [shape: f32[1,32], index: 8, kind: input, shape index: {}]
  %s9 = inlined_call_operand.vmem [shape: bf16[32,64], index: 9, kind: input, shape index: {}]
  %s10 = inlined_call_operand.vmem [shape: f32[1,64], index: 10, kind: input, shape index: {}]
  %s11 = inlined_call_operand.vmem [shape: bf16[64,32], index: 11, kind: input, shape index: {}]
  %s12 = inlined_call_operand.vmem [shape: f32[1,32], index: 12, kind: input, shape index: {}]
  %s13 = inlined_call_operand.vmem [shape: f32[1,4], index: 13, kind: input, shape index: {}]
  %s14 = inlined_call_operand.vmem [shape: f32[16,16], index: 14, kind: input, shape index: {}]
  %s15 = inlined_call_operand.vmem [shape: f32[1,32], index: 15, kind: input, shape index: {}]
  %s16 = inlined_call_operand.vmem [shape: f32[1,32], index: 16, kind: input, shape index: {}]
  %s17 = inlined_call_operand.hbm [shape: f32[2,16,32], index: 17, kind: output, shape index: {}]
  %s18 = sld [smem:[#allocation0]]
  $region101: #{transformer_forward.5} parent=0
    _
  %s20 = ssub.s32 1, %s18
  %s21 = scalar_select 0, %s20, %s18
  $region1: #{transformer_forward.5} parent=0
    #allocation2 [shape = 'u8[16384]{0}', space=vmem, size = 0x4000, scoped, tag = 'output window, operand 0']
    #allocation3 [shape = 's32[2]{0}', space=sflag, size = 0x8, scoped, tag = 'scoped memory for transformer_forward.5']
    %22 = vsyncpa [#allocation3], 0
    %s23 = scalar_lea.sflag [#allocation3], 1
    %24 = vsyncpa %s23, 0
    loop: start=0, step=1, limit=4
    $region2: #{transformer_forward.5} parent=1 // loop_pre_header
      _
    $region3: #{transformer_forward.5} parent=1 // loop_header
      %s26 = sphi 0, %s30
      %p27 = scmp.ge.s32.totalorder %s26, 4
      %s36 = sphi 0, %s38
      %s39 = sphi 0, %s36
      %s40 = sphi 0, %s39
      %s56 = sphi 0, %s40
      %s60 = sphi 0, %s60
      %s62 = sphi 0, %s60
      %s63 = sphi 0, %s62
      %s77 = sphi 0, %s63
      %s81 = sphi 0, %s81
      %s83 = sphi 0, %s81
      %s84 = sphi 0, %s83
      %s98 = sphi 0, %s84
      %s102 = sphi 0, %s102
      %s104 = sphi 0, %s102
      %s105 = sphi 0, %s104
      %s119 = sphi 0, %s105
      %s123 = sphi 0, %s123
      %s125 = sphi 0, %s123
      %s126 = sphi 0, %s125
      %s140 = sphi 0, %s126
      %s144 = sphi 0, %s144
      %s146 = sphi 0, %s144
      %s147 = sphi 0, %s146
      %s161 = sphi 0, %s147
      %s165 = sphi 0, %s165
      %s167 = sphi 0, %s165
      %s168 = sphi 0, %s167
      %s182 = sphi 0, %s168
      %s186 = sphi 0, %s186
      %s188 = sphi 0, %s186
      %s189 = sphi 0, %s188
      %s203 = sphi 0, %s189
      %s207 = sphi 0, %s207
      %s209 = sphi 0, %s207
      %s210 = sphi 0, %s209
      %s224 = sphi 0, %s210
      %s228 = sphi 0, %s228
      %s230 = sphi 0, %s228
      %s231 = sphi 0, %s230
      %s245 = sphi 0, %s231
      %s249 = sphi 0, %s249
      %s251 = sphi 0, %s249
      %s252 = sphi 0, %s251
      %s266 = sphi 0, %s252
      %s270 = sphi 0, %s270
      %s272 = sphi 0, %s270
      %s273 = sphi 0, %s272
      %s287 = sphi 0, %s273
      %s291 = sphi 0, %s291
      %s293 = sphi 0, %s291
      %s294 = sphi 0, %s293
      %s308 = sphi 0, %s294
      %s312 = sphi 0, %s312
      %s314 = sphi 0, %s312
      %s315 = sphi 0, %s314
      %s329 = sphi 0, %s315
      %s333 = sphi 0, %s333
      %s335 = sphi 0, %s333
      %s336 = sphi 0, %s335
      %s350 = sphi 0, %s336
      %s354 = sphi 0, %s354
      %s356 = sphi 0, %s354
      %s357 = sphi 0, %s356
      %s371 = sphi 0, %s357
      %s375 = sphi 0, %s375
      %s377 = sphi 0, %s375
      %s378 = sphi 0, %s377
      %s392 = sphi 0, %s378
      %s398 = sphi 0, %s400
      %s401 = sphi 0, %s398
      %s402 = sphi 0, %s401
      %s418 = sphi 0, %s402
    $region4: #{transformer_forward.5} parent=1 // loop_header_branch
      %29 = sbr.rel (%p27) target = $region8
    $region5: #{transformer_forward.5} parent=1 // loop_body
      %s31 = ssub.s32 %s26, 1
      %s32 = ssub.s32 %s26, 2
      %s33 = sadd.s32 %s26, 1
      %s34 = ssub.s32 %s26, %s33
      %p35 = scmp.eq.s32.totalorder %s34, 0
      %s37 = sadd.s32 %s36, 1
      %s38 = scalar_select %p35, %s36, %s37
      %p41 = pneg %p35
      %p42 = scmp.eq.s32.totalorder %s26, 1
      %p43 = por %p41, %p42
      %p44 = scmp.ne.s32.totalorder %s36, %s39
      %p45 = scmp.eq.s32.totalorder %s26, 0
      %p46 = por %p44, %p45
      %p47 = scmp.ne.s32.totalorder %s36, %s39
      %p48 = scmp.eq.s32.totalorder %s31, 1
      %p49 = por %p47, %p48
      %p50 = scmp.ne.s32.totalorder %s39, %s40
      %p51 = scmp.eq.s32.totalorder %s31, 0
      %p52 = por %p50, %p51
      %p53 = scmp.ne.s32.totalorder %s39, %s40
      %p54 = scmp.eq.s32.totalorder %s32, 1
      %p55 = por %p53, %p54
      %p57 = scmp.ne.s32.totalorder %s40, %s56
      %p58 = scmp.eq.s32.totalorder %s32, 0
      %p59 = por %p57, %p58
      %s61 = sadd.s32 %s60, 1
      %p64 = scmp.eq.s32.totalorder %s26, 1
      %p65 = scmp.ne.s32.totalorder %s60, %s62
      %p66 = scmp.eq.s32.totalorder %s26, 0
      %p67 = por %p65, %p66
      %p68 = scmp.ne.s32.totalorder %s60, %s62
      %p69 = scmp.eq.s32.totalorder %s31, 1
      %p70 = por %p68, %p69
      %p71 = scmp.ne.s32.totalorder %s62, %s63
      %p72 = scmp.eq.s32.totalorder %s31, 0
      %p73 = por %p71, %p72
      %p74 = scmp.ne.s32.totalorder %s62, %s63
      %p75 = scmp.eq.s32.totalorder %s32, 1
      %p76 = por %p74, %p75
      %p78 = scmp.ne.s32.totalorder %s63, %s77
      %p79 = scmp.eq.s32.totalorder %s32, 0
      %p80 = por %p78, %p79
      %s82 = sadd.s32 %s81, 1
      %p85 = scmp.eq.s32.totalorder %s26, 1
      %p86 = scmp.ne.s32.totalorder %s81, %s83
      %p87 = scmp.eq.s32.totalorder %s26, 0
      %p88 = por %p86, %p87
      %p89 = scmp.ne.s32.totalorder %s81, %s83
      %p90 = scmp.eq.s32.totalorder %s31, 1
      %p91 = por %p89, %p90
      %p92 = scmp.ne.s32.totalorder %s83, %s84
      %p93 = scmp.eq.s32.totalorder %s31, 0
      %p94 = por %p92, %p93
      %p95 = scmp.ne.s32.totalorder %s83, %s84
      %p96 = scmp.eq.s32.totalorder %s32, 1
      %p97 = por %p95, %p96
      %p99 = scmp.ne.s32.totalorder %s84, %s98
      %p100 = scmp.eq.s32.totalorder %s32, 0
      %p101 = por %p99, %p100
      %s103 = sadd.s32 %s102, 1
      %p106 = scmp.eq.s32.totalorder %s26, 1
      %p107 = scmp.ne.s32.totalorder %s102, %s104
      %p108 = scmp.eq.s32.totalorder %s26, 0
      %p109 = por %p107, %p108
      %p110 = scmp.ne.s32.totalorder %s102, %s104
      %p111 = scmp.eq.s32.totalorder %s31, 1
      %p112 = por %p110, %p111
      %p113 = scmp.ne.s32.totalorder %s104, %s105
      %p114 = scmp.eq.s32.totalorder %s31, 0
      %p115 = por %p113, %p114
      %p116 = scmp.ne.s32.totalorder %s104, %s105
      %p117 = scmp.eq.s32.totalorder %s32, 1
      %p118 = por %p116, %p117
      %p120 = scmp.ne.s32.totalorder %s105, %s119
      %p121 = scmp.eq.s32.totalorder %s32, 0
      %p122 = por %p120, %p121
      %s124 = sadd.s32 %s123, 1
      %p127 = scmp.eq.s32.totalorder %s26, 1
      %p128 = scmp.ne.s32.totalorder %s123, %s125
      %p129 = scmp.eq.s32.totalorder %s26, 0
      %p130 = por %p128, %p129
      %p131 = scmp.ne.s32.totalorder %s123, %s125
      %p132 = scmp.eq.s32.totalorder %s31, 1
      %p133 = por %p131, %p132
      %p134 = scmp.ne.s32.totalorder %s125, %s126
      %p135 = scmp.eq.s32.totalorder %s31, 0
      %p136 = por %p134, %p135
      %p137 = scmp.ne.s32.totalorder %s125, %s126
      %p138 = scmp.eq.s32.totalorder %s32, 1
      %p139 = por %p137, %p138
      %p141 = scmp.ne.s32.totalorder %s126, %s140
      %p142 = scmp.eq.s32.totalorder %s32, 0
      %p143 = por %p141, %p142
      %s145 = sadd.s32 %s144, 1
      %p148 = scmp.eq.s32.totalorder %s26, 1
      %p149 = scmp.ne.s32.totalorder %s144, %s146
      %p150 = scmp.eq.s32.totalorder %s26, 0
      %p151 = por %p149, %p150
      %p152 = scmp.ne.s32.totalorder %s144, %s146
      %p153 = scmp.eq.s32.totalorder %s31, 1
      %p154 = por %p152, %p153
      %p155 = scmp.ne.s32.totalorder %s146, %s147
      %p156 = scmp.eq.s32.totalorder %s31, 0
      %p157 = por %p155, %p156
      %p158 = scmp.ne.s32.totalorder %s146, %s147
      %p159 = scmp.eq.s32.totalorder %s32, 1
      %p160 = por %p158, %p159
      %p162 = scmp.ne.s32.totalorder %s147, %s161
      %p163 = scmp.eq.s32.totalorder %s32, 0
      %p164 = por %p162, %p163
      %s166 = sadd.s32 %s165, 1
      %p169 = scmp.eq.s32.totalorder %s26, 1
      %p170 = scmp.ne.s32.totalorder %s165, %s167
      %p171 = scmp.eq.s32.totalorder %s26, 0
      %p172 = por %p170, %p171
      %p173 = scmp.ne.s32.totalorder %s165, %s167
      %p174 = scmp.eq.s32.totalorder %s31, 1
      %p175 = por %p173, %p174
      %p176 = scmp.ne.s32.totalorder %s167, %s168
      %p177 = scmp.eq.s32.totalorder %s31, 0
      %p178 = por %p176, %p177
      %p179 = scmp.ne.s32.totalorder %s167, %s168
      %p180 = scmp.eq.s32.totalorder %s32, 1
      %p181 = por %p179, %p180
      %p183 = scmp.ne.s32.totalorder %s168, %s182
      %p184 = scmp.eq.s32.totalorder %s32, 0
      %p185 = por %p183, %p184
      %s187 = sadd.s32 %s186, 1
      %p190 = scmp.eq.s32.totalorder %s26, 1
      %p191 = scmp.ne.s32.totalorder %s186, %s188
      %p192 = scmp.eq.s32.totalorder %s26, 0
      %p193 = por %p191, %p192
      %p194 = scmp.ne.s32.totalorder %s186, %s188
      %p195 = scmp.eq.s32.totalorder %s31, 1
      %p196 = por %p194, %p195
      %p197 = scmp.ne.s32.totalorder %s188, %s189
      %p198 = scmp.eq.s32.totalorder %s31, 0
      %p199 = por %p197, %p198
      %p200 = scmp.ne.s32.totalorder %s188, %s189
      %p201 = scmp.eq.s32.totalorder %s32, 1
      %p202 = por %p200, %p201
      %p204 = scmp.ne.s32.totalorder %s189, %s203
      %p205 = scmp.eq.s32.totalorder %s32, 0
      %p206 = por %p204, %p205
      %s208 = sadd.s32 %s207, 1
      %p211 = scmp.eq.s32.totalorder %s26, 1
      %p212 = scmp.ne.s32.totalorder %s207, %s209
      %p213 = scmp.eq.s32.totalorder %s26, 0
      %p214 = por %p212, %p213
      %p215 = scmp.ne.s32.totalorder %s207, %s209
      %p216 = scmp.eq.s32.totalorder %s31, 1
      %p217 = por %p215, %p216
      %p218 = scmp.ne.s32.totalorder %s209, %s210
      %p219 = scmp.eq.s32.totalorder %s31, 0
      %p220 = por %p218, %p219
      %p221 = scmp.ne.s32.totalorder %s209, %s210
      %p222 = scmp.eq.s32.totalorder %s32, 1
      %p223 = por %p221, %p222
      %p225 = scmp.ne.s32.totalorder %s210, %s224
      %p226 = scmp.eq.s32.totalorder %s32, 0
      %p227 = por %p225, %p226
      %s229 = sadd.s32 %s228, 1
      %p232 = scmp.eq.s32.totalorder %s26, 1
      %p233 = scmp.ne.s32.totalorder %s228, %s230
      %p234 = scmp.eq.s32.totalorder %s26, 0
      %p235 = por %p233, %p234
      %p236 = scmp.ne.s32.totalorder %s228, %s230
      %p237 = scmp.eq.s32.totalorder %s31, 1
      %p238 = por %p236, %p237
      %p239 = scmp.ne.s32.totalorder %s230, %s231
      %p240 = scmp.eq.s32.totalorder %s31, 0
      %p241 = por %p239, %p240
      %p242 = scmp.ne.s32.totalorder %s230, %s231
      %p243 = scmp.eq.s32.totalorder %s32, 1
      %p244 = por %p242, %p243
      %p246 = scmp.ne.s32.totalorder %s231, %s245
      %p247 = scmp.eq.s32.totalorder %s32, 0
      %p248 = por %p246, %p247
      %s250 = sadd.s32 %s249, 1
      %p253 = scmp.eq.s32.totalorder %s26, 1
      %p254 = scmp.ne.s32.totalorder %s249, %s251
      %p255 = scmp.eq.s32.totalorder %s26, 0
      %p256 = por %p254, %p255
      %p257 = scmp.ne.s32.totalorder %s249, %s251
      %p258 = scmp.eq.s32.totalorder %s31, 1
      %p259 = por %p257, %p258
      %p260 = scmp.ne.s32.totalorder %s251, %s252
      %p261 = scmp.eq.s32.totalorder %s31, 0
      %p262 = por %p260, %p261
      %p263 = scmp.ne.s32.totalorder %s251, %s252
      %p264 = scmp.eq.s32.totalorder %s32, 1
      %p265 = por %p263, %p264
      %p267 = scmp.ne.s32.totalorder %s252, %s266
      %p268 = scmp.eq.s32.totalorder %s32, 0
      %p269 = por %p267, %p268
      %s271 = sadd.s32 %s270, 1
      %p274 = scmp.eq.s32.totalorder %s26, 1
      %p275 = scmp.ne.s32.totalorder %s270, %s272
      %p276 = scmp.eq.s32.totalorder %s26, 0
      %p277 = por %p275, %p276
      %p278 = scmp.ne.s32.totalorder %s270, %s272
      %p279 = scmp.eq.s32.totalorder %s31, 1
      %p280 = por %p278, %p279
      %p281 = scmp.ne.s32.totalorder %s272, %s273
      %p282 = scmp.eq.s32.totalorder %s31, 0
      %p283 = por %p281, %p282
      %p284 = scmp.ne.s32.totalorder %s272, %s273
      %p285 = scmp.eq.s32.totalorder %s32, 1
      %p286 = por %p284, %p285
      %p288 = scmp.ne.s32.totalorder %s273, %s287
      %p289 = scmp.eq.s32.totalorder %s32, 0
      %p290 = por %p288, %p289
      %s292 = sadd.s32 %s291, 1
      %p295 = scmp.eq.s32.totalorder %s26, 1
      %p296 = scmp.ne.s32.totalorder %s291, %s293
      %p297 = scmp.eq.s32.totalorder %s26, 0
      %p298 = por %p296, %p297
      %p299 = scmp.ne.s32.totalorder %s291, %s293
      %p300 = scmp.eq.s32.totalorder %s31, 1
      %p301 = por %p299, %p300
      %p302 = scmp.ne.s32.totalorder %s293, %s294
      %p303 = scmp.eq.s32.totalorder %s31, 0
      %p304 = por %p302, %p303
      %p305 = scmp.ne.s32.totalorder %s293, %s294
      %p306 = scmp.eq.s32.totalorder %s32, 1
      %p307 = por %p305, %p306
      %p309 = scmp.ne.s32.totalorder %s294, %s308
      %p310 = scmp.eq.s32.totalorder %s32, 0
      %p311 = por %p309, %p310
      %s313 = sadd.s32 %s312, 1
      %p316 = scmp.eq.s32.totalorder %s26, 1
      %p317 = scmp.ne.s32.totalorder %s312, %s314
      %p318 = scmp.eq.s32.totalorder %s26, 0
      %p319 = por %p317, %p318
      %p320 = scmp.ne.s32.totalorder %s312, %s314
      %p321 = scmp.eq.s32.totalorder %s31, 1
      %p322 = por %p320, %p321
      %p323 = scmp.ne.s32.totalorder %s314, %s315
      %p324 = scmp.eq.s32.totalorder %s31, 0
      %p325 = por %p323, %p324
      %p326 = scmp.ne.s32.totalorder %s314, %s315
      %p327 = scmp.eq.s32.totalorder %s32, 1
      %p328 = por %p326, %p327
      %p330 = scmp.ne.s32.totalorder %s315, %s329
      %p331 = scmp.eq.s32.totalorder %s32, 0
      %p332 = por %p330, %p331
      %s334 = sadd.s32 %s333, 1
      %p337 = scmp.eq.s32.totalorder %s26, 1
      %p338 = scmp.ne.s32.totalorder %s333, %s335
      %p339 = scmp.eq.s32.totalorder %s26, 0
      %p340 = por %p338, %p339
      %p341 = scmp.ne.s32.totalorder %s333, %s335
      %p342 = scmp.eq.s32.totalorder %s31, 1
      %p343 = por %p341, %p342
      %p344 = scmp.ne.s32.totalorder %s335, %s336
      %p345 = scmp.eq.s32.totalorder %s31, 0
      %p346 = por %p344, %p345
      %p347 = scmp.ne.s32.totalorder %s335, %s336
      %p348 = scmp.eq.s32.totalorder %s32, 1
      %p349 = por %p347, %p348
      %p351 = scmp.ne.s32.totalorder %s336, %s350
      %p352 = scmp.eq.s32.totalorder %s32, 0
      %p353 = por %p351, %p352
      %s355 = sadd.s32 %s354, 1
      %p358 = scmp.eq.s32.totalorder %s26, 1
      %p359 = scmp.ne.s32.totalorder %s354, %s356
      %p360 = scmp.eq.s32.totalorder %s26, 0
      %p361 = por %p359, %p360
      %p362 = scmp.ne.s32.totalorder %s354, %s356
      %p363 = scmp.eq.s32.totalorder %s31, 1
      %p364 = por %p362, %p363
      %p365 = scmp.ne.s32.totalorder %s356, %s357
      %p366 = scmp.eq.s32.totalorder %s31, 0
      %p367 = por %p365, %p366
      %p368 = scmp.ne.s32.totalorder %s356, %s357
      %p369 = scmp.eq.s32.totalorder %s32, 1
      %p370 = por %p368, %p369
      %p372 = scmp.ne.s32.totalorder %s357, %s371
      %p373 = scmp.eq.s32.totalorder %s32, 0
      %p374 = por %p372, %p373
      %s376 = sadd.s32 %s375, 1
      %p379 = scmp.eq.s32.totalorder %s26, 1
      %p380 = scmp.ne.s32.totalorder %s375, %s377
      %p381 = scmp.eq.s32.totalorder %s26, 0
      %p382 = por %p380, %p381
      %p383 = scmp.ne.s32.totalorder %s375, %s377
      %p384 = scmp.eq.s32.totalorder %s31, 1
      %p385 = por %p383, %p384
      %p386 = scmp.ne.s32.totalorder %s377, %s378
      %p387 = scmp.eq.s32.totalorder %s31, 0
      %p388 = por %p386, %p387
      %p389 = scmp.ne.s32.totalorder %s377, %s378
      %p390 = scmp.eq.s32.totalorder %s32, 1
      %p391 = por %p389, %p390
      %p393 = scmp.ne.s32.totalorder %s378, %s392
      %p394 = scmp.eq.s32.totalorder %s32, 0
      %p395 = por %p393, %p394
      %s396 = ssub.s32 %s26, %s33
      %p397 = scmp.eq.s32.totalorder %s396, 0
      %s399 = sadd.s32 %s398, 1
      %s400 = scalar_select %p397, %s398, %s399
      %p403 = pneg %p397
      %p404 = scmp.eq.s32.totalorder %s26, 1
      %p405 = por %p403, %p404
      %p406 = scmp.ne.s32.totalorder %s398, %s401
      %p407 = scmp.eq.s32.totalorder %s26, 0
      %p408 = por %p406, %p407
      %p409 = scmp.ne.s32.totalorder %s398, %s401
      %p410 = scmp.eq.s32.totalorder %s31, 1
      %p411 = por %p409, %p410
      %p412 = scmp.ne.s32.totalorder %s401, %s402
      %p413 = scmp.eq.s32.totalorder %s31, 0
      %p414 = por %p412, %p413
      %p415 = scmp.ne.s32.totalorder %s401, %s402
      %p416 = scmp.eq.s32.totalorder %s32, 1
      %p417 = por %p415, %p416
      %p419 = scmp.ne.s32.totalorder %s402, %s418
      %p420 = scmp.eq.s32.totalorder %s32, 0
      %p421 = por %p419, %p420
      %p422 = scmp.le.s32.totalorder 1, %s26
      %p423 = scmp.lt.s32.totalorder %s26, 3
      %p424 = pnand %p422, %p423
      %p425 = pneg %p424
      // Predicated region
      $region9: #{transformer_forward.5} parent=5 // pred_check
        _
      $region10: #{transformer_forward.5} parent=5 // pred_check_branch
        %427 = sbr.rel (%p424) target = $region12
      $region11: #{transformer_forward.5} parent=5 // pred_region
        %s428 = ssub.s32 %s26, 1
        // Predicated region
        $region13: #{transformer_forward.5} parent=11 // pred_check
          %p429 = pneg %p73
        $region14: #{transformer_forward.5} parent=11 // pred_check_branch
          %431 = sbr.rel (%p429) target = $region16
        $region15: #{transformer_forward.5} parent=11 // pred_region
          _
        $region16: #{transformer_forward.5} parent=11 // pred_fallthru
          _
        // Predicated region
        $region17: #{transformer_forward.5} parent=11 // pred_check
          %p432 = pneg %p94
        $region18: #{transformer_forward.5} parent=11 // pred_check_branch
          %434 = sbr.rel (%p432) target = $region20
        $region19: #{transformer_forward.5} parent=11 // pred_region
          _
        $region20: #{transformer_forward.5} parent=11 // pred_fallthru
          _
        // Predicated region
        $region21: #{transformer_forward.5} parent=11 // pred_check
          %p435 = pneg %p115
        $region22: #{transformer_forward.5} parent=11 // pred_check_branch
          %437 = sbr.rel (%p435) target = $region24
        $region23: #{transformer_forward.5} parent=11 // pred_region
          _
        $region24: #{transformer_forward.5} parent=11 // pred_fallthru
          _
        // Predicated region
        $region25: #{transformer_forward.5} parent=11 // pred_check
          %p438 = pneg %p136
        $region26: #{transformer_forward.5} parent=11 // pred_check_branch
          %440 = sbr.rel (%p438) target = $region28
        $region27: #{transformer_forward.5} parent=11 // pred_region
          _
        $region28: #{transformer_forward.5} parent=11 // pred_fallthru
          _
        // Predicated region
        $region29: #{transformer_forward.5} parent=11 // pred_check
          %p441 = pneg %p157
        $region30: #{transformer_forward.5} parent=11 // pred_check_branch
          %443 = sbr.rel (%p441) target = $region32
        $region31: #{transformer_forward.5} parent=11 // pred_region
          _
        $region32: #{transformer_forward.5} parent=11 // pred_fallthru
          _
        // Predicated region
        $region33: #{transformer_forward.5} parent=11 // pred_check
          %p444 = pneg %p178
        $region34: #{transformer_forward.5} parent=11 // pred_check_branch
          %446 = sbr.rel (%p444) target = $region36
        $region35: #{transformer_forward.5} parent=11 // pred_region
          _
        $region36: #{transformer_forward.5} parent=11 // pred_fallthru
          _
        // Predicated region
        $region37: #{transformer_forward.5} parent=11 // pred_check
          %p447 = pneg %p199
        $region38: #{transformer_forward.5} parent=11 // pred_check_branch
          %449 = sbr.rel (%p447) target = $region40
        $region39: #{transformer_forward.5} parent=11 // pred_region
          _
        $region40: #{transformer_forward.5} parent=11 // pred_fallthru
          _
        // Predicated region
        $region41: #{transformer_forward.5} parent=11 // pred_check
          %p450 = pneg %p220
        $region42: #{transformer_forward.5} parent=11 // pred_check_branch
          %452 = sbr.rel (%p450) target = $region44
        $region43: #{transformer_forward.5} parent=11 // pred_region
          _
        $region44: #{transformer_forward.5} parent=11 // pred_fallthru
          _
        // Predicated region
        $region45: #{transformer_forward.5} parent=11 // pred_check
          %p453 = pneg %p241
        $region46: #{transformer_forward.5} parent=11 // pred_check_branch
          %455 = sbr.rel (%p453) target = $region48
        $region47: #{transformer_forward.5} parent=11 // pred_region
          _
        $region48: #{transformer_forward.5} parent=11 // pred_fallthru
          _
        // Predicated region
        $region49: #{transformer_forward.5} parent=11 // pred_check
          %p456 = pneg %p262
        $region50: #{transformer_forward.5} parent=11 // pred_check_branch
          %458 = sbr.rel (%p456) target = $region52
        $region51: #{transformer_forward.5} parent=11 // pred_region
          _
        $region52: #{transformer_forward.5} parent=11 // pred_fallthru
          _
        // Predicated region
        $region53: #{transformer_forward.5} parent=11 // pred_check
          %p459 = pneg %p283
        $region54: #{transformer_forward.5} parent=11 // pred_check_branch
          %461 = sbr.rel (%p459) target = $region56
        $region55: #{transformer_forward.5} parent=11 // pred_region
          _
        $region56: #{transformer_forward.5} parent=11 // pred_fallthru
          _
        // Predicated region
        $region57: #{transformer_forward.5} parent=11 // pred_check
          %p462 = pneg %p304
        $region58: #{transformer_forward.5} parent=11 // pred_check_branch
          %464 = sbr.rel (%p462) target = $region60
        $region59: #{transformer_forward.5} parent=11 // pred_region
          _
        $region60: #{transformer_forward.5} parent=11 // pred_fallthru
          _
        // Predicated region
        $region61: #{transformer_forward.5} parent=11 // pred_check
          %p465 = pneg %p325
        $region62: #{transformer_forward.5} parent=11 // pred_check_branch
          %467 = sbr.rel (%p465) target = $region64
        $region63: #{transformer_forward.5} parent=11 // pred_region
          _
        $region64: #{transformer_forward.5} parent=11 // pred_fallthru
          _
        // Predicated region
        $region65: #{transformer_forward.5} parent=11 // pred_check
          %p468 = pneg %p346
        $region66: #{transformer_forward.5} parent=11 // pred_check_branch
          %470 = sbr.rel (%p468) target = $region68
        $region67: #{transformer_forward.5} parent=11 // pred_region
          _
        $region68: #{transformer_forward.5} parent=11 // pred_fallthru
          _
        // Predicated region
        $region69: #{transformer_forward.5} parent=11 // pred_check
          %p471 = pneg %p367
        $region70: #{transformer_forward.5} parent=11 // pred_check_branch
          %473 = sbr.rel (%p471) target = $region72
        $region71: #{transformer_forward.5} parent=11 // pred_region
          _
        $region72: #{transformer_forward.5} parent=11 // pred_fallthru
          _
        // Predicated region
        $region73: #{transformer_forward.5} parent=11 // pred_check
          %p474 = pneg %p388
        $region74: #{transformer_forward.5} parent=11 // pred_check_branch
          %476 = sbr.rel (%p474) target = $region76
        $region75: #{transformer_forward.5} parent=11 // pred_region
          _
        $region76: #{transformer_forward.5} parent=11 // pred_fallthru
          _
      $region12: #{transformer_forward.5} parent=5 // pred_fallthru
        _
      %p477 = scmp.lt.s32.totalorder %s26, 2
      // Predicated region
      $region77: #{transformer_forward.5} parent=5 // pred_check
        %p478 = pneg %p477
      $region78: #{transformer_forward.5} parent=5 // pred_check_branch
        %480 = sbr.rel (%p478) target = $region80
      $region79: #{transformer_forward.5} parent=5 // pred_region
        // Predicated region
        $region81: #{transformer_forward.5} parent=79 // pred_check
          %p481 = pneg %p46
        $region82: #{transformer_forward.5} parent=79 // pred_check_branch
          %483 = sbr.rel (%p481) target = $region84
        $region83: #{transformer_forward.5} parent=79 // pred_region
          %p484 = scmp.lt.s32.totalorder %s26, 1
          %s485 = scalar_select %p484, %s26, 1
          %s486 = smul.addr %s485, 2
          %s487 = smul.addr %s486, 8
          %s488 = scalar_lea.vmem %s0, %s487
        $region84: #{transformer_forward.5} parent=79 // pred_fallthru
          _
      $region80: #{transformer_forward.5} parent=5 // pred_fallthru
        _
      %p489 = scmp.le.s32.totalorder 1, %s26
      %p490 = scmp.lt.s32.totalorder %s26, 3
      %p491 = pnand %p489, %p490
      %p492 = pneg %p491
      // Predicated region
      $region85: #{transformer_forward.5} parent=5 // pred_check
        _
      $region86: #{transformer_forward.5} parent=5 // pred_check_branch
        %494 = sbr.rel (%p491) target = $region88
      $region87: #{transformer_forward.5} parent=5 // pred_region
        %s495 = ssub.s32 %s26, 1
        %p496 = scmp.lt.s32.totalorder %s31, 1
        %s497 = scalar_select %p496, %s31, 1
        %s498 = smul.addr %s497, 2
        %s499 = smul.addr %s498, 8
        %s500 = scalar_lea.vmem %s0, %s499
        %p501 = pneg %p52
        %p502 = pneg %p49
        %p503 = pneg %p73
        %p504 = pneg %p70
        %p505 = pneg %p94
        %p506 = pneg %p91
        %p507 = pneg %p115
        %p508 = pneg %p112
        %p509 = pneg %p136
        %p510 = pneg %p133
        %p511 = pneg %p157
        %p512 = pneg %p154
        %p513 = pneg %p178
        %p514 = pneg %p175
        %p515 = pneg %p199
        %p516 = pneg %p196
        %p517 = pneg %p220
        %p518 = pneg %p217
        %p519 = pneg %p241
        %p520 = pneg %p238
        %p521 = pneg %p262
        %p522 = pneg %p259
        %p523 = pneg %p283
        %p524 = pneg %p280
        %p525 = pneg %p304
        %p526 = pneg %p301
        %p527 = pneg %p325
        %p528 = pneg %p322
        %p529 = pneg %p346
        %p530 = pneg %p343
        %p531 = pneg %p367
        %p532 = pneg %p364
        %p533 = pneg %p388
        %p534 = pneg %p385
        %p535 = pneg %p414
        %p536 = pneg %p411
        %s537 = sand.u32 %s401, 1
        %s538 = scalar_lea.sflag [#allocation3], %s537
        %s539 = sand.u32 %s401, 1
        %s540 = smul.addr %s539, 16
        %s541 = scalar_lea.vmem [#allocation2], %s540
        %p542 = scmp.lt.s32.totalorder %s31, 1
        %s543 = scalar_select %p542, %s31, 1
        %s544 = smul.addr %s543, 2
        %s545 = smul.addr %s544, 8
        %s546 = scalar_lea.vmem %s0, %s545
        %v548 = vld [vmem:[%s546] sm:$0xff]
        %v549 = vld [vmem:[%s546 + $0x8] sm:$0xff]
        %v550 = vld [vmem:[%s1] sm:$0x1]
        %v551 = vld [vmem:[%s2] sm:$0x1]
        %vm552 = vcmask 261120
        %v553 = vsel %vm552, %v548, 0.0
        %554 = vadd.xlane.f32.xlu0 %v553
        %v555 = vpop.xlane.xlu0 %554
        %v556 = vsel %vm552, %v549, 0.0
        %557 = vadd.xlane.f32.xlu0 %v556
        %v558 = vpop.xlane.xlu0 %557
        %v559 = vrcp.pop 32.0
        %v560 = vmul.f32 %v555, %v559
        %v561 = vmul.f32 %v558, %v559
        %v562 = vsub.f32 %v548, %v560
        %v563 = vsub.f32 %v549, %v561
        %v564 = vmul.f32 %v562, %v562
        %v565 = vmul.f32 %v563, %v563
        %v566 = vsel %vm552, %v564, 0.0
        %567 = vadd.xlane.f32.xlu0 %v566
        %v568 = vpop.xlane.xlu0 %567
        %v569 = vsel %vm552, %v565, 0.0
        %570 = vadd.xlane.f32.xlu0 %v569
        %v571 = vpop.xlane.xlu0 %570
        %v572 = vmul.f32 %v568, %v559
        %v573 = vmul.f32 %v571, %v559
        %v574 = vadd.f32 %v572, 1e-06
        %v575 = vadd.f32 %v573, 1e-06
        %v576 = vrsqrt.pop %v574
        %v577 = vrsqrt.pop %v575
        %v578 = vmul.f32 %v562, %v576
        %v579 = vmul.f32 %v563, %v577
        %v581 = vlaneseq
        %v582 = vshrl.u32 %v581, 7
        %v583 = vsub.s32 0, %v582
        %v584 = vrot.slane %v550, %v583
        %v586 = vmul.f32 %v578, %v584
        %v587 = vmul.f32 %v579, %v584
        %v589 = vlaneseq
        %v590 = vshrl.u32 %v589, 7
        %v591 = vsub.s32 0, %v590
        %v592 = vrot.slane %v551, %v591
        %v594 = vadd.f32 %v586, %v592
        %v595 = vadd.f32 %v587, %v592
        %v596 = vpack.c.bf16 %v595, %v594
        %v597 = vld [vmem:[%s3] sm:$0xf]
        %v598 = vld [vmem:[%s3 + $0x4] sm:$0xf]
        %v599 = vld [vmem:[%s3 + $0x8] sm:$0xf]
        %v600 = vld [vmem:[%s3 + $0xc] sm:$0xf]
        %v601 = vld [vmem:[%s4] sm:$0x1]
        %v603 = vlaneseq
        %v604 = vshrl.u32 %v603, 7
        %v605 = vsub.s32 0, %v604
        %v606 = vrot.slane %v601, %v605
        %v612 = vunpack.c.l.b16 %v597
        %v613 = vunpack.c.l.b16 %v598
        %v614 = vunpack.c.l.b16 %v599
        %v615 = vunpack.c.l.b16 %v600
        %v616 = vpack.c.b16 %v613, %v612
        %v617 = vpack.c.b16 %v615, %v614
        %v621 = vsel %vm552, %v596, 0
        %623 = vmatprep.subr.bf16.mxu0 0
        %624 = vmatpush1.bf16.msra.mxu0 %v616
        %625 = vmatprep.subr.bf16.mxu0 0
        %626 = vmatpush1.bf16.msra.mxu0 %v617
        %627 = vmatprep.subr.bf16.mxu0 0
        %628 = vmatpush1.bf16.msra.mxu0 0
        %629 = vmatprep.subr.bf16.mxu0 0
        %630 = vmatpush1.bf16.msra.mxu0 0
        %631 = vmatprep.subr.bf16.mxu0 0
        %632 = vmatpush1.bf16.msra.mxu0 0
        %633 = vmatprep.subr.bf16.mxu0 0
        %634 = vmatpush1.bf16.msra.mxu0 0
        %635 = vmatprep.subr.bf16.mxu0 0
        %636 = vmatpush1.bf16.msra.mxu0 0
        %637 = vmatprep.subr.bf16.mxu0 0
        %638 = vmatpush1.bf16.msra.mxu0 0
        %639 = vmatprep.subr.bf16.mxu0 0
        %640 = vmatpush1.bf16.msra.mxu0 0
        %641 = vmatprep.subr.bf16.mxu0 0
        %642 = vmatpush1.bf16.msra.mxu0 0
        %643 = vmatprep.subr.bf16.mxu0 0
        %644 = vmatpush1.bf16.msra.mxu0 0
        %645 = vmatprep.subr.bf16.mxu0 0
        %646 = vmatpush1.bf16.msra.mxu0 0
        %647 = vmatprep.subr.bf16.mxu0 0
        %648 = vmatpush1.bf16.msra.mxu0 0
        %649 = vmatprep.subr.bf16.mxu0 0
        %650 = vmatpush1.bf16.msra.mxu0 0
        %651 = vmatprep.subr.bf16.mxu0 0
        %652 = vmatpush1.bf16.msra.mxu0 0
        %653 = vmatprep.subr.bf16.mxu0 0
        %654 = vmatpush1.bf16.msra.mxu0 0
        %655 = vmatprep.mubr.bf16.mxu0 0
        %656 = vmatmul.mubr.bf16.gmra.mrb[0].mxu0 %v621
        %v657 = vpop.f32.mrb[0].mxu0
        %v658 = vadd.f32 %v606, %v657
        %v659 = vpop.f32.mrb[0].mxu0
        %v660 = vpop.f32.mrb[0].mxu0
        %v661 = vadd.f32 %v606, %v660
        %v662 = vpop.f32.mrb[0].mxu0
        %663 = vdwg.mxu0
        %v664 = vld [vmem:[%s14] sm:$0xff]
        %v665 = vld [vmem:[%s14 + $0x8] sm:$0xff]
        %v666 = vpack.c.bf16 %v661, %v658
        %668 = vrot.lane.b32.xlu0 %v666, 96
        %v669 = vpop.permute.xlu0 %668
        %vm670 = vcmask 64512
        %v672 = vsel %vm670, %v666, 0
        %v675 = vsel %vm670, %v669, 0
        %677 = vmatprep.subr.bf16.mxu0 0
        %678 = vmatpush1.bf16.xpose.msra.mxu0 %v675
        %679 = vmatprep.subr.bf16.mxu0 0
        %680 = vmatpush1.bf16.xpose.msra.mxu0 0
        %681 = vmatprep.subr.bf16.mxu0 0
        %682 = vmatpush1.bf16.xpose.msra.mxu0 0
        %683 = vmatprep.subr.bf16.mxu0 0
        %684 = vmatpush1.bf16.xpose.msra.mxu0 0
        %685 = vmatprep.subr.bf16.mxu0 0
        %686 = vmatpush1.bf16.xpose.msra.mxu0 0
        %687 = vmatprep.subr.bf16.mxu0 0
        %688 = vmatpush1.bf16.xpose.msra.mxu0 0
        %689 = vmatprep.subr.bf16.mxu0 0
        %690 = vmatpush1.bf16.xpose.msra.mxu0 0
        %691 = vmatprep.subr.bf16.mxu0 0
        %692 = vmatpush1.bf16.xpose.msra.mxu0 0
        %693 = vmatprep.subr.bf16.mxu0 0
        %694 = vmatpush1.bf16.xpose.msra.mxu0 0
        %695 = vmatprep.subr.bf16.mxu0 0
        %696 = vmatpush1.bf16.xpose.msra.mxu0 0
        %697 = vmatprep.subr.bf16.mxu0 0
        %698 = vmatpush1.bf16.xpose.msra.mxu0 0
        %699 = vmatprep.subr.bf16.mxu0 0
        %700 = vmatpush1.bf16.xpose.msra.mxu0 0
        %701 = vmatprep.subr.bf16.mxu0 0
        %702 = vmatpush1.bf16.xpose.msra.mxu0 0
        %703 = vmatprep.subr.bf16.mxu0 0
        %704 = vmatpush1.bf16.xpose.msra.mxu0 0
        %705 = vmatprep.subr.bf16.mxu0 0
        %706 = vmatpush1.bf16.xpose.msra.mxu0 0
        %707 = vmatprep.subr.bf16.mxu0 0
        %708 = vmatpush1.bf16.xpose.msra.mxu0 0
        %709 = vmatprep.mubr.bf16.mxu0 0
        %710 = vmatmul.mubr.bf16.gmra.mrb[0].mxu0 %v672
        %v711 = vpop.f32.mrb[0].mxu0
        %v712 = vadd.f32 0.0, %v711
        %v713 = vpop.f32.mrb[0].mxu0
        %v714 = vpop.f32.mrb[0].mxu0
        %v715 = vadd.f32 0.0, %v714
        %v716 = vpop.f32.mrb[0].mxu0
        %717 = vdwg.mxu0
        %v718 = vmul.f32 %v658, %v658
        %v719 = vmul.f32 %v661, %v661
        %v720 = vsel %vm670, %v718, 0.0
        %721 = vadd.xlane.f32.xlu0 %v720
        %v722 = vpop.xlane.xlu0 %721
        %v723 = vsel %vm670, %v719, 0.0
        %724 = vadd.xlane.f32.xlu0 %v723
        %v725 = vpop.xlane.xlu0 %724
        %v726 = vadd.f32 %v722, 0.0001
        %v727 = vadd.f32 %v725, 0.0001
        %v728 = vrsqrt.pop %v726
        %v729 = vmul.f32 %v726, %v728
        %vm730 = vcmp.eq.f32.partialorder %v726, inf
        %v731 = vsel %vm730, %v726, %v729
        %vm732 = vcmp.eq.f32.partialorder %v726, 0.0
        %v733 = vand.u32 %v726, 2147483648
        %v734 = vsel %vm732, %v733, %v731
        %v735 = vrsqrt.pop %v727
        %v736 = vmul.f32 %v727, %v735
        %vm737 = vcmp.eq.f32.partialorder %v727, inf
        %v738 = vsel %vm737, %v727, %v736
        %vm739 = vcmp.eq.f32.partialorder %v727, 0.0
        %v740 = vand.u32 %v727, 2147483648
        %v741 = vsel %vm739, %v740, %v738
        %744 = vrot.lane.b32.xlu0 %v718, 96
        %v745 = vpop.permute.xlu0 %744
        %746 = vrot.lane.b32.xlu0 %v719, 96
        %v747 = vpop.permute.xlu0 %746
        %v750 = vsel %vm670, %v745, 0.0
        %751 = vadd.xlane.f32.xlu0 %v750
        %v752 = vpop.xlane.xlu0 %751
        %v753 = vsel %vm670, %v747, 0.0
        %754 = vadd.xlane.f32.xlu0 %v753
        %v755 = vpop.xlane.xlu0 %754
        %v756 = vadd.f32 %v752, 0.0001
        %v757 = vadd.f32 %v755, 0.0001
        %v758 = vrsqrt.pop %v756
        %v759 = vmul.f32 %v756, %v758
        %vm760 = vcmp.eq.f32.partialorder %v756, inf
        %v761 = vsel %vm760, %v756, %v759
        %vm762 = vcmp.eq.f32.partialorder %v756, 0.0
        %v763 = vand.u32 %v756, 2147483648
        %v764 = vsel %vm762, %v763, %v761
        %v765 = vrsqrt.pop %v757
        %v766 = vmul.f32 %v757, %v765
        %vm767 = vcmp.eq.f32.partialorder %v757, inf
        %v768 = vsel %vm767, %v757, %v766
        %vm769 = vcmp.eq.f32.partialorder %v757, 0.0
        %v770 = vand.u32 %v757, 2147483648
        %v771 = vsel %vm769, %v770, %v768
        %772 = vxpose.xlu0.b32.start [1/16] %v764, 128
        %773 = vxpose.xlu0.b32.cont [2/16] %v771, 128
        %774 = vxpose.xlu0.b32.cont [3/16] 0.0, 128
        %775 = vxpose.xlu0.b32.cont [4/16] 0.0, 128
        %776 = vxpose.xlu0.b32.cont [5/16] 0.0, 128
        %777 = vxpose.xlu0.b32.cont [6/16] 0.0, 128
        %778 = vxpose.xlu0.b32.cont [7/16] 0.0, 128
        %779 = vxpose.xlu0.b32.cont [8/16] 0.0, 128
        %780 = vxpose.xlu0.b32.cont [9/16] 0.0, 128
        %781 = vxpose.xlu0.b32.cont [10/16] 0.0, 128
        %782 = vxpose.xlu0.b32.cont [11/16] 0.0, 128
        %783 = vxpose.xlu0.b32.cont [12/16] 0.0, 128
        %784 = vxpose.xlu0.b32.cont [13/16] 0.0, 128
        %785 = vxpose.xlu0.b32.cont [14/16] 0.0, 128
        %786 = vxpose.xlu0.b32.cont [15/16] 0.0, 128
        %787 = vxpose.xlu0.b32.end [16/16] 0.0, 128
        %v788 = vpop.trf.xlu0
        %v789 = vpop.trf.xlu0
        %v790 = vpop.trf.xlu0
        %v791 = vpop.trf.xlu0
        %v792 = vpop.trf.xlu0
        %v793 = vpop.trf.xlu0
        %v794 = vpop.trf.xlu0
        %v795 = vpop.trf.xlu0
        %v796 = vpop.trf.xlu0
        %v797 = vpop.trf.xlu0
        %v798 = vpop.trf.xlu0
        %v799 = vpop.trf.xlu0
        %v800 = vpop.trf.xlu0
        %v801 = vpop.trf.xlu0
        %v802 = vpop.trf.xlu0
        %v803 = vpop.trf.xlu0
        %v804 = vlaneseq
        %v805 = vshrl.u32 %v804, 7
        %v806 = vsub.s32 0, %v805
        %v807 = vrot.slane %v788, %v806
        %v808 = vmul.f32 %v734, %v807
        %v809 = vmul.f32 %v741, %v807
        %v810 = vadd.f32 %v808, 0.0001
        %v811 = vadd.f32 %v809, 0.0001
        %v812 = vrcp.pop %v810
        %v813 = vrcp.pop %v811
        %v814 = vmul.f32 %v712, %v812
        %v815 = vmul.f32 %v715, %v813
        %v816 = vld [vmem:[%s13] sm:$0x1]
        %v818 = vlaneseq
        %v819 = vshrl.u32 %v818, 7
        %v820 = vsub.s32 0, %v819
        %v821 = vrot.slane %v816, %v820
        %822 = vset.pattern.permute.xlu0 0
        %823 = vperm.xlu0 %822, %v821
        %v824 = vpop.permute.xlu0 %823
        %v826 = vmul.f32 %v824, %v664
        %v827 = vmul.f32 %v824, %v665
        %v828 = vmul.f32 %v826, 1.442695
        %v829 = vpow.pop %v828
        %v830 = vmul.f32 %v827, 1.442695
        %v831 = vpow.pop %v830
        %vm832 = vcmask 130048
        %v833 = vsel %vm832, %v829, 0.0
        %834 = vadd.xlane.f32.xlu0 %v833
        %v835 = vpop.xlane.xlu0 %834
        %v836 = vsel %vm832, %v831, 0.0
        %837 = vadd.xlane.f32.xlu0 %v836
        %v838 = vpop.xlane.xlu0 %837
        %v839 = vrcp.pop %v835
        %v840 = vrcp.pop %v838
        %v841 = vmul.f32 %v829, %v839
        %v842 = vmul.f32 %v831, %v840
        %v843 = vmul.f32 %v814, %v841
        %v844 = vmul.f32 %v815, %v842
        %v845 = vpack.c.bf16 %v844, %v843
        %846 = vrot.lane.b32.xlu0 %v666, 64
        %v847 = vpop.permute.xlu0 %846
        %v850 = vsel %vm832, %v845, 0
        %852 = vmatprep.subr.bf16.mxu0 0
        %853 = vmatpush1.bf16.msra.mxu0 %v847
        %854 = vmatprep.subr.bf16.mxu0 0
        %855 = vmatpush1.bf16.msra.mxu0 0
        %856 = vmatprep.subr.bf16.mxu0 0
        %857 = vmatpush1.bf16.msra.mxu0 0
        %858 = vmatprep.subr.bf16.mxu0 0
        %859 = vmatpush1.bf16.msra.mxu0 0
        %860 = vmatprep.subr.bf16.mxu0 0
        %861 = vmatpush1.bf16.msra.mxu0 0
        %862 = vmatprep.subr.bf16.mxu0 0
        %863 = vmatpush1.bf16.msra.mxu0 0
        %864 = vmatprep.subr.bf16.mxu0 0
        %865 = vmatpush1.bf16.msra.mxu0 0
        %866 = vmatprep.subr.bf16.mxu0 0
        %867 = vmatpush1.bf16.msra.mxu0 0
        %868 = vmatprep.subr.bf16.mxu0 0
        %869 = vmatpush1.bf16.msra.mxu0 0
        %870 = vmatprep.subr.bf16.mxu0 0
        %871 = vmatpush1.bf16.msra.mxu0 0
        %872 = vmatprep.subr.bf16.mxu0 0
        %873 = vmatpush1.bf16.msra.mxu0 0
        %874 = vmatprep.subr.bf16.mxu0 0
        %875 = vmatpush1.bf16.msra.mxu0 0
        %876 = vmatprep.subr.bf16.mxu0 0
        %877 = vmatpush1.bf16.msra.mxu0 0
        %878 = vmatprep.subr.bf16.mxu0 0
        %879 = vmatpush1.bf16.msra.mxu0 0
        %880 = vmatprep.subr.bf16.mxu0 0
        %881 = vmatpush1.bf16.msra.mxu0 0
        %882 = vmatprep.subr.bf16.mxu0 0
        %883 = vmatpush1.bf16.msra.mxu0 0
        %884 = vmatprep.mubr.bf16.mxu0 0
        %885 = vmatmul.mubr.bf16.gmra.mrb[0].mxu0 %v850
        %v886 = vpop.f32.mrb[0].mxu0
        %v887 = vadd.f32 0.0, %v886
        %v888 = vpop.f32.mrb[0].mxu0
        %v889 = vpop.f32.mrb[0].mxu0
        %v890 = vadd.f32 0.0, %v889
        %v891 = vpop.f32.mrb[0].mxu0
        %892 = vdwg.mxu0
        %893 = vrot.lane.b32.xlu0 %v666, 120
        %v894 = vpop.permute.xlu0 %893
        %895 = vrot.lane.b32.xlu0 %v666, 88
        %v896 = vpop.permute.xlu0 %895
        %v898 = vsel %vm670, %v894, 0
        %v901 = vsel %vm670, %v896, 0
        %903 = vmatprep.subr.bf16.mxu0 0
        %904 = vmatpush1.bf16.xpose.msra.mxu0 %v901
        %905 = vmatprep.subr.bf16.mxu0 0
        %906 = vmatpush1.bf16.xpose.msra.mxu0 0
        %907 = vmatprep.subr.bf16.mxu0 0
        %908 = vmatpush1.bf16.xpose.msra.mxu0 0
        %909 = vmatprep.subr.bf16.mxu0 0
        %910 = vmatpush1.bf16.xpose.msra.mxu0 0
        %911 = vmatprep.subr.bf16.mxu0 0
        %912 = vmatpush1.bf16.xpose.msra.mxu0 0
        %913 = vmatprep.subr.bf16.mxu0 0
        %914 = vmatpush1.bf16.xpose.msra.mxu0 0
        %915 = vmatprep.subr.bf16.mxu0 0
        %916 = vmatpush1.bf16.xpose.msra.mxu0 0
        %917 = vmatprep.subr.bf16.mxu0 0
        %918 = vmatpush1.bf16.xpose.msra.mxu0 0
        %919 = vmatprep.subr.bf16.mxu0 0
        %920 = vmatpush1.bf16.xpose.msra.mxu0 0
        %921 = vmatprep.subr.bf16.mxu0 0
        %922 = vmatpush1.bf16.xpose.msra.mxu0 0
        %923 = vmatprep.subr.bf16.mxu0 0
        %924 = vmatpush1.bf16.xpose.msra.mxu0 0
        %925 = vmatprep.subr.bf16.mxu0 0
        %926 = vmatpush1.bf16.xpose.msra.mxu0 0
        %927 = vmatprep.subr.bf16.mxu0 0
        %928 = vmatpush1.bf16.xpose.msra.mxu0 0
        %929 = vmatprep.subr.bf16.mxu0 0
        %930 = vmatpush1.bf16.xpose.msra.mxu0 0
        %931 = vmatprep.subr.bf16.mxu0 0
        %932 = vmatpush1.bf16.xpose.msra.mxu0 0
        %933 = vmatprep.subr.bf16.mxu0 0
        %934 = vmatpush1.bf16.xpose.msra.mxu0 0
        %935 = vmatprep.mubr.bf16.mxu0 0
        %936 = vmatmul.mubr.bf16.gmra.mrb[0].mxu0 %v898
        %v937 = vpop.f32.mrb[0].mxu0
        %v938 = vadd.f32 0.0, %v937
        %v939 = vpop.f32.mrb[0].mxu0
        %v940 = vpop.f32.mrb[0].mxu0
        %v941 = vadd.f32 0.0, %v940
        %v942 = vpop.f32.mrb[0].mxu0
        %943 = vdwg.mxu0
        %944 = vrot.lane.b32.xlu0 %v718, 120
        %v945 = vpop.permute.xlu0 %944
        %946 = vrot.lane.b32.xlu0 %v719, 120
        %v947 = vpop.permute.xlu0 %946
        %v950 = vsel %vm670, %v945, 0.0
        %951 = vadd.xlane.f32.xlu0 %v950
        %v952 = vpop.xlane.xlu0 %951
        %v953 = vsel %vm670, %v947, 0.0
        %954 = vadd.xlane.f32.xlu0 %v953
        %v955 = vpop.xlane.xlu0 %954
        %v956 = vadd.f32 %v952, 0.0001
        %v957 = vadd.f32 %v955, 0.0001
        %v958 = vrsqrt.pop %v956
        %v959 = vmul.f32 %v956, %v958
        %vm960 = vcmp.eq.f32.partialorder %v956, inf
        %v961 = vsel %vm960, %v956, %v959
        %vm962 = vcmp.eq.f32.partialorder %v956, 0.0
        %v963 = vand.u32 %v956, 2147483648
        %v964 = vsel %vm962, %v963, %v961
        %v965 = vrsqrt.pop %v957
        %v966 = vmul.f32 %v957, %v965
        %vm967 = vcmp.eq.f32.partialorder %v957, inf
        %v968 = vsel %vm967, %v957, %v966
        %vm969 = vcmp.eq.f32.partialorder %v957, 0.0
        %v970 = vand.u32 %v957, 2147483648
        %v971 = vsel %vm969, %v970, %v968
        %972 = vrot.lane.b32.xlu0 %v718, 88
        %v973 = vpop.permute.xlu0 %972
        %974 = vrot.lane.b32.xlu0 %v719, 88
        %v975 = vpop.permute.xlu0 %974
        %v978 = vsel %vm670, %v973, 0.0
        %979 = vadd.xlane.f32.xlu0 %v978
        %v980 = vpop.xlane.xlu0 %979
        %v981 = vsel %vm670, %v975, 0.0
        %982 = vadd.xlane.f32.xlu0 %v981
        %v983 = vpop.xlane.xlu0 %982
        %v984 = vadd.f32 %v980, 0.0001
        %v985 = vadd.f32 %v983, 0.0001
        %v986 = vrsqrt.pop %v984
        %v987 = vmul.f32 %v984, %v986
        %vm988 = vcmp.eq.f32.partialorder %v984, inf
        %v989 = vsel %vm988, %v984, %v987
        %vm990 = vcmp.eq.f32.partialorder %v984, 0.0
        %v991 = vand.u32 %v984, 2147483648
        %v992 = vsel %vm990, %v991, %v989
        %v993 = vrsqrt.pop %v985
        %v994 = vmul.f32 %v985, %v993
        %vm995 = vcmp.eq.f32.partialorder %v985, inf
        %v996 = vsel %vm995, %v985, %v994
        %vm997 = vcmp.eq.f32.partialorder %v985, 0.0
        %v998 = vand.u32 %v985, 2147483648
        %v999 = vsel %vm997, %v998, %v996
        %1000 = vxpose.xlu0.b32.start [1/16] %v992, 128
        %1001 = vxpose.xlu0.b32.cont [2/16] %v999, 128
        %1002 = vxpose.xlu0.b32.cont [3/16] 0.0, 128
        %1003 = vxpose.xlu0.b32.cont [4/16] 0.0, 128
        %1004 = vxpose.xlu0.b32.cont [5/16] 0.0, 128
        %1005 = vxpose.xlu0.b32.cont [6/16] 0.0, 128
        %1006 = vxpose.xlu0.b32.cont [7/16] 0.0, 128
        %1007 = vxpose.xlu0.b32.cont [8/16] 0.0, 128
        %1008 = vxpose.xlu0.b32.cont [9/16] 0.0, 128
        %1009 = vxpose.xlu0.b32.cont [10/16] 0.0, 128
        %1010 = vxpose.xlu0.b32.cont [11/16] 0.0, 128
        %1011 = vxpose.xlu0.b32.cont [12/16] 0.0, 128
        %1012 = vxpose.xlu0.b32.cont [13/16] 0.0, 128
        %1013 = vxpose.xlu0.b32.cont [14/16] 0.0, 128
        %1014 = vxpose.xlu0.b32.cont [15/16] 0.0, 128
        %1015 = vxpose.xlu0.b32.end [16/16] 0.0, 128
        %v1016 = vpop.trf.xlu0
        %v1017 = vpop.trf.xlu0
        %v1018 = vpop.trf.xlu0
        %v1019 = vpop.trf.xlu0
        %v1020 = vpop.trf.xlu0
        %v1021 = vpop.trf.xlu0
        %v1022 = vpop.trf.xlu0
        %v1023 = vpop.trf.xlu0
        %v1024 = vpop.trf.xlu0
        %v1025 = vpop.trf.xlu0
        %v1026 = vpop.trf.xlu0
        %v1027 = vpop.trf.xlu0
        %v1028 = vpop.trf.xlu0
        %v1029 = vpop.trf.xlu0
        %v1030 = vpop.trf.xlu0
        %v1031 = vpop.trf.xlu0
        %v1032 = vlaneseq
        %v1033 = vshrl.u32 %v1032, 7
        %v1034 = vsub.s32 0, %v1033
        %v1035 = vrot.slane %v1016, %v1034
        %v1036 = vmul.f32 %v964, %v1035
        %v1037 = vmul.f32 %v971, %v1035
        %v1038 = vadd.f32 %v1036, 0.0001
        %v1039 = vadd.f32 %v1037, 0.0001
        %v1040 = vrcp.pop %v1038
        %v1041 = vrcp.pop %v1039
        %v1042 = vmul.f32 %v938, %v1040
        %v1043 = vmul.f32 %v941, %v1041
        %1044 = vset.pattern.permute.xlu0 1
        %1045 = vperm.xlu0 %1044, %v821
        %v1046 = vpop.permute.xlu0 %1045
        %v1048 = vmul.f32 %v1046, %v664
        %v1049 = vmul.f32 %v1046, %v665
        %v1050 = vmul.f32 %v1048, 1.442695
        %v1051 = vpow.pop %v1050
        %v1052 = vmul.f32 %v1049, 1.442695
        %v1053 = vpow.pop %v1052
        %v1054 = vsel %vm832, %v1051, 0.0
        %1055 = vadd.xlane.f32.xlu0 %v1054
        %v1056 = vpop.xlane.xlu0 %1055
        %v1057 = vsel %vm832, %v1053, 0.0
        %1058 = vadd.xlane.f32.xlu0 %v1057
        %v1059 = vpop.xlane.xlu0 %1058
        %v1060 = vrcp.pop %v1056
        %v1061 = vrcp.pop %v1059
        %v1062 = vmul.f32 %v1051, %v1060
        %v1063 = vmul.f32 %v1053, %v1061
        %v1064 = vmul.f32 %v1042, %v1062
        %v1065 = vmul.f32 %v1043, %v1063
        %v1066 = vpack.c.bf16 %v1065, %v1064
        %1067 = vrot.lane.b32.xlu0 %v666, 56
        %v1068 = vpop.permute.xlu0 %1067
        %v1071 = vsel %vm832, %v1066, 0
        %1073 = vmatprep.subr.bf16.mxu0 0
        %1074 = vmatpush1.bf16.msra.mxu0 %v1068
        %1075 = vmatprep.subr.bf16.mxu0 0
        %1076 = vmatpush1.bf16.msra.mxu0 0
        %1077 = vmatprep.subr.bf16.mxu0 0
        %1078 = vmatpush1.bf16.msra.mxu0 0
        %1079 = vmatprep.subr.bf16.mxu0 0
        %1080 = vmatpush1.bf16.msra.mxu0 0
        %1081 = vmatprep.subr.bf16.mxu0 0
        %1082 = vmatpush1.bf16.msra.mxu0 0
        %1083 = vmatprep.subr.bf16.mxu0 0
        %1084 = vmatpush1.bf16.msra.mxu0 0
        %1085 = vmatprep.subr.bf16.mxu0 0
        %1086 = vmatpush1.bf16.msra.mxu0 0
        %1087 = vmatprep.subr.bf16.mxu0 0
        %1088 = vmatpush1.bf16.msra.mxu0 0
        %1089 = vmatprep.subr.bf16.mxu0 0
        %1090 = vmatpush1.bf16.msra.mxu0 0
        %1091 = vmatprep.subr.bf16.mxu0 0
        %1092 = vmatpush1.bf16.msra.mxu0 0
        %1093 = vmatprep.subr.bf16.mxu0 0
        %1094 = vmatpush1.bf16.msra.mxu0 0
        %1095 = vmatprep.subr.bf16.mxu0 0
        %1096 = vmatpush1.bf16.msra.mxu0 0
        %1097 = vmatprep.subr.bf16.mxu0 0
        %1098 = vmatpush1.bf16.msra.mxu0 0
        %1099 = vmatprep.subr.bf16.mxu0 0
        %1100 = vmatpush1.bf16.msra.mxu0 0
        %1101 = vmatprep.subr.bf16.mxu0 0
        %1102 = vmatpush1.bf16.msra.mxu0 0
        %1103 = vmatprep.subr.bf16.mxu0 0
        %1104 = vmatpush1.bf16.msra.mxu0 0
        %1105 = vmatprep.mubr.bf16.mxu0 0
        %1106 = vmatmul.mubr.bf16.gmra.mrb[0].mxu0 %v1071
        %v1107 = vpop.f32.mrb[0].mxu0
        %v1108 = vadd.f32 0.0, %v1107
        %v1109 = vpop.f32.mrb[0].mxu0
        %v1110 = vpop.f32.mrb[0].mxu0
        %v1111 = vadd.f32 0.0, %v1110
        %v1112 = vpop.f32.mrb[0].mxu0
        %1113 = vdwg.mxu0
        %1114 = vrot.lane.b32.xlu0 %v666, 112
        %v1115 = vpop.permute.xlu0 %1114
        %1116 = vrot.lane.b32.xlu0 %v666, 80
        %v1117 = vpop.permute.xlu0 %1116
        %v1119 = vsel %vm670, %v1115, 0
        %v1122 = vsel %vm670, %v1117, 0
        %1124 = vmatprep.subr.bf16.mxu0 0
        %1125 = vmatpush1.bf16.xpose.msra.mxu0 %v1122
        %1126 = vmatprep.subr.bf16.mxu0 0
        %1127 = vmatpush1.bf16.xpose.msra.mxu0 0
        %1128 = vmatprep.subr.bf16.mxu0 0
        %1129 = vmatpush1.bf16.xpose.msra.mxu0 0
        %1130 = vmatprep.subr.bf16.mxu0 0
        %1131 = vmatpush1.bf16.xpose.msra.mxu0 0
        %1132 = vmatprep.subr.bf16.mxu0 0
        %1133 = vmatpush1.bf16.xpose.msra.mxu0 0
        %1134 = vmatprep.subr.bf16.mxu0 0
        %1135 = vmatpush1.bf16.xpose.msra.mxu0 0
        %1136 = vmatprep.subr.bf16.mxu0 0
        %1137 = vmatpush1.bf16.xpose.msra.mxu0 0
        %1138 = vmatprep.subr.bf16.mxu0 0
        %1139 = vmatpush1.bf16.xpose.msra.mxu0 0
        %1140 = vmatprep.subr.bf16.mxu0 0
        %1141 = vmatpush1.bf16.xpose.msra.mxu0 0
        %1142 = vmatprep.subr.bf16.mxu0 0
        %1143 = vmatpush1.bf16.xpose.msra.mxu0 0
        %1144 = vmatprep.subr.bf16.mxu0 0
        %1145 = vmatpush1.bf16.xpose.msra.mxu0 0
        %1146 = vmatprep.subr.bf16.mxu0 0
        %1147 = vmatpush1.bf16.xpose.msra.mxu0 0
        %1148 = vmatprep.subr.bf16.mxu0 0
        %1149 = vmatpush1.bf16.xpose.msra.mxu0 0
        %1150 = vmatprep.subr.bf16.mxu0 0
        %1151 = vmatpush1.bf16.xpose.msra.mxu0 0
        %1152 = vmatprep.subr.bf16.mxu0 0
        %1153 = vmatpush1.bf16.xpose.msra.mxu0 0
        %1154 = vmatprep.subr.bf16.mxu0 0
        %1155 = vmatpush1.bf16.xpose.msra.mxu0 0
        %1156 = vmatprep.mubr.bf16.mxu0 0
        %1157 = vmatmul.mubr.bf16.gmra.mrb[0].mxu0 %v1119
        %v1158 = vpop.f32.mrb[0].mxu0
        %v1159 = vadd.f32 0.0, %v1158
        %v1160 = vpop.f32.mrb[0].mxu0
        %v1161 = vpop.f32.mrb[0].mxu0
        %v1162 = vadd.f32 0.0, %v1161
        %v1163 = vpop.f32.mrb[0].mxu0
        %1164 = vdwg.mxu0
        %1165 = vrot.lane.b32.xlu0 %v718, 112
        %v1166 = vpop.permute.xlu0 %1165
        %1167 = vrot.lane.b32.xlu0 %v719, 112
        %v1168 = vpop.permute.xlu0 %1167
        %v1171 = vsel %vm670, %v1166, 0.0
        %1172 = vadd.xlane.f32.xlu0 %v1171
        %v1173 = vpop.xlane.xlu0 %1172
        %v1174 = vsel %vm670, %v1168, 0.0
        %1175 = vadd.xlane.f32.xlu0 %v1174
        %v1176 = vpop.xlane.xlu0 %1175
        %v1177 = vadd.f32 %v1173, 0.0001
        %v1178 = vadd.f32 %v1176, 0.0001
        %v1179 = vrsqrt.pop %v1177
        %v1180 = vmul.f32 %v1177, %v1179
        %vm1181 = vcmp.eq.f32.partialorder %v1177, inf
        %v1182 = vsel %vm1181, %v1177, %v1180
        %vm1183 = vcmp.eq.f32.partialorder %v1177, 0.0
        %v1184 = vand.u32 %v1177, 2147483648
        %v1185 = vsel %vm1183, %v1184, %v1182
        %v1186 = vrsqrt.pop %v1178
        %v1187 = vmul.f32 %v1178, %v1186
        %vm1188 = vcmp.eq.f32.partialorder %v1178, inf
        %v1189 = vsel %vm1188, %v1178, %v1187
        %vm1190 = vcmp.eq.f32.partialorder %v1178, 0.0
        %v1191 = vand.u32 %v1178, 2147483648
        %v1192 = vsel %vm1190, %v1191, %v1189
        %1193 = vrot.lane.b32.xlu0 %v718, 80
        %v1194 = vpop.permute.xlu0 %1193
        %1195 = vrot.lane.b32.xlu0 %v719, 80
        %v1196 = vpop.permute.xlu0 %1195
        %v1199 = vsel %vm670, %v1194, 0.0
        %1200 = vadd.xlane.f32.xlu0 %v1199
        %v1201 = vpop.xlane.xlu0 %1200
        %v1202 = vsel %vm670, %v1196, 0.0
        %1203 = vadd.xlane.f32.xlu0 %v1202
        %v1204 = vpop.xlane.xlu0 %1203
        %v1205 = vadd.f32 %v1201, 0.0001
        %v1206 = vadd.f32 %v1204, 0.0001
        %v1207 = vrsqrt.pop %v1205
        %v1208 = vmul.f32 %v1205, %v1207
        %vm1209 = vcmp.eq.f32.partialorder %v1205, inf
        %v1210 = vsel %vm1209, %v1205, %v1208
        %vm1211 = vcmp.eq.f32.partialorder %v1205, 0.0
        %v1212 = vand.u32 %v1205, 2147483648
        %v1213 = vsel %vm1211, %v1212, %v1210
        %v1214 = vrsqrt.pop %v1206
        %v1215 = vmul.f32 %v1206, %v1214
        %vm1216 = vcmp.eq.f32.partialorder %v1206, inf
        %v1217 = vsel %vm1216, %v1206, %v1215
        %vm1218 = vcmp.eq.f32.partialorder %v1206, 0.0
        %v1219 = vand.u32 %v1206, 2147483648
        %v1220 = vsel %vm1218, %v1219, %v1217
        %1221 = vxpose.xlu0.b32.start [1/16] %v1213, 128
        %1222 = vxpose.xlu0.b32.cont [2/16] %v1220, 128
        %1223 = vxpose.xlu0.b32.cont [3/16] 0.0, 128
        %1224 = vxpose.xlu0.b32.cont [4/16] 0.0, 128
        %1225 = vxpose.xlu0.b32.cont [5/16] 0.0, 128
        %1226 = vxpose.xlu0.b32.cont [6/16] 0.0, 128
        %1227 = vxpose.xlu0.b32.cont [7/16] 0.0, 128
        %1228 = vxpose.xlu0.b32.cont [8/16] 0.0, 128
        %1229 = vxpose.xlu0.b32.cont [9/16] 0.0, 128
        %1230 = vxpose.xlu0.b32.cont [10/16] 0.0, 128
        %1231 = vxpose.xlu0.b32.cont [11/16] 0.0, 128
        %1232 = vxpose.xlu0.b32.cont [12/16] 0.0, 128
        %1233 = vxpose.xlu0.b32.cont [13/16] 0.0, 128
        %1234 = vxpose.xlu0.b32.cont [14/16] 0.0, 128
        %1235 = vxpose.xlu0.b32.cont [15/16] 0.0, 128
        %1236 = vxpose.xlu0.b32.end [16/16] 0.0, 128
        %v1237 = vpop.trf.xlu0
        %v1238 = vpop.trf.xlu0
        %v1239 = vpop.trf.xlu0
        %v1240 = vpop.trf.xlu0
        %v1241 = vpop.trf.xlu0
        %v1242 = vpop.trf.xlu0
        %v1243 = vpop.trf.xlu0
        %v1244 = vpop.trf.xlu0
        %v1245 = vpop.trf.xlu0
        %v1246 = vpop.trf.xlu0
        %v1247 = vpop.trf.xlu0
        %v1248 = vpop.trf.xlu0
        %v1249 = vpop.trf.xlu0
        %v1250 = vpop.trf.xlu0
        %v1251 = vpop.trf.xlu0
        %v1252 = vpop.trf.xlu0
        %v1253 = vlaneseq
        %v1254 = vshrl.u32 %v1253, 7
        %v1255 = vsub.s32 0, %v1254
        %v1256 = vrot.slane %v1237, %v1255
        %v1257 = vmul.f32 %v1185, %v1256
        %v1258 = vmul.f32 %v1192, %v1256
        %v1259 = vadd.f32 %v1257, 0.0001
        %v1260 = vadd.f32 %v1258, 0.0001
        %v1261 = vrcp.pop %v1259
        %v1262 = vrcp.pop %v1260
        %v1263 = vmul.f32 %v1159, %v1261
        %v1264 = vmul.f32 %v1162, %v1262
        %1265 = vset.pattern.permute.xlu0 2
        %1266 = vperm.xlu0 %1265, %v821
        %v1267 = vpop.permute.xlu0 %1266
        %v1269 = vmul.f32 %v1267, %v664
        %v1270 = vmul.f32 %v1267, %v665
        %v1271 = vmul.f32 %v1269, 1.442695
        %v1272 = vpow.pop %v1271
        %v1273 = vmul.f32 %v1270, 1.442695
        %v1274 = vpow.pop %v1273
        %v1275 = vsel %vm832, %v1272, 0.0
        %1276 = vadd.xlane.f32.xlu0 %v1275
        %v1277 = vpop.xlane.xlu0 %1276
        %v1278 = vsel %vm832, %v1274, 0.0
        %1279 = vadd.xlane.f32.xlu0 %v1278
        %v1280 = vpop.xlane.xlu0 %1279
        %v1281 = vrcp.pop %v1277
        %v1282 = vrcp.pop %v1280
        %v1283 = vmul.f32 %v1272, %v1281
        %v1284 = vmul.f32 %v1274, %v1282
        %v1285 = vmul.f32 %v1263, %v1283
        %v1286 = vmul.f32 %v1264, %v1284
        %v1287 = vpack.c.bf16 %v1286, %v1285
        %1288 = vrot.lane.b32.xlu0 %v666, 48
        %v1289 = vpop.permute.xlu0 %1288
        %v1292 = vsel %vm832, %v1287, 0
        %1294 = vmatprep.subr.bf16.mxu0 0
        %1295 = vmatpush1.bf16.msra.mxu0 %v1289
        %1296 = vmatprep.subr.bf16.mxu0 0
        %1297 = vmatpush1.bf16.msra.mxu0 0
        %1298 = vmatprep.subr.bf16.mxu0 0
        %1299 = vmatpush1.bf16.msra.mxu0 0
        %1300 = vmatprep.subr.bf16.mxu0 0
        %1301 = vmatpush1.bf16.msra.mxu0 0
        %1302 = vmatprep.subr.bf16.mxu0 0
        %1303 = vmatpush1.bf16.msra.mxu0 0
        %1304 = vmatprep.subr.bf16.mxu0 0
        %1305 = vmatpush1.bf16.msra.mxu0 0
        %1306 = vmatprep.subr.bf16.mxu0 0
        %1307 = vmatpush1.bf16.msra.mxu0 0
        %1308 = vmatprep.subr.bf16.mxu0 0
        %1309 = vmatpush1.bf16.msra.mxu0 0
        %1310 = vmatprep.subr.bf16.mxu0 0
        %1311 = vmatpush1.bf16.msra.mxu0 0
        %1312 = vmatprep.subr.bf16.mxu0 0
        %1313 = vmatpush1.bf16.msra.mxu0 0
        %1314 = vmatprep.subr.bf16.mxu0 0
        %1315 = vmatpush1.bf16.msra.mxu0 0
        %1316 = vmatprep.subr.bf16.mxu0 0
        %1317 = vmatpush1.bf16.msra.mxu0 0
        %1318 = vmatprep.subr.bf16.mxu0 0
        %1319 = vmatpush1.bf16.msra.mxu0 0
        %1320 = vmatprep.subr.bf16.mxu0 0
        %1321 = vmatpush1.bf16.msra.mxu0 0
        %1322 = vmatprep.subr.bf16.mxu0 0
        %1323 = vmatpush1.bf16.msra.mxu0 0
        %1324 = vmatprep.subr.bf16.mxu0 0
        %1325 = vmatpush1.bf16.msra.mxu0 0
        %1326 = vmatprep.mubr.bf16.mxu0 0
        %1327 = vmatmul.mubr.bf16.gmra.mrb[0].mxu0 %v1292
        %v1328 = vpop.f32.mrb[0].mxu0
        %v1329 = vadd.f32 0.0, %v1328
        %v1330 = vpop.f32.mrb[0].mxu0
        %v1331 = vpop.f32.mrb[0].mxu0
        %v1332 = vadd.f32 0.0, %v1331
        %v1333 = vpop.f32.mrb[0].mxu0
        %1334 = vdwg.mxu0
        %1335 = vrot.lane.b32.xlu0 %v666, 104
        %v1336 = vpop.permute.xlu0 %1335
        %1337 = vrot.lane.b32.xlu0 %v666, 72
        %v1338 = vpop.permute.xlu0 %1337
        %v1340 = vsel %vm670, %v1336, 0
        %v1343 = vsel %vm670, %v1338, 0
        %1345 = vmatprep.subr.bf16.mxu0 0
        %1346 = vmatpush1.bf16.xpose.msra.mxu0 %v1343
        %1347 = vmatprep.subr.bf16.mxu0 0
        %1348 = vmatpush1.bf16.xpose.msra.mxu0 0
        %1349 = vmatprep.subr.bf16.mxu0 0
        %1350 = vmatpush1.bf16.xpose.msra.mxu0 0
        %1351 = vmatprep.subr.bf16.mxu0 0
        %1352 = vmatpush1.bf16.xpose.msra.mxu0 0
        %1353 = vmatprep.subr.bf16.mxu0 0
        %1354 = vmatpush1.bf16.xpose.msra.mxu0 0
        %1355 = vmatprep.subr.bf16.mxu0 0
        %1356 = vmatpush1.bf16.xpose.msra.mxu0 0
        %1357 = vmatprep.subr.bf16.mxu0 0
        %1358 = vmatpush1.bf16.xpose.msra.mxu0 0
        %1359 = vmatprep.subr.bf16.mxu0 0
        %1360 = vmatpush1.bf16.xpose.msra.mxu0 0
        %1361 = vmatprep.subr.bf16.mxu0 0
        %1362 = vmatpush1.bf16.xpose.msra.mxu0 0
        %1363 = vmatprep.subr.bf16.mxu0 0
        %1364 = vmatpush1.bf16.xpose.msra.mxu0 0
        %1365 = vmatprep.subr.bf16.mxu0 0
        %1366 = vmatpush1.bf16.xpose.msra.mxu0 0
        %1367 = vmatprep.subr.bf16.mxu0 0
        %1368 = vmatpush1.bf16.xpose.msra.mxu0 0
        %1369 = vmatprep.subr.bf16.mxu0 0
        %1370 = vmatpush1.bf16.xpose.msra.mxu0 0
        %1371 = vmatprep.subr.bf16.mxu0 0
        %1372 = vmatpush1.bf16.xpose.msra.mxu0 0
        %1373 = vmatprep.subr.bf16.mxu0 0
        %1374 = vmatpush1.bf16.xpose.msra.mxu0 0
        %1375 = vmatprep.subr.bf16.mxu0 0
        %1376 = vmatpush1.bf16.xpose.msra.mxu0 0
        %1377 = vmatprep.mubr.bf16.mxu0 0
        %1378 = vmatmul.mubr.bf16.gmra.mrb[0].mxu0 %v1340
        %v1379 = vpop.f32.mrb[0].mxu0
        %v1380 = vadd.f32 0.0, %v1379
        %v1381 = vpop.f32.mrb[0].mxu0
        %v1382 = vpop.f32.mrb[0].mxu0
        %v1383 = vadd.f32 0.0, %v1382
        %v1384 = vpop.f32.mrb[0].mxu0
        %1385 = vdwg.mxu0
        %1386 = vrot.lane.b32.xlu0 %v718, 104
        %v1387 = vpop.permute.xlu0 %1386
        %1388 = vrot.lane.b32.xlu0 %v719, 104
        %v1389 = vpop.permute.xlu0 %1388
        %v1392 = vsel %vm670, %v1387, 0.0
        %1393 = vadd.xlane.f32.xlu0 %v1392
        %v1394 = vpop.xlane.xlu0 %1393
        %v1395 = vsel %vm670, %v1389, 0.0
        %1396 = vadd.xlane.f32.xlu0 %v1395
        %v1397 = vpop.xlane.xlu0 %1396
        %v1398 = vadd.f32 %v1394, 0.0001
        %v1399 = vadd.f32 %v1397, 0.0001
        %v1400 = vrsqrt.pop %v1398
        %v1401 = vmul.f32 %v1398, %v1400
        %vm1402 = vcmp.eq.f32.partialorder %v1398, inf
        %v1403 = vsel %vm1402, %v1398, %v1401
        %vm1404 = vcmp.eq.f32.partialorder %v1398, 0.0
        %v1405 = vand.u32 %v1398, 2147483648
        %v1406 = vsel %vm1404, %v1405, %v1403
        %v1407 = vrsqrt.pop %v1399
        %v1408 = vmul.f32 %v1399, %v1407
        %vm1409 = vcmp.eq.f32.partialorder %v1399, inf
        %v1410 = vsel %vm1409, %v1399, %v1408
        %vm1411 = vcmp.eq.f32.partialorder %v1399, 0.0
        %v1412 = vand.u32 %v1399, 2147483648
        %v1413 = vsel %vm1411, %v1412, %v1410
        %1414 = vrot.lane.b32.xlu0 %v718, 72
        %v1415 = vpop.permute.xlu0 %1414
        %1416 = vrot.lane.b32.xlu0 %v719, 72
        %v1417 = vpop.permute.xlu0 %1416
        %v1420 = vsel %vm670, %v1415, 0.0
        %1421 = vadd.xlane.f32.xlu0 %v1420
        %v1422 = vpop.xlane.xlu0 %1421
        %v1423 = vsel %vm670, %v1417, 0.0
        %1424 = vadd.xlane.f32.xlu0 %v1423
        %v1425 = vpop.xlane.xlu0 %1424
        %v1426 = vadd.f32 %v1422, 0.0001
        %v1427 = vadd.f32 %v1425, 0.0001
        %v1428 = vrsqrt.pop %v1426
        %v1429 = vmul.f32 %v1426, %v1428
        %vm1430 = vcmp.eq.f32.partialorder %v1426, inf
        %v1431 = vsel %vm1430, %v1426, %v1429
        %vm1432 = vcmp.eq.f32.partialorder %v1426, 0.0
        %v1433 = vand.u32 %v1426, 2147483648
        %v1434 = vsel %vm1432, %v1433, %v1431
        %v1435 = vrsqrt.pop %v1427
        %v1436 = vmul.f32 %v1427, %v1435
        %vm1437 = vcmp.eq.f32.partialorder %v1427, inf
        %v1438 = vsel %vm1437, %v1427, %v1436
        %vm1439 = vcmp.eq.f32.partialorder %v1427, 0.0
        %v1440 = vand.u32 %v1427, 2147483648
        %v1441 = vsel %vm1439, %v1440, %v1438
        %1442 = vxpose.xlu0.b32.start [1/16] %v1434, 128
        %1443 = vxpose.xlu0.b32.cont [2/16] %v1441, 128
        %1444 = vxpose.xlu0.b32.cont [3/16] 0.0, 128
        %1445 = vxpose.xlu0.b32.cont [4/16] 0.0, 128
        %1446 = vxpose.xlu0.b32.cont [5/16] 0.0, 128
        %1447 = vxpose.xlu0.b32.cont [6/16] 0.0, 128
        %1448 = vxpose.xlu0.b32.cont [7/16] 0.0, 128
        %1449 = vxpose.xlu0.b32.cont [8/16] 0.0, 128
        %1450 = vxpose.xlu0.b32.cont [9/16] 0.0, 128
        %1451 = vxpose.xlu0.b32.cont [10/16] 0.0, 128
        %1452 = vxpose.xlu0.b32.cont [11/16] 0.0, 128
        %1453 = vxpose.xlu0.b32.cont [12/16] 0.0, 128
        %1454 = vxpose.xlu0.b32.cont [13/16] 0.0, 128
        %1455 = vxpose.xlu0.b32.cont [14/16] 0.0, 128
        %1456 = vxpose.xlu0.b32.cont [15/16] 0.0, 128
        %1457 = vxpose.xlu0.b32.end [16/16] 0.0, 128
        %v1458 = vpop.trf.xlu0
        %v1459 = vpop.trf.xlu0
        %v1460 = vpop.trf.xlu0
        %v1461 = vpop.trf.xlu0
        %v1462 = vpop.trf.xlu0
        %v1463 = vpop.trf.xlu0
        %v1464 = vpop.trf.xlu0
        %v1465 = vpop.trf.xlu0
        %v1466 = vpop.trf.xlu0
        %v1467 = vpop.trf.xlu0
        %v1468 = vpop.trf.xlu0
        %v1469 = vpop.trf.xlu0
        %v1470 = vpop.trf.xlu0
        %v1471 = vpop.trf.xlu0
        %v1472 = vpop.trf.xlu0
        %v1473 = vpop.trf.xlu0
        %v1474 = vlaneseq
        %v1475 = vshrl.u32 %v1474, 7
        %v1476 = vsub.s32 0, %v1475
        %v1477 = vrot.slane %v1458, %v1476
        %v1478 = vmul.f32 %v1406, %v1477
        %v1479 = vmul.f32 %v1413, %v1477
        %v1480 = vadd.f32 %v1478, 0.0001
        %v1481 = vadd.f32 %v1479, 0.0001
        %v1482 = vrcp.pop %v1480
        %v1483 = vrcp.pop %v1481
        %v1484 = vmul.f32 %v1380, %v1482
        %v1485 = vmul.f32 %v1383, %v1483
        %1486 = vset.pattern.permute.xlu0 3
        %1487 = vperm.xlu0 %1486, %v821
        %v1488 = vpop.permute.xlu0 %1487
        %v1490 = vmul.f32 %v1488, %v664
        %v1491 = vmul.f32 %v1488, %v665
        %v1492 = vmul.f32 %v1490, 1.442695
        %v1493 = vpow.pop %v1492
        %v1494 = vmul.f32 %v1491, 1.442695
        %v1495 = vpow.pop %v1494
        %v1496 = vsel %vm832, %v1493, 0.0
        %1497 = vadd.xlane.f32.xlu0 %v1496
        %v1498 = vpop.xlane.xlu0 %1497
        %v1499 = vsel %vm832, %v1495, 0.0
        %1500 = vadd.xlane.f32.xlu0 %v1499
        %v1501 = vpop.xlane.xlu0 %1500
        %v1502 = vrcp.pop %v1498
        %v1503 = vrcp.pop %v1501
        %v1504 = vmul.f32 %v1493, %v1502
        %v1505 = vmul.f32 %v1495, %v1503
        %v1506 = vmul.f32 %v1484, %v1504
        %v1507 = vmul.f32 %v1485, %v1505
        %v1508 = vpack.c.bf16 %v1507, %v1506
        %1509 = vrot.lane.b32.xlu0 %v666, 40
        %v1510 = vpop.permute.xlu0 %1509
        %v1513 = vsel %vm832, %v1508, 0
        %1515 = vmatprep.subr.bf16.mxu0 0
        %1516 = vmatpush1.bf16.msra.mxu0 %v1510
        %1517 = vmatprep.subr.bf16.mxu0 0
        %1518 = vmatpush1.bf16.msra.mxu0 0
        %1519 = vmatprep.subr.bf16.mxu0 0
        %1520 = vmatpush1.bf16.msra.mxu0 0
        %1521 = vmatprep.subr.bf16.mxu0 0
        %1522 = vmatpush1.bf16.msra.mxu0 0
        %1523 = vmatprep.subr.bf16.mxu0 0
        %1524 = vmatpush1.bf16.msra.mxu0 0
        %1525 = vmatprep.subr.bf16.mxu0 0
        %1526 = vmatpush1.bf16.msra.mxu0 0
        %1527 = vmatprep.subr.bf16.mxu0 0
        %1528 = vmatpush1.bf16.msra.mxu0 0
        %1529 = vmatprep.subr.bf16.mxu0 0
        %1530 = vmatpush1.bf16.msra.mxu0 0
        %1531 = vmatprep.subr.bf16.mxu0 0
        %1532 = vmatpush1.bf16.msra.mxu0 0
        %1533 = vmatprep.subr.bf16.mxu0 0
        %1534 = vmatpush1.bf16.msra.mxu0 0
        %1535 = vmatprep.subr.bf16.mxu0 0
        %1536 = vmatpush1.bf16.msra.mxu0 0
        %1537 = vmatprep.subr.bf16.mxu0 0
        %1538 = vmatpush1.bf16.msra.mxu0 0
        %1539 = vmatprep.subr.bf16.mxu0 0
        %1540 = vmatpush1.bf16.msra.mxu0 0
        %1541 = vmatprep.subr.bf16.mxu0 0
        %1542 = vmatpush1.bf16.msra.mxu0 0
        %1543 = vmatprep.subr.bf16.mxu0 0
        %1544 = vmatpush1.bf16.msra.mxu0 0
        %1545 = vmatprep.subr.bf16.mxu0 0
        %1546 = vmatpush1.bf16.msra.mxu0 0
        %1547 = vmatprep.mubr.bf16.mxu0 0
        %1548 = vmatmul.mubr.bf16.gmra.mrb[0].mxu0 %v1513
        %v1549 = vpop.f32.mrb[0].mxu0
        %v1550 = vadd.f32 0.0, %v1549
        %v1551 = vpop.f32.mrb[0].mxu0
        %v1552 = vpop.f32.mrb[0].mxu0
        %v1553 = vadd.f32 0.0, %v1552
        %v1554 = vpop.f32.mrb[0].mxu0
        %1555 = vdwg.mxu0
        %1558 = vrot.lane.b32.xlu0 %v1108, 8
        %v1559 = vpop.permute.xlu0 %1558
        %1560 = vrot.lane.b32.xlu0 %v1111, 8
        %v1561 = vpop.permute.xlu0 %1560
        %1566 = vrot.lane.b32.xlu0 %v1329, 16
        %v1567 = vpop.permute.xlu0 %1566
        %1568 = vrot.lane.b32.xlu0 %v1332, 16
        %v1569 = vpop.permute.xlu0 %1568
        %1574 = vrot.lane.b32.xlu0 %v1550, 24
        %v1575 = vpop.permute.xlu0 %1574
        %1576 = vrot.lane.b32.xlu0 %v1553, 24
        %v1577 = vpop.permute.xlu0 %1576
        %v1580 = vsel %vm670, %v887, %v1559
        %v1581 = vsel %vm670, %v890, %v1561
        %v1582 = vsel %vm832, %v1580, %v1567
        %v1583 = vsel %vm832, %v1581, %v1569
        %vm1584 = vcmask 195584
        %v1585 = vsel %vm1584, %v1582, %v1575
        %v1586 = vsel %vm1584, %v1583, %v1577
        %v1587 = vpack.c.bf16 %v1586, %v1585
        %v1588 = vld [vmem:[%s5] sm:$0xf]
        %v1589 = vld [vmem:[%s5 + $0x4] sm:$0xf]
        %v1590 = vld [vmem:[%s5 + $0x8] sm:$0xf]
        %v1591 = vld [vmem:[%s5 + $0xc] sm:$0xf]
        %v1592 = vld [vmem:[%s6] sm:$0x1]
        %v1594 = vlaneseq
        %v1595 = vshrl.u32 %v1594, 7
        %v1596 = vsub.s32 0, %v1595
        %v1597 = vrot.slane %v1592, %v1596
        %v1603 = vunpack.c.l.b16 %v1588
        %v1604 = vunpack.c.l.b16 %v1589
        %v1605 = vunpack.c.l.b16 %v1590
        %v1606 = vunpack.c.l.b16 %v1591
        %v1607 = vpack.c.b16 %v1604, %v1603
        %v1608 = vpack.c.b16 %v1606, %v1605
        %v1612 = vsel %vm552, %v1587, 0
        %1614 = vmatprep.subr.bf16.mxu0 0
        %1615 = vmatpush1.bf16.msra.mxu0 %v1607
        %1616 = vmatprep.subr.bf16.mxu0 0
        %1617 = vmatpush1.bf16.msra.mxu0 %v1608
        %1618 = vmatprep.subr.bf16.mxu0 0
        %1619 = vmatpush1.bf16.msra.mxu0 0
        %1620 = vmatprep.subr.bf16.mxu0 0
        %1621 = vmatpush1.bf16.msra.mxu0 0
        %1622 = vmatprep.subr.bf16.mxu0 0
        %1623 = vmatpush1.bf16.msra.mxu0 0
        %1624 = vmatprep.subr.bf16.mxu0 0
        %1625 = vmatpush1.bf16.msra.mxu0 0
        %1626 = vmatprep.subr.bf16.mxu0 0
        %1627 = vmatpush1.bf16.msra.mxu0 0
        %1628 = vmatprep.subr.bf16.mxu0 0
        %1629 = vmatpush1.bf16.msra.mxu0 0
        %1630 = vmatprep.subr.bf16.mxu0 0
        %1631 = vmatpush1.bf16.msra.mxu0 0
        %1632 = vmatprep.subr.bf16.mxu0 0
        %1633 = vmatpush1.bf16.msra.mxu0 0
        %1634 = vmatprep.subr.bf16.mxu0 0
        %1635 = vmatpush1.bf16.msra.mxu0 0
        %1636 = vmatprep.subr.bf16.mxu0 0
        %1637 = vmatpush1.bf16.msra.mxu0 0
        %1638 = vmatprep.subr.bf16.mxu0 0
        %1639 = vmatpush1.bf16.msra.mxu0 0
        %1640 = vmatprep.subr.bf16.mxu0 0
        %1641 = vmatpush1.bf16.msra.mxu0 0
        %1642 = vmatprep.subr.bf16.mxu0 0
        %1643 = vmatpush1.bf16.msra.mxu0 0
        %1644 = vmatprep.subr.bf16.mxu0 0
        %1645 = vmatpush1.bf16.msra.mxu0 0
        %1646 = vmatprep.mubr.bf16.mxu0 0
        %1647 = vmatmul.mubr.bf16.gmra.mrb[0].mxu0 %v1612
        %v1648 = vpop.f32.mrb[0].mxu0
        %v1649 = vadd.f32 %v1597, %v1648
        %v1650 = vpop.f32.mrb[0].mxu0
        %v1651 = vpop.f32.mrb[0].mxu0
        %v1652 = vadd.f32 %v1597, %v1651
        %v1653 = vpop.f32.mrb[0].mxu0
        %1654 = vdwg.mxu0
        %v1655 = vadd.f32 %v1649, %v548
        %v1656 = vadd.f32 %v1652, %v549
        %v1657 = vld [vmem:[%s7] sm:$0x1]
        %v1658 = vld [vmem:[%s8] sm:$0x1]
        %v1659 = vsel %vm552, %v1655, 0.0
        %1660 = vadd.xlane.f32.xlu0 %v1659
        %v1661 = vpop.xlane.xlu0 %1660
        %v1662 = vsel %vm552, %v1656, 0.0
        %1663 = vadd.xlane.f32.xlu0 %v1662
        %v1664 = vpop.xlane.xlu0 %1663
        %v1665 = vmul.f32 %v1661, %v559
        %v1666 = vmul.f32 %v1664, %v559
        %v1667 = vsub.f32 %v1655, %v1665
        %v1668 = vsub.f32 %v1656, %v1666
        %v1669 = vmul.f32 %v1667, %v1667
        %v1670 = vmul.f32 %v1668, %v1668
        %v1671 = vsel %vm552, %v1669, 0.0
        %1672 = vadd.xlane.f32.xlu0 %v1671
        %v1673 = vpop.xlane.xlu0 %1672
        %v1674 = vsel %vm552, %v1670, 0.0
        %1675 = vadd.xlane.f32.xlu0 %v1674
        %v1676 = vpop.xlane.xlu0 %1675
        %v1677 = vmul.f32 %v1673, %v559
        %v1678 = vmul.f32 %v1676, %v559
        %v1679 = vadd.f32 %v1677, 1e-06
        %v1680 = vadd.f32 %v1678, 1e-06
        %v1681 = vrsqrt.pop %v1679
        %v1682 = vrsqrt.pop %v1680
        %v1683 = vmul.f32 %v1667, %v1681
        %v1684 = vmul.f32 %v1668, %v1682
        %v1686 = vlaneseq
        %v1687 = vshrl.u32 %v1686, 7
        %v1688 = vsub.s32 0, %v1687
        %v1689 = vrot.slane %v1657, %v1688
        %v1691 = vmul.f32 %v1683, %v1689
        %v1692 = vmul.f32 %v1684, %v1689
        %v1694 = vlaneseq
        %v1695 = vshrl.u32 %v1694, 7
        %v1696 = vsub.s32 0, %v1695
        %v1697 = vrot.slane %v1658, %v1696
        %v1699 = vadd.f32 %v1691, %v1697
        %v1700 = vadd.f32 %v1692, %v1697
        %v1701 = vpack.c.bf16 %v1700, %v1699
        %v1702 = vld [vmem:[%s9] sm:$0xf]
        %v1703 = vld [vmem:[%s9 + $0x4] sm:$0xf]
        %v1704 = vld [vmem:[%s9 + $0x8] sm:$0xf]
        %v1705 = vld [vmem:[%s9 + $0xc] sm:$0xf]
        %v1706 = vld [vmem:[%s10] sm:$0x1]
        %v1708 = vlaneseq
        %v1709 = vshrl.u32 %v1708, 7
        %v1710 = vsub.s32 0, %v1709
        %v1711 = vrot.slane %v1706, %v1710
        %v1717 = vunpack.c.l.b16 %v1702
        %v1718 = vunpack.c.l.b16 %v1703
        %v1719 = vunpack.c.l.b16 %v1704
        %v1720 = vunpack.c.l.b16 %v1705
        %v1721 = vpack.c.b16 %v1718, %v1717
        %v1722 = vpack.c.b16 %v1720, %v1719
        %v1726 = vsel %vm552, %v1701, 0
        %1728 = vmatprep.subr.bf16.mxu0 0
        %1729 = vmatpush1.bf16.msra.mxu0 %v1721
        %1730 = vmatprep.subr.bf16.mxu0 0
        %1731 = vmatpush1.bf16.msra.mxu0 %v1722
        %1732 = vmatprep.subr.bf16.mxu0 0
        %1733 = vmatpush1.bf16.msra.mxu0 0
        %1734 = vmatprep.subr.bf16.mxu0 0
        %1735 = vmatpush1.bf16.msra.mxu0 0
        %1736 = vmatprep.subr.bf16.mxu0 0
        %1737 = vmatpush1.bf16.msra.mxu0 0
        %1738 = vmatprep.subr.bf16.mxu0 0
        %1739 = vmatpush1.bf16.msra.mxu0 0
        %1740 = vmatprep.subr.bf16.mxu0 0
        %1741 = vmatpush1.bf16.msra.mxu0 0
        %1742 = vmatprep.subr.bf16.mxu0 0
        %1743 = vmatpush1.bf16.msra.mxu0 0
        %1744 = vmatprep.subr.bf16.mxu0 0
        %1745 = vmatpush1.bf16.msra.mxu0 0
        %1746 = vmatprep.subr.bf16.mxu0 0
        %1747 = vmatpush1.bf16.msra.mxu0 0
        %1748 = vmatprep.subr.bf16.mxu0 0
        %1749 = vmatpush1.bf16.msra.mxu0 0
        %1750 = vmatprep.subr.bf16.mxu0 0
        %1751 = vmatpush1.bf16.msra.mxu0 0
        %1752 = vmatprep.subr.bf16.mxu0 0
        %1753 = vmatpush1.bf16.msra.mxu0 0
        %1754 = vmatprep.subr.bf16.mxu0 0
        %1755 = vmatpush1.bf16.msra.mxu0 0
        %1756 = vmatprep.subr.bf16.mxu0 0
        %1757 = vmatpush1.bf16.msra.mxu0 0
        %1758 = vmatprep.subr.bf16.mxu0 0
        %1759 = vmatpush1.bf16.msra.mxu0 0
        %1760 = vmatprep.mubr.bf16.mxu0 0
        %1761 = vmatmul.mubr.bf16.gmra.mrb[0].mxu0 %v1726
        %v1762 = vpop.f32.mrb[0].mxu0
        %v1763 = vadd.f32 %v1711, %v1762
        %v1764 = vpop.f32.mrb[0].mxu0
        %v1765 = vpop.f32.mrb[0].mxu0
        %v1766 = vadd.f32 %v1711, %v1765
        %v1767 = vpop.f32.mrb[0].mxu0
        %1768 = vdwg.mxu0
        %v1769 = vmul.f32 %v1763, 0.5
        %v1770 = vmul.f32 %v1766, 0.5
        %v1771 = vmul.f32 %v1763, 0.70710677
        %v1772 = vmul.f32 %v1766, 0.70710677
        %vm1773 = vcmp.lt.f32.partialorder %v1771, 0.0
        %vm1774 = vcmp.lt.f32.partialorder %v1772, 0.0
        %v1775 = vsel %vm1773, -1.0, 1.0
        %v1776 = vsel %vm1774, -1.0, 1.0
        %v1777 = vand.u32 2147483647, %v1771
        %v1778 = vand.u32 2147483647, %v1772
        %v1779 = vmul.f32 %v1777, 0.3275911
        %v1780 = vmul.f32 %v1778, 0.3275911
        %v1781 = vadd.f32 %v1779, 1.0
        %v1782 = vadd.f32 %v1780, 1.0
        %v1783 = vrcp.pop %v1781
        %v1784 = vmul.f32 1.0, %v1783
        %v1785 = vrcp.pop %v1782
        %v1786 = vmul.f32 1.0, %v1785
        %v1787 = vmul.f32 %v1784, 1.0614054
        %v1788 = vmul.f32 %v1786, 1.0614054
        %v1789 = vadd.f32 %v1787, -1.4531521
        %v1790 = vadd.f32 %v1788, -1.4531521
        %v1791 = vmul.f32 %v1789, %v1784
        %v1792 = vmul.f32 %v1790, %v1786
        %v1793 = vadd.f32 %v1791, 1.4214138
        %v1794 = vadd.f32 %v1792, 1.4214138
        %v1795 = vmul.f32 %v1793, %v1784
        %v1796 = vmul.f32 %v1794, %v1786
        %v1797 = vadd.f32 %v1795, -0.28449672
        %v1798 = vadd.f32 %v1796, -0.28449672
        %v1799 = vmul.f32 %v1797, %v1784
        %v1800 = vmul.f32 %v1798, %v1786
        %v1801 = vadd.f32 %v1799, 0.2548296
        %v1802 = vadd.f32 %v1800, 0.2548296
        %v1803 = vmul.f32 %v1801, %v1784
        %v1804 = vmul.f32 %v1802, %v1786
        %v1805 = vsub.f32 0.0, %v1777
        %v1806 = vsub.f32 0.0, %v1778
        %v1807 = vmul.f32 %v1805, %v1777
        %v1808 = vmul.f32 %v1806, %v1778
        %v1809 = vmul.f32 %v1807, 1.442695
        %v1810 = vpow.pop %v1809
        %v1811 = vmul.f32 %v1808, 1.442695
        %v1812 = vpow.pop %v1811
        %v1813 = vmul.f32 %v1803, %v1810
        %v1814 = vmul.f32 %v1804, %v1812
        %v1815 = vsub.f32 1.0, %v1813
        %v1816 = vsub.f32 1.0, %v1814
        %v1817 = vmul.f32 %v1775, %v1815
        %v1818 = vmul.f32 %v1776, %v1816
        %v1819 = vadd.f32 %v1817, 1.0
        %v1820 = vadd.f32 %v1818, 1.0
        %v1821 = vmul.f32 %v1769, %v1819
        %v1822 = vmul.f32 %v1770, %v1820
        %v1823 = vpack.c.bf16 %v1822, %v1821
        %v1824 = vld [vmem:[%s11] sm:$0xf]
        %v1825 = vld [vmem:[%s11 + $0x4] sm:$0xf]
        %v1826 = vld [vmem:[%s11 + $0x8] sm:$0xf]
        %v1827 = vld [vmem:[%s11 + $0xc] sm:$0xf]
        %v1828 = vld [vmem:[%s11 + $0x10] sm:$0xf]
        %v1829 = vld [vmem:[%s11 + $0x14] sm:$0xf]
        %v1830 = vld [vmem:[%s11 + $0x18] sm:$0xf]
        %v1831 = vld [vmem:[%s11 + $0x1c] sm:$0xf]
        %v1832 = vld [vmem:[%s12] sm:$0x1]
        %v1834 = vlaneseq
        %v1835 = vshrl.u32 %v1834, 7
        %v1836 = vsub.s32 0, %v1835
        %v1837 = vrot.slane %v1832, %v1836
        %v1847 = vunpack.c.l.b16 %v1824
        %v1848 = vunpack.c.l.b16 %v1825
        %v1849 = vunpack.c.l.b16 %v1826
        %v1850 = vunpack.c.l.b16 %v1827
        %v1851 = vunpack.c.l.b16 %v1828
        %v1852 = vunpack.c.l.b16 %v1829
        %v1853 = vunpack.c.l.b16 %v1830
        %v1854 = vunpack.c.l.b16 %v1831
        %v1855 = vpack.c.b16 %v1848, %v1847
        %v1856 = vpack.c.b16 %v1850, %v1849
        %v1857 = vpack.c.b16 %v1852, %v1851
        %v1858 = vpack.c.b16 %v1854, %v1853
        %vm1863 = vcmask 523264
        %v1865 = vsel %vm1863, %v1823, 0
        %1867 = vmatprep.subr.bf16.mxu0 0
        %1868 = vmatpush1.bf16.msra.mxu0 %v1855
        %1869 = vmatprep.subr.bf16.mxu0 0
        %1870 = vmatpush1.bf16.msra.mxu0 %v1856
        %1871 = vmatprep.subr.bf16.mxu0 0
        %1872 = vmatpush1.bf16.msra.mxu0 %v1857
        %1873 = vmatprep.subr.bf16.mxu0 0
        %1874 = vmatpush1.bf16.msra.mxu0 %v1858
        %1875 = vmatprep.subr.bf16.mxu0 0
        %1876 = vmatpush1.bf16.msra.mxu0 0
        %1877 = vmatprep.subr.bf16.mxu0 0
        %1878 = vmatpush1.bf16.msra.mxu0 0
        %1879 = vmatprep.subr.bf16.mxu0 0
        %1880 = vmatpush1.bf16.msra.mxu0 0
        %1881 = vmatprep.subr.bf16.mxu0 0
        %1882 = vmatpush1.bf16.msra.mxu0 0
        %1883 = vmatprep.subr.bf16.mxu0 0
        %1884 = vmatpush1.bf16.msra.mxu0 0
        %1885 = vmatprep.subr.bf16.mxu0 0
        %1886 = vmatpush1.bf16.msra.mxu0 0
        %1887 = vmatprep.subr.bf16.mxu0 0
        %1888 = vmatpush1.bf16.msra.mxu0 0
        %1889 = vmatprep.subr.bf16.mxu0 0
        %1890 = vmatpush1.bf16.msra.mxu0 0
        %1891 = vmatprep.subr.bf16.mxu0 0
        %1892 = vmatpush1.bf16.msra.mxu0 0
        %1893 = vmatprep.subr.bf16.mxu0 0
        %1894 = vmatpush1.bf16.msra.mxu0 0
        %1895 = vmatprep.subr.bf16.mxu0 0
        %1896 = vmatpush1.bf16.msra.mxu0 0
        %1897 = vmatprep.subr.bf16.mxu0 0
        %1898 = vmatpush1.bf16.msra.mxu0 0
        %1899 = vmatprep.mubr.bf16.mxu0 0
        %1900 = vmatmul.mubr.bf16.gmra.mrb[0].mxu0 %v1865
        %v1901 = vpop.f32.mrb[0].mxu0
        %v1902 = vadd.f32 %v1837, %v1901
        %v1903 = vpop.f32.mrb[0].mxu0
        %v1904 = vpop.f32.mrb[0].mxu0
        %v1905 = vadd.f32 %v1837, %v1904
        %v1906 = vpop.f32.mrb[0].mxu0
        %1907 = vdwg.mxu0
        %v1908 = vadd.f32 %v1902, %v1655
        %v1909 = vadd.f32 %v1905, %v1656
        %v1910 = vld [vmem:[%s15] sm:$0x1]
        %v1911 = vld [vmem:[%s16] sm:$0x1]
        %v1912 = vsel %vm552, %v1908, 0.0
        %1913 = vadd.xlane.f32.xlu0 %v1912
        %v1914 = vpop.xlane.xlu0 %1913
        %v1915 = vsel %vm552, %v1909, 0.0
        %1916 = vadd.xlane.f32.xlu0 %v1915
        %v1917 = vpop.xlane.xlu0 %1916
        %v1918 = vmul.f32 %v1914, %v559
        %v1919 = vmul.f32 %v1917, %v559
        %v1920 = vsub.f32 %v1908, %v1918
        %v1921 = vsub.f32 %v1909, %v1919
        %v1922 = vmul.f32 %v1920, %v1920
        %v1923 = vmul.f32 %v1921, %v1921
        %v1924 = vsel %vm552, %v1922, 0.0
        %1925 = vadd.xlane.f32.xlu0 %v1924
        %v1926 = vpop.xlane.xlu0 %1925
        %v1927 = vsel %vm552, %v1923, 0.0
        %1928 = vadd.xlane.f32.xlu0 %v1927
        %v1929 = vpop.xlane.xlu0 %1928
        %v1930 = vmul.f32 %v1926, %v559
        %v1931 = vmul.f32 %v1929, %v559
        %v1932 = vadd.f32 %v1930, 1e-06
        %v1933 = vadd.f32 %v1931, 1e-06
        %v1934 = vrsqrt.pop %v1932
        %v1935 = vrsqrt.pop %v1933
        %v1936 = vmul.f32 %v1920, %v1934
        %v1937 = vmul.f32 %v1921, %v1935
        %v1939 = vlaneseq
        %v1940 = vshrl.u32 %v1939, 7
        %v1941 = vsub.s32 0, %v1940
        %v1942 = vrot.slane %v1910, %v1941
        %v1944 = vmul.f32 %v1936, %v1942
        %v1945 = vmul.f32 %v1937, %v1942
        %v1947 = vlaneseq
        %v1948 = vshrl.u32 %v1947, 7
        %v1949 = vsub.s32 0, %v1948
        %v1950 = vrot.slane %v1911, %v1949
        %v1952 = vadd.f32 %v1944, %v1950
        %v1953 = vadd.f32 %v1945, %v1950
        %1954 = vst.msk [vmem:[%s541] sm:$0xff] %vm552, %v1952
        %1955 = vst.msk [vmem:[%s541 + $0x8] sm:$0xff] %vm552, %v1953
        %s1956 = sand.u32 %s401, 1
        %s1957 = scalar_lea.sflag [#allocation3], %s1956
        %s1958 = sand.u32 %s401, 1
        %s1959 = smul.addr %s1958, 16
        %s1960 = scalar_lea.vmem [#allocation2], %s1959
        // Predicated region
        $region89: #{transformer_forward.5} parent=87 // pred_check
          %p1961 = pneg %p411
        $region90: #{transformer_forward.5} parent=87 // pred_check_branch
          %1963 = sbr.rel (%p1961) target = $region92
        $region91: #{transformer_forward.5} parent=87 // pred_region
          %s1965 = ssub.s32 256, 256
          %1966 = vsyncadd %s1957, %s1965
          %s1967 = smul.addr %s31, 2
          %s1968 = smul.addr %s1967, 128
          %s1969 = scalar_lea.hbm %s17, %s1968
          %s1970 = sshll.u32 %s1960, 4
          %s1971 = int_to_ptr.vmem [resolvable:$true] %s1970
          %1976 = dma.vmem_to_hbm [thread:$0]  %s1971, 256, %s1969, %s1957, 128, 128, 8
        $region92: #{transformer_forward.5} parent=87 // pred_fallthru
          _
      $region88: #{transformer_forward.5} parent=5 // pred_fallthru
        _
      %p1977 = scmp.le.s32.totalorder 2, %s26
      // Predicated region
      $region93: #{transformer_forward.5} parent=5 // pred_check
        %p1978 = pneg %p1977
      $region94: #{transformer_forward.5} parent=5 // pred_check_branch
        %1980 = sbr.rel (%p1978) target = $region96
      $region95: #{transformer_forward.5} parent=5 // pred_region
        %s1981 = ssub.s32 %s26, 2
        // Predicated region
        $region97: #{transformer_forward.5} parent=95 // pred_check
          %p1982 = pneg %p417
        $region98: #{transformer_forward.5} parent=95 // pred_check_branch
          %1984 = sbr.rel (%p1982) target = $region100
        $region99: #{transformer_forward.5} parent=95 // pred_region
          %s1985 = sand.u32 %s402, 1
          %s1986 = scalar_lea.sflag [#allocation3], %s1985
          %s1987 = sand.u32 %s402, 1
          %s1988 = smul.addr %s1987, 16
          %s1989 = scalar_lea.vmem [#allocation2], %s1988
          %1990 = dma.done %s1986, 256
        $region100: #{transformer_forward.5} parent=95 // pred_fallthru
          _
      $region96: #{transformer_forward.5} parent=5 // pred_fallthru
        _
    $region6: #{transformer_forward.5} parent=1 // loop_footer
      %s30 = sadd.s32 1, %s26
    $region7: #{transformer_forward.5} parent=1 // loop_footer_branch
      %25 = sbr.rel target = $region3
    $region8: #{transformer_forward.5} parent=1 // loop_exit
      _
    %1991 = vsyncpa [#allocation3], 1
    %s1992 = scalar_lea.sflag [#allocation3], 1
    %1993 = vsyncpa %s1992, 1

</llo_original>
